<compile_context>
chip_gen: v5e
topology: v5e:2x2
jax: 0.10.0
libtpu: 0.0.40
codegen_flags: <defaults>
</compile_context>

<pallas_src>
import functools
import math

import jax
import jax.numpy as jnp
from jax import lax
from jax.experimental import pallas as pl
from jax.experimental.pallas import tpu as pltpu


# ---------------------------------------------------------------------------
# In-kernel helpers (f32 math)
# ---------------------------------------------------------------------------
def _layernorm(x, gamma, beta, n_feat, eps=1e-6):
    # Matches the BERT4Rec LayerNorm: torch x.std() is the Bessel-corrected
    # (N-1) std, and eps is added to the std (not the variance).
    mean = jnp.mean(x, axis=-1, keepdims=True)
    var = jnp.sum((x - mean) ** 2, axis=-1, keepdims=True) / (n_feat - 1)
    inv = pl.reciprocal(jnp.sqrt(var) + eps, approx=True)   # EUP slot, nearly free
    return gamma * (x - mean) * inv + beta


def _gelu_tanh(x):
    c = math.sqrt(2.0 / math.pi)
    return 0.5 * x * (1.0 + jnp.tanh(c * (x + 0.044715 * x * x * x)))


# ---------------------------------------------------------------------------
# Pallas kernel: block_b batch elements per grid step, weights resident.
# ---------------------------------------------------------------------------
def transformer_block_kernel(
    x_ref, mask_ref,
    wqkv_ref, bqkv_ref,
    wo_ref, bo_ref,
    ln1_g_ref, ln1_b_ref,
    w1_ref, b1_ref, w2_ref, b2_ref,
    ln2_g_ref, ln2_b_ref,
    out_ref,
    qkv_scr, ctx_scr,
    *, num_heads, d_model, block_b, seq_len,
):
    f32 = jnp.float32
    bf16 = jnp.bfloat16
    S = seq_len
    D = d_model
    d_k = D // num_heads
    M = block_b * S

    # Flatten the batch block onto the sublane axis -> lane/sublane-dense GEMMs.
    xf = x_ref[...].reshape(M, D)                                    # (M, D) f32

    # ---- attention_norm ----
    x_norm = _layernorm(xf, ln1_g_ref[...], ln1_b_ref[...], D)

    # ---- fused QKV projection: ONE (M, D) @ (D, 3D) MXU pass ----
    # (1/sqrt(d_k) was folded into Wq / bq host-side, so no score scaling.)
    qkv = jnp.dot(x_norm.astype(bf16), wqkv_ref[...],
                  preferred_element_type=f32) + bqkv_ref[...]
    qkv_scr[...] = qkv.astype(bf16).reshape(block_b, S, 3 * D)

    # ---- multi-head attention ----
    # fori_loop over the batch block keeps the trace and vreg live ranges
    # bounded in block_b; the head loop is a short static loop with static
    # lane offsets, so the only dynamic index is on an untiled leading axis.
    def batch_body(b, carry):
        # Additive key-padding mask, computed once per batch element.
        add_mask = jnp.where(mask_ref[b] == 0, -1e9, 0.0).astype(f32)   # (1, S)
        for h in range(num_heads):
            lo = h * d_k
            qh = qkv_scr[b, :, lo:lo + d_k]                    # (S, d_k) bf16
            kh = qkv_scr[b, :, D + lo:D + lo + d_k]
            vh = qkv_scr[b, :, 2 * D + lo:2 * D + lo + d_k]
            # q·kᵀ without an explicit transpose (contract on last dims).
            scores = lax.dot_general(qh, kh, (((1,), (1,)), ((), ())),
                                     preferred_element_type=f32)
            scores = scores + add_mask
            m = jnp.max(scores, axis=-1, keepdims=True)
            p = jnp.exp(scores - m)
            inv = pl.reciprocal(jnp.sum(p, axis=-1, keepdims=True), approx=True)
            # Deferred softmax normalization: scale ctx (S, d_k), not p (S, S).
            ctx = jnp.dot(p.astype(bf16), vh, preferred_element_type=f32) * inv
            ctx_scr[b, :, lo:lo + d_k] = ctx.astype(bf16)
        return carry

    lax.fori_loop(0, block_b, batch_body, 0)

    # ---- single full-contraction (K = D) Wo projection over all heads ----
    attn = jnp.dot(ctx_scr[...].reshape(M, D), wo_ref[...],
                   preferred_element_type=f32) + bo_ref[...]

    # ---- residual + pff_norm + positionwise feed-forward + residual ----
    # (all Dropout layers are identity in eval mode)
    y = xf + attn
    y_norm = _layernorm(y, ln2_g_ref[...], ln2_b_ref[...], D)
    hidden = _gelu_tanh(
        jnp.dot(y_norm.astype(bf16), w1_ref[...], preferred_element_type=f32)
        + b1_ref[...])
    ff = jnp.dot(hidden.astype(bf16), w2_ref[...],
                 preferred_element_type=f32) + b2_ref[...]
    z = y + ff

    out_ref[...] = z.reshape(block_b, S, D)


# ---------------------------------------------------------------------------
# Wrapper
# ---------------------------------------------------------------------------
def _pick_vmem_limit():
    # Generation-aware scoped-VMEM limit: ~75% of physical leaves headroom for
    # compiler scratch / pipeline buffers (v7x: 64 MiB phys; v5e/v6e: 128 MiB).
    try:
        cap = pltpu.get_tpu_info().vmem_capacity_bytes
        return int(cap * 3 // 4)
    except Exception:
        return 48 * 1024 * 1024


def transformer_block(x, key_valid_mask, params, num_heads, block_b=1):
    """x: (B, S, D) f32; key_valid_mask: (B, 1, S) int32 (0 = masked key)."""
    B, S, D = x.shape
    d_ff = params["w1"].shape[1]
    assert D % num_heads == 0
    assert B % block_b == 0
    nb = B // block_b
    d_k = D // num_heads
    scale = 1.0 / math.sqrt(d_k)

    bf16 = jnp.bfloat16
    f32 = jnp.float32

    # Fused QKV weight/bias (single MXU pass, single weight DMA); attention
    # scale folded into the Q columns host-side.  Weights shipped as bf16.
    wqkv = jnp.concatenate(
        [params["wq"] * scale, params["wk"], params["wv"]], axis=1).astype(bf16)
    bqkv = jnp.concatenate(
        [params["bq"] * scale, params["bk"], params["bv"]], axis=1).astype(f32)
    wo = params["wo"].astype(bf16)
    w1 = params["w1"].astype(bf16)
    w2 = params["w2"].astype(bf16)

    kernel = functools.partial(
        transformer_block_kernel,
        num_heads=num_heads, d_model=D, block_b=block_b, seq_len=S)

    args = (
        x, key_valid_mask,
        wqkv, bqkv, wo, params["bo"],
        params["ln1_g"], params["ln1_b"],
        w1, params["b1"], w2, params["b2"],
        params["ln2_g"], params["ln2_b"],
    )

    def build(single_buffer_weights):
        def const_spec(shape):
            nd = len(shape)
            kw = {}
            if single_buffer_weights:
                # Grid-invariant operands: one revolving buffer is enough.
                kw["pipeline_mode"] = pl.Buffered(1)
            return pl.BlockSpec(shape, lambda i, _nd=nd: (0,) * _nd, **kw)

        in_specs = [
            pl.BlockSpec((block_b, S, D), lambda i: (i, 0, 0)),      # x
            pl.BlockSpec((block_b, 1, S), lambda i: (i, 0, 0)),      # key-valid mask
            const_spec((D, 3 * D)), const_spec((1, 3 * D)),          # wqkv, bqkv
            const_spec((D, D)), const_spec((1, D)),                  # wo, bo
            const_spec((1, D)), const_spec((1, D)),                  # ln1 gamma, beta
            const_spec((D, d_ff)), const_spec((1, d_ff)),            # w1, b1
            const_spec((d_ff, D)), const_spec((1, D)),               # w2, b2
            const_spec((1, D)), const_spec((1, D)),                  # ln2 gamma, beta
        ]
        return pl.pallas_call(
            kernel,
            out_shape=jax.ShapeDtypeStruct((B, S, D), jnp.float32),
            grid_spec=pltpu.PrefetchScalarGridSpec(
                num_scalar_prefetch=0,
                grid=(nb,),
                in_specs=in_specs,
                out_specs=pl.BlockSpec((block_b, S, D), lambda i: (i, 0, 0)),
                scratch_shapes=[
                    pltpu.VMEM((block_b, S, 3 * D), bf16),   # fused Q|K|V
                    pltpu.VMEM((block_b, S, D), bf16),       # per-head contexts
                ],
            ),
            compiler_params=pltpu.CompilerParams(
                # Independent batch blocks -> megacore-parallel on v7x.
                dimension_semantics=("parallel",),
                vmem_limit_bytes=_pick_vmem_limit(),
            ),
        )

    try:
        return build(True)(*args)
    except Exception:
        # TODO(synk): fallback in case pl.Buffered(1) single-buffering is
        # rejected by this jax/libtpu build; everything else is unchanged.
        return build(False)(*args)


# ---------------------------------------------------------------------------
# Pure-JAX f32 reference (same math as the PyTorch module, eval mode)
# ---------------------------------------------------------------------------
def reference_block(x, mask, params, num_heads):
    B, S, D = x.shape
    d_k = D // num_heads

    def ln(t, g, b, eps=1e-6):
        mean = jnp.mean(t, axis=-1, keepdims=True)
        var = jnp.sum((t - mean) ** 2, axis=-1, keepdims=True) / (D - 1)
        return g * (t - mean) / (jnp.sqrt(var) + eps) + b

    def gelu(t):
        c = math.sqrt(2.0 / math.pi)
        return 0.5 * t * (1.0 + jnp.tanh(c * (t + 0.044715 * t ** 3)))

    x_norm = ln(x, params["ln1_g"], params["ln1_b"])
    q = x_norm @ params["wq"] + params["bq"]
    k = x_norm @ params["wk"] + params["bk"]
    v = x_norm @ params["wv"] + params["bv"]

    def split(t):  # (B,S,D) -> (B,h,S,d_k)
        return t.reshape(B, S, num_heads, d_k).transpose(0, 2, 1, 3)

    qh, kh, vh = split(q), split(k), split(v)
    scores = jnp.einsum("bhqd,bhkd->bhqk", qh, kh) / math.sqrt(d_k)
    scores = jnp.where(mask == 0, -1e9, scores)   # mask (B,1,S,S) broadcasts
    p = jax.nn.softmax(scores, axis=-1)
    ctx = jnp.einsum("bhqk,bhkd->bhqd", p, vh).transpose(0, 2, 1, 3).reshape(B, S, D)
    y = x + (ctx @ params["wo"] + params["bo"])

    y_norm = ln(y, params["ln2_g"], params["ln2_b"])
    ff = gelu(y_norm @ params["w1"] + params["b1"]) @ params["w2"] + params["b2"]
    return y + ff


# ---------------------------------------------------------------------------
# Main
# ---------------------------------------------------------------------------
if __name__ == "__main__":
    B, S, D = 2, 8, 32
    H = 4
    D_FF = 4 * D

    key = jax.random.PRNGKey(0)
    keys = jax.random.split(key, 16)

    def init(k, shape, s=0.05):
        return (s * jax.random.normal(k, shape)).astype(jnp.float32)

    params = {
        # linear weights stored as (in, out)  == torch weight.T
        "wq": init(keys[0], (D, D)), "bq": init(keys[1], (1, D)),
        "wk": init(keys[2], (D, D)), "bk": init(keys[3], (1, D)),
        "wv": init(keys[4], (D, D)), "bv": init(keys[5], (1, D)),
        "wo": init(keys[6], (D, D)), "bo": init(keys[7], (1, D)),
        "ln1_g": jnp.ones((1, D), jnp.float32),
        "ln1_b": jnp.zeros((1, D), jnp.float32),
        "w1": init(keys[8], (D, D_FF)), "b1": init(keys[9], (1, D_FF)),
        "w2": init(keys[10], (D_FF, D)), "b2": init(keys[11], (1, D)),
        "ln2_g": jnp.ones((1, D), jnp.float32),
        "ln2_b": jnp.zeros((1, D), jnp.float32),
    }

    x = jax.random.normal(keys[12], (B, S, D), dtype=jnp.float32)

    # Padding-style mask: keep first `len` key positions per batch element.
    lengths = jnp.array([S, S - 3], dtype=jnp.int32)
    key_valid = (jnp.arange(S)[None, :] < lengths[:, None]).astype(jnp.int32)   # (B, S)
    mask_compact = key_valid[:, None, :]                                        # (B, 1, S)
    mask_full = jnp.broadcast_to(
        key_valid[:, None, None, :], (B, 1, S, S)
    ).astype(jnp.int32)                                                         # (B, 1, S, S)

    # block_b=1 -> nb=2 grid steps: on v7x each TensorCore gets one batch block.
    # (For large real batches pick the largest block_b with nb >= 2 that fits VMEM.)
    out = transformer_block(x, mask_compact, params, num_heads=H, block_b=1)
    out = jax.block_until_ready(out)

    ref = reference_block(x, mask_full, params, num_heads=H)
    assert out.shape == (B, S, D)
    max_err = float(jnp.max(jnp.abs(out - ref)))
    # bf16 matmul operands (f32 accumulation) + approx EUP reciprocals
    # -> loosened tolerance vs the f32 reference.
    assert jnp.allclose(out, ref, rtol=2e-2, atol=2e-2), (
        f"mismatch vs reference (max abs err {max_err})")

    print("KERNEL_OK")
</pallas_src>

<mosaic_0001>
module attributes {stable_mosaic.version = 11 : i64} {
  func.func @transformer_block_kernel(%arg0: i32, %arg1: memref<1x8x32xf32, #tpu.memory_space<vmem>>, %arg2: memref<1x1x8xi32, #tpu.memory_space<vmem>>, %arg3: memref<32x96xbf16, #tpu.memory_space<vmem>>, %arg4: memref<1x96xf32, #tpu.memory_space<vmem>>, %arg5: memref<32x32xbf16, #tpu.memory_space<vmem>>, %arg6: memref<1x32xf32, #tpu.memory_space<vmem>>, %arg7: memref<1x32xf32, #tpu.memory_space<vmem>>, %arg8: memref<1x32xf32, #tpu.memory_space<vmem>>, %arg9: memref<32x128xbf16, #tpu.memory_space<vmem>>, %arg10: memref<1x128xf32, #tpu.memory_space<vmem>>, %arg11: memref<128x32xbf16, #tpu.memory_space<vmem>>, %arg12: memref<1x32xf32, #tpu.memory_space<vmem>>, %arg13: memref<1x32xf32, #tpu.memory_space<vmem>>, %arg14: memref<1x32xf32, #tpu.memory_space<vmem>>, %arg15: memref<1x8x32xf32, #tpu.memory_space<vmem>>, %arg16: memref<1x8x96xbf16, #tpu.memory_space<vmem>>, %arg17: memref<1x8x32xbf16, #tpu.memory_space<vmem>>) attributes {dimension_semantics = [#tpu.dimension_semantics<parallel>], iteration_bounds = array<i64: 2>, scalar_prefetch = 0 : i64, scratch_operands = 2 : i64, tpu.core_type = #tpu.core_type<tc>, window_params = [{transform_indices = @transform_0, window_bounds = array<i64: 1, 8, 32>}, {transform_indices = @transform_1, window_bounds = array<i64: 1, 1, 8>}, {pipeline_mode = #tpu.pipeline_mode<synchronous>, transform_indices = @transform_2, window_bounds = array<i64: 32, 96>}, {pipeline_mode = #tpu.pipeline_mode<synchronous>, transform_indices = @transform_3, window_bounds = array<i64: 1, 96>}, {pipeline_mode = #tpu.pipeline_mode<synchronous>, transform_indices = @transform_4, window_bounds = array<i64: 32, 32>}, {pipeline_mode = #tpu.pipeline_mode<synchronous>, transform_indices = @transform_5, window_bounds = array<i64: 1, 32>}, {pipeline_mode = #tpu.pipeline_mode<synchronous>, transform_indices = @transform_6, window_bounds = array<i64: 1, 32>}, {pipeline_mode = #tpu.pipeline_mode<synchronous>, transform_indices = @transform_7, window_bounds = array<i64: 1, 32>}, {pipeline_mode = #tpu.pipeline_mode<synchronous>, transform_indices = @transform_8, window_bounds = array<i64: 32, 128>}, {pipeline_mode = #tpu.pipeline_mode<synchronous>, transform_indices = @transform_9, window_bounds = array<i64: 1, 128>}, {pipeline_mode = #tpu.pipeline_mode<synchronous>, transform_indices = @transform_10, window_bounds = array<i64: 128, 32>}, {pipeline_mode = #tpu.pipeline_mode<synchronous>, transform_indices = @transform_11, window_bounds = array<i64: 1, 32>}, {pipeline_mode = #tpu.pipeline_mode<synchronous>, transform_indices = @transform_12, window_bounds = array<i64: 1, 32>}, {pipeline_mode = #tpu.pipeline_mode<synchronous>, transform_indices = @transform_13, window_bounds = array<i64: 1, 32>}, {transform_indices = @transform_14, window_bounds = array<i64: 1, 8, 32>}]} {
    %c0 = arith.constant 0 : index
    %c0_0 = arith.constant 0 : index
    %c0_1 = arith.constant 0 : index
    %0 = vector.load %arg1[%c0, %c0_0, %c0_1] : memref<1x8x32xf32, #tpu.memory_space<vmem>>, vector<1x8x32xf32>
    %1 = vector.shape_cast %0 : vector<1x8x32xf32> to vector<8x32xf32>
    %c0_2 = arith.constant 0 : index
    %c0_3 = arith.constant 0 : index
    %2 = vector.load %arg7[%c0_2, %c0_3] : memref<1x32xf32, #tpu.memory_space<vmem>>, vector<1x32xf32>
    %c0_4 = arith.constant 0 : index
    %c0_5 = arith.constant 0 : index
    %3 = vector.load %arg8[%c0_4, %c0_5] : memref<1x32xf32, #tpu.memory_space<vmem>>, vector<1x32xf32>
    %cst = arith.constant dense<0.000000e+00> : vector<8xf32>
    %4 = vector.multi_reduction <add>, %1, %cst [1] : vector<8x32xf32> to vector<8xf32>
    %5 = vector.shape_cast %4 : vector<8xf32> to vector<8x1xf32>
    %cst_6 = arith.constant 3.200000e+01 : f32
    %6 = vector.broadcast %cst_6 : f32 to vector<8x1xf32>
    %7 = arith.divf %5, %6 : vector<8x1xf32>
    %8 = vector.broadcast %7 : vector<8x1xf32> to vector<8x32xf32>
    %9 = arith.subf %1, %8 : vector<8x32xf32>
    %10 = arith.mulf %9, %9 : vector<8x32xf32>
    %cst_7 = arith.constant dense<0.000000e+00> : vector<8xf32>
    %11 = vector.multi_reduction <add>, %10, %cst_7 [1] : vector<8x32xf32> to vector<8xf32>
    %12 = vector.shape_cast %11 : vector<8xf32> to vector<8x1xf32>
    %cst_8 = arith.constant 3.100000e+01 : f32
    %13 = vector.broadcast %cst_8 : f32 to vector<8x1xf32>
    %14 = arith.divf %12, %13 : vector<8x1xf32>
    %15 = math.sqrt %14 : vector<8x1xf32>
    %cst_9 = arith.constant 9.99999997E-7 : f32
    %16 = vector.broadcast %cst_9 : f32 to vector<8x1xf32>
    %17 = arith.addf %15, %16 : vector<8x1xf32>
    %18 = tpu.reciprocal %17 {approx = true} : vector<8x1xf32> -> vector<8x1xf32>
    %19 = vector.broadcast %7 : vector<8x1xf32> to vector<8x32xf32>
    %20 = arith.subf %1, %19 : vector<8x32xf32>
    %21 = vector.broadcast %2 : vector<1x32xf32> to vector<8x32xf32>
    %22 = arith.mulf %21, %20 : vector<8x32xf32>
    %23 = vector.broadcast %18 : vector<8x1xf32> to vector<8x32xf32>
    %24 = arith.mulf %22, %23 : vector<8x32xf32>
    %25 = vector.broadcast %3 : vector<1x32xf32> to vector<8x32xf32>
    %26 = arith.addf %24, %25 : vector<8x32xf32>
    %27 = arith.truncf %26 : vector<8x32xf32> to vector<8x32xbf16>
    %c0_10 = arith.constant 0 : index
    %c0_11 = arith.constant 0 : index
    %28 = vector.load %arg3[%c0_10, %c0_11] : memref<32x96xbf16, #tpu.memory_space<vmem>>, vector<32x96xbf16>
    %cst_12 = arith.constant dense<0.000000e+00> : vector<8x96xf32>
    %29 = tpu.matmul %27, %28, %cst_12 {dimension_numbers = #tpu.dot_dimension_numbers<[1], [0], [0], [1], [0, 0, 1, 1], [], []>} : vector<8x32xbf16>, vector<32x96xbf16>, vector<8x96xf32> -> vector<8x96xf32>
    %c0_13 = arith.constant 0 : index
    %c0_14 = arith.constant 0 : index
    %30 = vector.load %arg4[%c0_13, %c0_14] : memref<1x96xf32, #tpu.memory_space<vmem>>, vector<1x96xf32>
    %31 = vector.broadcast %30 : vector<1x96xf32> to vector<8x96xf32>
    %32 = arith.addf %29, %31 : vector<8x96xf32>
    %33 = arith.truncf %32 : vector<8x96xf32> to vector<8x96xbf16>
    %34 = vector.shape_cast %33 : vector<8x96xbf16> to vector<1x8x96xbf16>
    %c0_15 = arith.constant 0 : index
    %c0_16 = arith.constant 0 : index
    %c0_17 = arith.constant 0 : index
    %35 = vector.load %arg16[%c0_15, %c0_16, %c0_17] : memref<1x8x96xbf16, #tpu.memory_space<vmem>>, vector<1x8x96xbf16>
    tpu.vector_store %arg16[%c0_15, %c0_16, %c0_17], %34 {strides = array<i32>} : memref<1x8x96xbf16, #tpu.memory_space<vmem>>, vector<1x8x96xbf16>,
    %c0_i32 = arith.constant 0 : i32
    %36 = arith.index_cast %c0_i32 : i32 to index
    %c0_18 = arith.constant 0 : index
    %c0_19 = arith.constant 0 : index
    %37 = vector.load %arg2[%36, %c0_18, %c0_19] : memref<1x1x8xi32, #tpu.memory_space<vmem>>, vector<1x1x8xi32>
    %38 = vector.shape_cast %37 : vector<1x1x8xi32> to vector<1x8xi32>
    %c0_i32_20 = arith.constant 0 : i32
    %39 = vector.broadcast %c0_i32_20 : i32 to vector<1x8xi32>
    %40 = arith.cmpi eq, %38, %39 : vector<1x8xi32>
    %cst_21 = arith.constant -1.000000e+09 : f32
    %cst_22 = arith.constant 0.000000e+00 : f32
    %41 = vector.broadcast %cst_21 : f32 to vector<1x8xf32>
    %42 = vector.broadcast %cst_22 : f32 to vector<1x8xf32>
    %43 = arith.select %40, %41, %42 : vector<1x8xi1>, vector<1x8xf32>
    %44 = arith.index_cast %c0_i32 : i32 to index
    %c0_23 = arith.constant 0 : index
    %c0_24 = arith.constant 0 : index
    %45 = vector.load %arg16[%44, %c0_23, %c0_24] : memref<1x8x96xbf16, #tpu.memory_space<vmem>>, vector<1x8x8xbf16>
    %46 = vector.shape_cast %45 : vector<1x8x8xbf16> to vector<8x8xbf16>
    %47 = arith.index_cast %c0_i32 : i32 to index
    %c0_25 = arith.constant 0 : index
    %c32 = arith.constant 32 : index
    %48 = vector.load %arg16[%47, %c0_25, %c32] : memref<1x8x96xbf16, #tpu.memory_space<vmem>>, vector<1x8x8xbf16>
    %49 = vector.shape_cast %48 : vector<1x8x8xbf16> to vector<8x8xbf16>
    %50 = arith.index_cast %c0_i32 : i32 to index
    %c0_26 = arith.constant 0 : index
    %c64 = arith.constant 64 : index
    %51 = vector.load %arg16[%50, %c0_26, %c64] : memref<1x8x96xbf16, #tpu.memory_space<vmem>>, vector<1x8x8xbf16>
    %52 = vector.shape_cast %51 : vector<1x8x8xbf16> to vector<8x8xbf16>
    %cst_27 = arith.constant dense<0.000000e+00> : vector<8x8xf32>
    %53 = tpu.matmul %46, %49, %cst_27 {dimension_numbers = #tpu.dot_dimension_numbers<[1], [1], [0], [0], [0, 0, 1, 0], [], []>} : vector<8x8xbf16>, vector<8x8xbf16>, vector<8x8xf32> -> vector<8x8xf32>
    %54 = vector.broadcast %43 : vector<1x8xf32> to vector<8x8xf32>
    %55 = arith.addf %53, %54 : vector<8x8xf32>
    %cst_28 = arith.constant dense<0xFF800000> : vector<8xf32>
    %56 = vector.multi_reduction <maximumf>, %55, %cst_28 [1] : vector<8x8xf32> to vector<8xf32>
    %57 = vector.shape_cast %56 : vector<8xf32> to vector<8x1xf32>
    %58 = vector.broadcast %57 : vector<8x1xf32> to vector<8x8xf32>
    %59 = arith.subf %55, %58 : vector<8x8xf32>
    %60 = math.exp %59 : vector<8x8xf32>
    %cst_29 = arith.constant dense<0.000000e+00> : vector<8xf32>
    %61 = vector.multi_reduction <add>, %60, %cst_29 [1] : vector<8x8xf32> to vector<8xf32>
    %62 = vector.shape_cast %61 : vector<8xf32> to vector<8x1xf32>
    %63 = tpu.reciprocal %62 {approx = true} : vector<8x1xf32> -> vector<8x1xf32>
    %64 = arith.truncf %60 : vector<8x8xf32> to vector<8x8xbf16>
    %cst_30 = arith.constant dense<0.000000e+00> : vector<8x8xf32>
    %65 = tpu.matmul %64, %52, %cst_30 {dimension_numbers = #tpu.dot_dimension_numbers<[1], [0], [0], [1], [0, 0, 1, 1], [], []>} : vector<8x8xbf16>, vector<8x8xbf16>, vector<8x8xf32> -> vector<8x8xf32>
    %66 = vector.broadcast %63 : vector<8x1xf32> to vector<8x8xf32>
    %67 = arith.mulf %65, %66 : vector<8x8xf32>
    %68 = arith.truncf %67 : vector<8x8xf32> to vector<8x8xbf16>
    %69 = arith.index_cast %c0_i32 : i32 to index
    %c0_31 = arith.constant 0 : index
    %c0_32 = arith.constant 0 : index
    %70 = vector.load %arg17[%69, %c0_31, %c0_32] : memref<1x8x32xbf16, #tpu.memory_space<vmem>>, vector<1x8x8xbf16>
    %71 = vector.shape_cast %70 : vector<1x8x8xbf16> to vector<8x8xbf16>
    %72 = vector.shape_cast %68 : vector<8x8xbf16> to vector<1x8x8xbf16>
    tpu.vector_store %arg17[%69, %c0_31, %c0_32], %72 {strides = array<i32>} : memref<1x8x32xbf16, #tpu.memory_space<vmem>>, vector<1x8x8xbf16>,
    %73 = arith.index_cast %c0_i32 : i32 to index
    %c0_33 = arith.constant 0 : index
    %c8 = arith.constant 8 : index
    %74 = vector.load %arg16[%73, %c0_33, %c8] : memref<1x8x96xbf16, #tpu.memory_space<vmem>>, vector<1x8x8xbf16>
    %75 = vector.shape_cast %74 : vector<1x8x8xbf16> to vector<8x8xbf16>
    %76 = arith.index_cast %c0_i32 : i32 to index
    %c0_34 = arith.constant 0 : index
    %c40 = arith.constant 40 : index
    %77 = vector.load %arg16[%76, %c0_34, %c40] : memref<1x8x96xbf16, #tpu.memory_space<vmem>>, vector<1x8x8xbf16>
    %78 = vector.shape_cast %77 : vector<1x8x8xbf16> to vector<8x8xbf16>
    %79 = arith.index_cast %c0_i32 : i32 to index
    %c0_35 = arith.constant 0 : index
    %c72 = arith.constant 72 : index
    %80 = vector.load %arg16[%79, %c0_35, %c72] : memref<1x8x96xbf16, #tpu.memory_space<vmem>>, vector<1x8x8xbf16>
    %81 = vector.shape_cast %80 : vector<1x8x8xbf16> to vector<8x8xbf16>
    %cst_36 = arith.constant dense<0.000000e+00> : vector<8x8xf32>
    %82 = tpu.matmul %75, %78, %cst_36 {dimension_numbers = #tpu.dot_dimension_numbers<[1], [1], [0], [0], [0, 0, 1, 0], [], []>} : vector<8x8xbf16>, vector<8x8xbf16>, vector<8x8xf32> -> vector<8x8xf32>
    %83 = vector.broadcast %43 : vector<1x8xf32> to vector<8x8xf32>
    %84 = arith.addf %82, %83 : vector<8x8xf32>
    %cst_37 = arith.constant dense<0xFF800000> : vector<8xf32>
    %85 = vector.multi_reduction <maximumf>, %84, %cst_37 [1] : vector<8x8xf32> to vector<8xf32>
    %86 = vector.shape_cast %85 : vector<8xf32> to vector<8x1xf32>
    %87 = vector.broadcast %86 : vector<8x1xf32> to vector<8x8xf32>
    %88 = arith.subf %84, %87 : vector<8x8xf32>
    %89 = math.exp %88 : vector<8x8xf32>
    %cst_38 = arith.constant dense<0.000000e+00> : vector<8xf32>
    %90 = vector.multi_reduction <add>, %89, %cst_38 [1] : vector<8x8xf32> to vector<8xf32>
    %91 = vector.shape_cast %90 : vector<8xf32> to vector<8x1xf32>
    %92 = tpu.reciprocal %91 {approx = true} : vector<8x1xf32> -> vector<8x1xf32>
    %93 = arith.truncf %89 : vector<8x8xf32> to vector<8x8xbf16>
    %cst_39 = arith.constant dense<0.000000e+00> : vector<8x8xf32>
    %94 = tpu.matmul %93, %81, %cst_39 {dimension_numbers = #tpu.dot_dimension_numbers<[1], [0], [0], [1], [0, 0, 1, 1], [], []>} : vector<8x8xbf16>, vector<8x8xbf16>, vector<8x8xf32> -> vector<8x8xf32>
    %95 = vector.broadcast %92 : vector<8x1xf32> to vector<8x8xf32>
    %96 = arith.mulf %94, %95 : vector<8x8xf32>
    %97 = arith.truncf %96 : vector<8x8xf32> to vector<8x8xbf16>
    %98 = arith.index_cast %c0_i32 : i32 to index
    %c0_40 = arith.constant 0 : index
    %c8_41 = arith.constant 8 : index
    %99 = vector.load %arg17[%98, %c0_40, %c8_41] : memref<1x8x32xbf16, #tpu.memory_space<vmem>>, vector<1x8x8xbf16>
    %100 = vector.shape_cast %99 : vector<1x8x8xbf16> to vector<8x8xbf16>
    %101 = vector.shape_cast %97 : vector<8x8xbf16> to vector<1x8x8xbf16>
    tpu.vector_store %arg17[%98, %c0_40, %c8_41], %101 {strides = array<i32>} : memref<1x8x32xbf16, #tpu.memory_space<vmem>>, vector<1x8x8xbf16>,
    %102 = arith.index_cast %c0_i32 : i32 to index
    %c0_42 = arith.constant 0 : index
    %c16 = arith.constant 16 : index
    %103 = vector.load %arg16[%102, %c0_42, %c16] : memref<1x8x96xbf16, #tpu.memory_space<vmem>>, vector<1x8x8xbf16>
    %104 = vector.shape_cast %103 : vector<1x8x8xbf16> to vector<8x8xbf16>
    %105 = arith.index_cast %c0_i32 : i32 to index
    %c0_43 = arith.constant 0 : index
    %c48 = arith.constant 48 : index
    %106 = vector.load %arg16[%105, %c0_43, %c48] : memref<1x8x96xbf16, #tpu.memory_space<vmem>>, vector<1x8x8xbf16>
    %107 = vector.shape_cast %106 : vector<1x8x8xbf16> to vector<8x8xbf16>
    %108 = arith.index_cast %c0_i32 : i32 to index
    %c0_44 = arith.constant 0 : index
    %c80 = arith.constant 80 : index
    %109 = vector.load %arg16[%108, %c0_44, %c80] : memref<1x8x96xbf16, #tpu.memory_space<vmem>>, vector<1x8x8xbf16>
    %110 = vector.shape_cast %109 : vector<1x8x8xbf16> to vector<8x8xbf16>
    %cst_45 = arith.constant dense<0.000000e+00> : vector<8x8xf32>
    %111 = tpu.matmul %104, %107, %cst_45 {dimension_numbers = #tpu.dot_dimension_numbers<[1], [1], [0], [0], [0, 0, 1, 0], [], []>} : vector<8x8xbf16>, vector<8x8xbf16>, vector<8x8xf32> -> vector<8x8xf32>
    %112 = vector.broadcast %43 : vector<1x8xf32> to vector<8x8xf32>
    %113 = arith.addf %111, %112 : vector<8x8xf32>
    %cst_46 = arith.constant dense<0xFF800000> : vector<8xf32>
    %114 = vector.multi_reduction <maximumf>, %113, %cst_46 [1] : vector<8x8xf32> to vector<8xf32>
    %115 = vector.shape_cast %114 : vector<8xf32> to vector<8x1xf32>
    %116 = vector.broadcast %115 : vector<8x1xf32> to vector<8x8xf32>
    %117 = arith.subf %113, %116 : vector<8x8xf32>
    %118 = math.exp %117 : vector<8x8xf32>
    %cst_47 = arith.constant dense<0.000000e+00> : vector<8xf32>
    %119 = vector.multi_reduction <add>, %118, %cst_47 [1] : vector<8x8xf32> to vector<8xf32>
    %120 = vector.shape_cast %119 : vector<8xf32> to vector<8x1xf32>
    %121 = tpu.reciprocal %120 {approx = true} : vector<8x1xf32> -> vector<8x1xf32>
    %122 = arith.truncf %118 : vector<8x8xf32> to vector<8x8xbf16>
    %cst_48 = arith.constant dense<0.000000e+00> : vector<8x8xf32>
    %123 = tpu.matmul %122, %110, %cst_48 {dimension_numbers = #tpu.dot_dimension_numbers<[1], [0], [0], [1], [0, 0, 1, 1], [], []>} : vector<8x8xbf16>, vector<8x8xbf16>, vector<8x8xf32> -> vector<8x8xf32>
    %124 = vector.broadcast %121 : vector<8x1xf32> to vector<8x8xf32>
    %125 = arith.mulf %123, %124 : vector<8x8xf32>
    %126 = arith.truncf %125 : vector<8x8xf32> to vector<8x8xbf16>
    %127 = arith.index_cast %c0_i32 : i32 to index
    %c0_49 = arith.constant 0 : index
    %c16_50 = arith.constant 16 : index
    %128 = vector.load %arg17[%127, %c0_49, %c16_50] : memref<1x8x32xbf16, #tpu.memory_space<vmem>>, vector<1x8x8xbf16>
    %129 = vector.shape_cast %128 : vector<1x8x8xbf16> to vector<8x8xbf16>
    %130 = vector.shape_cast %126 : vector<8x8xbf16> to vector<1x8x8xbf16>
    tpu.vector_store %arg17[%127, %c0_49, %c16_50], %130 {strides = array<i32>} : memref<1x8x32xbf16, #tpu.memory_space<vmem>>, vector<1x8x8xbf16>,
    %131 = arith.index_cast %c0_i32 : i32 to index
    %c0_51 = arith.constant 0 : index
    %c24 = arith.constant 24 : index
    %132 = vector.load %arg16[%131, %c0_51, %c24] : memref<1x8x96xbf16, #tpu.memory_space<vmem>>, vector<1x8x8xbf16>
    %133 = vector.shape_cast %132 : vector<1x8x8xbf16> to vector<8x8xbf16>
    %134 = arith.index_cast %c0_i32 : i32 to index
    %c0_52 = arith.constant 0 : index
    %c56 = arith.constant 56 : index
    %135 = vector.load %arg16[%134, %c0_52, %c56] : memref<1x8x96xbf16, #tpu.memory_space<vmem>>, vector<1x8x8xbf16>
    %136 = vector.shape_cast %135 : vector<1x8x8xbf16> to vector<8x8xbf16>
    %137 = arith.index_cast %c0_i32 : i32 to index
    %c0_53 = arith.constant 0 : index
    %c88 = arith.constant 88 : index
    %138 = vector.load %arg16[%137, %c0_53, %c88] : memref<1x8x96xbf16, #tpu.memory_space<vmem>>, vector<1x8x8xbf16>
    %139 = vector.shape_cast %138 : vector<1x8x8xbf16> to vector<8x8xbf16>
    %cst_54 = arith.constant dense<0.000000e+00> : vector<8x8xf32>
    %140 = tpu.matmul %133, %136, %cst_54 {dimension_numbers = #tpu.dot_dimension_numbers<[1], [1], [0], [0], [0, 0, 1, 0], [], []>} : vector<8x8xbf16>, vector<8x8xbf16>, vector<8x8xf32> -> vector<8x8xf32>
    %141 = vector.broadcast %43 : vector<1x8xf32> to vector<8x8xf32>
    %142 = arith.addf %140, %141 : vector<8x8xf32>
    %cst_55 = arith.constant dense<0xFF800000> : vector<8xf32>
    %143 = vector.multi_reduction <maximumf>, %142, %cst_55 [1] : vector<8x8xf32> to vector<8xf32>
    %144 = vector.shape_cast %143 : vector<8xf32> to vector<8x1xf32>
    %145 = vector.broadcast %144 : vector<8x1xf32> to vector<8x8xf32>
    %146 = arith.subf %142, %145 : vector<8x8xf32>
    %147 = math.exp %146 : vector<8x8xf32>
    %cst_56 = arith.constant dense<0.000000e+00> : vector<8xf32>
    %148 = vector.multi_reduction <add>, %147, %cst_56 [1] : vector<8x8xf32> to vector<8xf32>
    %149 = vector.shape_cast %148 : vector<8xf32> to vector<8x1xf32>
    %150 = tpu.reciprocal %149 {approx = true} : vector<8x1xf32> -> vector<8x1xf32>
    %151 = arith.truncf %147 : vector<8x8xf32> to vector<8x8xbf16>
    %cst_57 = arith.constant dense<0.000000e+00> : vector<8x8xf32>
    %152 = tpu.matmul %151, %139, %cst_57 {dimension_numbers = #tpu.dot_dimension_numbers<[1], [0], [0], [1], [0, 0, 1, 1], [], []>} : vector<8x8xbf16>, vector<8x8xbf16>, vector<8x8xf32> -> vector<8x8xf32>
    %153 = vector.broadcast %150 : vector<8x1xf32> to vector<8x8xf32>
    %154 = arith.mulf %152, %153 : vector<8x8xf32>
    %155 = arith.truncf %154 : vector<8x8xf32> to vector<8x8xbf16>
    %156 = arith.index_cast %c0_i32 : i32 to index
    %c0_58 = arith.constant 0 : index
    %c24_59 = arith.constant 24 : index
    %157 = vector.load %arg17[%156, %c0_58, %c24_59] : memref<1x8x32xbf16, #tpu.memory_space<vmem>>, vector<1x8x8xbf16>
    %158 = vector.shape_cast %157 : vector<1x8x8xbf16> to vector<8x8xbf16>
    %159 = vector.shape_cast %155 : vector<8x8xbf16> to vector<1x8x8xbf16>
    tpu.vector_store %arg17[%156, %c0_58, %c24_59], %159 {strides = array<i32>} : memref<1x8x32xbf16, #tpu.memory_space<vmem>>, vector<1x8x8xbf16>,
    %c1_i32 = arith.constant 1 : i32
    %c0_60 = arith.constant 0 : index
    %c0_61 = arith.constant 0 : index
    %c0_62 = arith.constant 0 : index
    %160 = vector.load %arg17[%c0_60, %c0_61, %c0_62] : memref<1x8x32xbf16, #tpu.memory_space<vmem>>, vector<1x8x32xbf16>
    %161 = vector.shape_cast %160 : vector<1x8x32xbf16> to vector<8x32xbf16>
    %c0_63 = arith.constant 0 : index
    %c0_64 = arith.constant 0 : index
    %162 = vector.load %arg5[%c0_63, %c0_64] : memref<32x32xbf16, #tpu.memory_space<vmem>>, vector<32x32xbf16>
    %cst_65 = arith.constant dense<0.000000e+00> : vector<8x32xf32>
    %163 = tpu.matmul %161, %162, %cst_65 {dimension_numbers = #tpu.dot_dimension_numbers<[1], [0], [0], [1], [0, 0, 1, 1], [], []>} : vector<8x32xbf16>, vector<32x32xbf16>, vector<8x32xf32> -> vector<8x32xf32>
    %c0_66 = arith.constant 0 : index
    %c0_67 = arith.constant 0 : index
    %164 = vector.load %arg6[%c0_66, %c0_67] : memref<1x32xf32, #tpu.memory_space<vmem>>, vector<1x32xf32>
    %165 = vector.broadcast %164 : vector<1x32xf32> to vector<8x32xf32>
    %166 = arith.addf %163, %165 : vector<8x32xf32>
    %167 = arith.addf %1, %166 : vector<8x32xf32>
    %c0_68 = arith.constant 0 : index
    %c0_69 = arith.constant 0 : index
    %168 = vector.load %arg13[%c0_68, %c0_69] : memref<1x32xf32, #tpu.memory_space<vmem>>, vector<1x32xf32>
    %c0_70 = arith.constant 0 : index
    %c0_71 = arith.constant 0 : index
    %169 = vector.load %arg14[%c0_70, %c0_71] : memref<1x32xf32, #tpu.memory_space<vmem>>, vector<1x32xf32>
    %cst_72 = arith.constant dense<0.000000e+00> : vector<8xf32>
    %170 = vector.multi_reduction <add>, %167, %cst_72 [1] : vector<8x32xf32> to vector<8xf32>
    %171 = vector.shape_cast %170 : vector<8xf32> to vector<8x1xf32>
    %cst_73 = arith.constant 3.200000e+01 : f32
    %172 = vector.broadcast %cst_73 : f32 to vector<8x1xf32>
    %173 = arith.divf %171, %172 : vector<8x1xf32>
    %174 = vector.broadcast %173 : vector<8x1xf32> to vector<8x32xf32>
    %175 = arith.subf %167, %174 : vector<8x32xf32>
    %176 = arith.mulf %175, %175 : vector<8x32xf32>
    %cst_74 = arith.constant dense<0.000000e+00> : vector<8xf32>
    %177 = vector.multi_reduction <add>, %176, %cst_74 [1] : vector<8x32xf32> to vector<8xf32>
    %178 = vector.shape_cast %177 : vector<8xf32> to vector<8x1xf32>
    %cst_75 = arith.constant 3.100000e+01 : f32
    %179 = vector.broadcast %cst_75 : f32 to vector<8x1xf32>
    %180 = arith.divf %178, %179 : vector<8x1xf32>
    %181 = math.sqrt %180 : vector<8x1xf32>
    %cst_76 = arith.constant 9.99999997E-7 : f32
    %182 = vector.broadcast %cst_76 : f32 to vector<8x1xf32>
    %183 = arith.addf %181, %182 : vector<8x1xf32>
    %184 = tpu.reciprocal %183 {approx = true} : vector<8x1xf32> -> vector<8x1xf32>
    %185 = vector.broadcast %173 : vector<8x1xf32> to vector<8x32xf32>
    %186 = arith.subf %167, %185 : vector<8x32xf32>
    %187 = vector.broadcast %168 : vector<1x32xf32> to vector<8x32xf32>
    %188 = arith.mulf %187, %186 : vector<8x32xf32>
    %189 = vector.broadcast %184 : vector<8x1xf32> to vector<8x32xf32>
    %190 = arith.mulf %188, %189 : vector<8x32xf32>
    %191 = vector.broadcast %169 : vector<1x32xf32> to vector<8x32xf32>
    %192 = arith.addf %190, %191 : vector<8x32xf32>
    %193 = arith.truncf %192 : vector<8x32xf32> to vector<8x32xbf16>
    %c0_77 = arith.constant 0 : index
    %c0_78 = arith.constant 0 : index
    %194 = vector.load %arg9[%c0_77, %c0_78] : memref<32x128xbf16, #tpu.memory_space<vmem>>, vector<32x128xbf16>
    %cst_79 = arith.constant dense<0.000000e+00> : vector<8x128xf32>
    %195 = tpu.matmul %193, %194, %cst_79 {dimension_numbers = #tpu.dot_dimension_numbers<[1], [0], [0], [1], [0, 0, 1, 1], [], []>} : vector<8x32xbf16>, vector<32x128xbf16>, vector<8x128xf32> -> vector<8x128xf32>
    %c0_80 = arith.constant 0 : index
    %c0_81 = arith.constant 0 : index
    %196 = vector.load %arg10[%c0_80, %c0_81] : memref<1x128xf32, #tpu.memory_space<vmem>>, vector<1x128xf32>
    %197 = vector.broadcast %196 : vector<1x128xf32> to vector<8x128xf32>
    %198 = arith.addf %195, %197 : vector<8x128xf32>
    %cst_82 = arith.constant 5.000000e-01 : f32
    %199 = vector.broadcast %cst_82 : f32 to vector<8x128xf32>
    %200 = arith.mulf %199, %198 : vector<8x128xf32>
    %cst_83 = arith.constant 4.471500e-02 : f32
    %201 = vector.broadcast %cst_83 : f32 to vector<8x128xf32>
    %202 = arith.mulf %201, %198 : vector<8x128xf32>
    %203 = arith.mulf %202, %198 : vector<8x128xf32>
    %204 = arith.mulf %203, %198 : vector<8x128xf32>
    %205 = arith.addf %198, %204 : vector<8x128xf32>
    %cst_84 = arith.constant 0.797884583 : f32
    %206 = vector.broadcast %cst_84 : f32 to vector<8x128xf32>
    %207 = arith.mulf %206, %205 : vector<8x128xf32>
    %208 = math.tanh %207 : vector<8x128xf32>
    %cst_85 = arith.constant 1.000000e+00 : f32
    %209 = vector.broadcast %cst_85 : f32 to vector<8x128xf32>
    %210 = arith.addf %209, %208 : vector<8x128xf32>
    %211 = arith.mulf %200, %210 : vector<8x128xf32>
    %212 = arith.truncf %211 : vector<8x128xf32> to vector<8x128xbf16>
    %c0_86 = arith.constant 0 : index
    %c0_87 = arith.constant 0 : index
    %213 = vector.load %arg11[%c0_86, %c0_87] : memref<128x32xbf16, #tpu.memory_space<vmem>>, vector<128x32xbf16>
    %cst_88 = arith.constant dense<0.000000e+00> : vector<8x32xf32>
    %214 = tpu.matmul %212, %213, %cst_88 {dimension_numbers = #tpu.dot_dimension_numbers<[1], [0], [0], [1], [0, 0, 1, 1], [], []>} : vector<8x128xbf16>, vector<128x32xbf16>, vector<8x32xf32> -> vector<8x32xf32>
    %c0_89 = arith.constant 0 : index
    %c0_90 = arith.constant 0 : index
    %215 = vector.load %arg12[%c0_89, %c0_90] : memref<1x32xf32, #tpu.memory_space<vmem>>, vector<1x32xf32>
    %216 = vector.broadcast %215 : vector<1x32xf32> to vector<8x32xf32>
    %217 = arith.addf %214, %216 : vector<8x32xf32>
    %218 = arith.addf %167, %217 : vector<8x32xf32>
    %219 = vector.shape_cast %218 : vector<8x32xf32> to vector<1x8x32xf32>
    %c0_91 = arith.constant 0 : index
    %c0_92 = arith.constant 0 : index
    %c0_93 = arith.constant 0 : index
    %220 = vector.load %arg15[%c0_91, %c0_92, %c0_93] : memref<1x8x32xf32, #tpu.memory_space<vmem>>, vector<1x8x32xf32>
    tpu.vector_store %arg15[%c0_91, %c0_92, %c0_93], %219 {strides = array<i32>} : memref<1x8x32xf32, #tpu.memory_space<vmem>>, vector<1x8x32xf32>,
    return
  }
  func.func @transform_0(%arg0: i32) -> (i32, i32, i32) {
    %c0_i32 = arith.constant 0 : i32
    %c0_i32_0 = arith.constant 0 : i32
    %c0_i32_1 = arith.constant 0 : i32
    return %arg0, %c0_i32, %c0_i32_0 : i32, i32, i32
  }
  func.func @transform_1(%arg0: i32) -> (i32, i32, i32) {
    %c0_i32 = arith.constant 0 : i32
    %c0_i32_0 = arith.constant 0 : i32
    %c0_i32_1 = arith.constant 0 : i32
    return %arg0, %c0_i32, %c0_i32_0 : i32, i32, i32
  }
  func.func @transform_2(%arg0: i32) -> (i32, i32) {
    %c0_i32 = arith.constant 0 : i32
    %c0_i32_0 = arith.constant 0 : i32
    %c0_i32_1 = arith.constant 0 : i32
    return %c0_i32, %c0_i32_0 : i32, i32
  }
  func.func @transform_3(%arg0: i32) -> (i32, i32) {
    %c0_i32 = arith.constant 0 : i32
    %c0_i32_0 = arith.constant 0 : i32
    %c0_i32_1 = arith.constant 0 : i32
    return %c0_i32, %c0_i32_0 : i32, i32
  }
  func.func @transform_4(%arg0: i32) -> (i32, i32) {
    %c0_i32 = arith.constant 0 : i32
    %c0_i32_0 = arith.constant 0 : i32
    %c0_i32_1 = arith.constant 0 : i32
    return %c0_i32, %c0_i32_0 : i32, i32
  }
  func.func @transform_5(%arg0: i32) -> (i32, i32) {
    %c0_i32 = arith.constant 0 : i32
    %c0_i32_0 = arith.constant 0 : i32
    %c0_i32_1 = arith.constant 0 : i32
    return %c0_i32, %c0_i32_0 : i32, i32
  }
  func.func @transform_6(%arg0: i32) -> (i32, i32) {
    %c0_i32 = arith.constant 0 : i32
    %c0_i32_0 = arith.constant 0 : i32
    %c0_i32_1 = arith.constant 0 : i32
    return %c0_i32, %c0_i32_0 : i32, i32
  }
  func.func @transform_7(%arg0: i32) -> (i32, i32) {
    %c0_i32 = arith.constant 0 : i32
    %c0_i32_0 = arith.constant 0 : i32
    %c0_i32_1 = arith.constant 0 : i32
    return %c0_i32, %c0_i32_0 : i32, i32
  }
  func.func @transform_8(%arg0: i32) -> (i32, i32) {
    %c0_i32 = arith.constant 0 : i32
    %c0_i32_0 = arith.constant 0 : i32
    %c0_i32_1 = arith.constant 0 : i32
    return %c0_i32, %c0_i32_0 : i32, i32
  }
  func.func @transform_9(%arg0: i32) -> (i32, i32) {
    %c0_i32 = arith.constant 0 : i32
    %c0_i32_0 = arith.constant 0 : i32
    %c0_i32_1 = arith.constant 0 : i32
    return %c0_i32, %c0_i32_0 : i32, i32
  }
  func.func @transform_10(%arg0: i32) -> (i32, i32) {
    %c0_i32 = arith.constant 0 : i32
    %c0_i32_0 = arith.constant 0 : i32
    %c0_i32_1 = arith.constant 0 : i32
    return %c0_i32, %c0_i32_0 : i32, i32
  }
  func.func @transform_11(%arg0: i32) -> (i32, i32) {
    %c0_i32 = arith.constant 0 : i32
    %c0_i32_0 = arith.constant 0 : i32
    %c0_i32_1 = arith.constant 0 : i32
    return %c0_i32, %c0_i32_0 : i32, i32
  }
  func.func @transform_12(%arg0: i32) -> (i32, i32) {
    %c0_i32 = arith.constant 0 : i32
    %c0_i32_0 = arith.constant 0 : i32
    %c0_i32_1 = arith.constant 0 : i32
    return %c0_i32, %c0_i32_0 : i32, i32
  }
  func.func @transform_13(%arg0: i32) -> (i32, i32) {
    %c0_i32 = arith.constant 0 : i32
    %c0_i32_0 = arith.constant 0 : i32
    %c0_i32_1 = arith.constant 0 : i32
    return %c0_i32, %c0_i32_0 : i32, i32
  }
  func.func @transform_14(%arg0: i32) -> (i32, i32, i32) {
    %c0_i32 = arith.constant 0 : i32
    %c0_i32_0 = arith.constant 0 : i32
    %c0_i32_1 = arith.constant 0 : i32
    return %arg0, %c0_i32, %c0_i32_0 : i32, i32, i32
  }
}

module attributes {stable_mosaic.version = 11 : i64} {
  func.func @transformer_block_kernel(%arg0: i32, %arg1: memref<1x8x32xf32, #tpu.memory_space<vmem>>, %arg2: memref<1x1x8xi32, #tpu.memory_space<vmem>>, %arg3: memref<32x96xbf16, #tpu.memory_space<vmem>>, %arg4: memref<1x96xf32, #tpu.memory_space<vmem>>, %arg5: memref<32x32xbf16, #tpu.memory_space<vmem>>, %arg6: memref<1x32xf32, #tpu.memory_space<vmem>>, %arg7: memref<1x32xf32, #tpu.memory_space<vmem>>, %arg8: memref<1x32xf32, #tpu.memory_space<vmem>>, %arg9: memref<32x128xbf16, #tpu.memory_space<vmem>>, %arg10: memref<1x128xf32, #tpu.memory_space<vmem>>, %arg11: memref<128x32xbf16, #tpu.memory_space<vmem>>, %arg12: memref<1x32xf32, #tpu.memory_space<vmem>>, %arg13: memref<1x32xf32, #tpu.memory_space<vmem>>, %arg14: memref<1x32xf32, #tpu.memory_space<vmem>>, %arg15: memref<1x8x32xf32, #tpu.memory_space<vmem>>, %arg16: memref<1x8x96xbf16, #tpu.memory_space<vmem>>, %arg17: memref<1x8x32xbf16, #tpu.memory_space<vmem>>) attributes {dimension_semantics = [#tpu.dimension_semantics<parallel>], iteration_bounds = array<i64: 2>, scalar_prefetch = 0 : i64, scratch_operands = 2 : i64, tpu.core_type = #tpu.core_type<tc>, window_params = [{transform_indices = @transform_0, window_bounds = array<i64: 1, 8, 32>}, {transform_indices = @transform_1, window_bounds = array<i64: 1, 1, 8>}, {pipeline_mode = #tpu.pipeline_mode<synchronous>, transform_indices = @transform_2, window_bounds = array<i64: 32, 96>}, {pipeline_mode = #tpu.pipeline_mode<synchronous>, transform_indices = @transform_3, window_bounds = array<i64: 1, 96>}, {pipeline_mode = #tpu.pipeline_mode<synchronous>, transform_indices = @transform_4, window_bounds = array<i64: 32, 32>}, {pipeline_mode = #tpu.pipeline_mode<synchronous>, transform_indices = @transform_5, window_bounds = array<i64: 1, 32>}, {pipeline_mode = #tpu.pipeline_mode<synchronous>, transform_indices = @transform_6, window_bounds = array<i64: 1, 32>}, {pipeline_mode = #tpu.pipeline_mode<synchronous>, transform_indices = @transform_7, window_bounds = array<i64: 1, 32>}, {pipeline_mode = #tpu.pipeline_mode<synchronous>, transform_indices = @transform_8, window_bounds = array<i64: 32, 128>}, {pipeline_mode = #tpu.pipeline_mode<synchronous>, transform_indices = @transform_9, window_bounds = array<i64: 1, 128>}, {pipeline_mode = #tpu.pipeline_mode<synchronous>, transform_indices = @transform_10, window_bounds = array<i64: 128, 32>}, {pipeline_mode = #tpu.pipeline_mode<synchronous>, transform_indices = @transform_11, window_bounds = array<i64: 1, 32>}, {pipeline_mode = #tpu.pipeline_mode<synchronous>, transform_indices = @transform_12, window_bounds = array<i64: 1, 32>}, {pipeline_mode = #tpu.pipeline_mode<synchronous>, transform_indices = @transform_13, window_bounds = array<i64: 1, 32>}, {transform_indices = @transform_14, window_bounds = array<i64: 1, 8, 32>}]} {
    %c0 = arith.constant 0 : index
    %c0_0 = arith.constant 0 : index
    %c0_1 = arith.constant 0 : index
    %0 = vector.load %arg1[%c0, %c0_0, %c0_1] : memref<1x8x32xf32, #tpu.memory_space<vmem>>, vector<1x8x32xf32>
    %1 = vector.shape_cast %0 : vector<1x8x32xf32> to vector<8x32xf32>
    %c0_2 = arith.constant 0 : index
    %c0_3 = arith.constant 0 : index
    %2 = vector.load %arg7[%c0_2, %c0_3] : memref<1x32xf32, #tpu.memory_space<vmem>>, vector<1x32xf32>
    %c0_4 = arith.constant 0 : index
    %c0_5 = arith.constant 0 : index
    %3 = vector.load %arg8[%c0_4, %c0_5] : memref<1x32xf32, #tpu.memory_space<vmem>>, vector<1x32xf32>
    %cst = arith.constant dense<0.000000e+00> : vector<8xf32>
    %4 = vector.multi_reduction <add>, %1, %cst [1] : vector<8x32xf32> to vector<8xf32>
    %5 = vector.shape_cast %4 : vector<8xf32> to vector<8x1xf32>
    %cst_6 = arith.constant 3.200000e+01 : f32
    %6 = vector.broadcast %cst_6 : f32 to vector<8x1xf32>
    %7 = arith.divf %5, %6 : vector<8x1xf32>
    %8 = vector.broadcast %7 : vector<8x1xf32> to vector<8x32xf32>
    %9 = arith.subf %1, %8 : vector<8x32xf32>
    %10 = arith.mulf %9, %9 : vector<8x32xf32>
    %cst_7 = arith.constant dense<0.000000e+00> : vector<8xf32>
    %11 = vector.multi_reduction <add>, %10, %cst_7 [1] : vector<8x32xf32> to vector<8xf32>
    %12 = vector.shape_cast %11 : vector<8xf32> to vector<8x1xf32>
    %cst_8 = arith.constant 3.100000e+01 : f32
    %13 = vector.broadcast %cst_8 : f32 to vector<8x1xf32>
    %14 = arith.divf %12, %13 : vector<8x1xf32>
    %15 = math.sqrt %14 : vector<8x1xf32>
    %cst_9 = arith.constant 9.99999997E-7 : f32
    %16 = vector.broadcast %cst_9 : f32 to vector<8x1xf32>
    %17 = arith.addf %15, %16 : vector<8x1xf32>
    %18 = tpu.reciprocal %17 {approx = true} : vector<8x1xf32> -> vector<8x1xf32>
    %19 = vector.broadcast %7 : vector<8x1xf32> to vector<8x32xf32>
    %20 = arith.subf %1, %19 : vector<8x32xf32>
    %21 = vector.broadcast %2 : vector<1x32xf32> to vector<8x32xf32>
    %22 = arith.mulf %21, %20 : vector<8x32xf32>
    %23 = vector.broadcast %18 : vector<8x1xf32> to vector<8x32xf32>
    %24 = arith.mulf %22, %23 : vector<8x32xf32>
    %25 = vector.broadcast %3 : vector<1x32xf32> to vector<8x32xf32>
    %26 = arith.addf %24, %25 : vector<8x32xf32>
    %27 = arith.truncf %26 : vector<8x32xf32> to vector<8x32xbf16>
    %c0_10 = arith.constant 0 : index
    %c0_11 = arith.constant 0 : index
    %28 = vector.load %arg3[%c0_10, %c0_11] : memref<32x96xbf16, #tpu.memory_space<vmem>>, vector<32x96xbf16>
    %cst_12 = arith.constant dense<0.000000e+00> : vector<8x96xf32>
    %29 = tpu.matmul %27, %28, %cst_12 {dimension_numbers = #tpu.dot_dimension_numbers<[1], [0], [0], [1], [0, 0, 1, 1], [], []>} : vector<8x32xbf16>, vector<32x96xbf16>, vector<8x96xf32> -> vector<8x96xf32>
    %c0_13 = arith.constant 0 : index
    %c0_14 = arith.constant 0 : index
    %30 = vector.load %arg4[%c0_13, %c0_14] : memref<1x96xf32, #tpu.memory_space<vmem>>, vector<1x96xf32>
    %31 = vector.broadcast %30 : vector<1x96xf32> to vector<8x96xf32>
    %32 = arith.addf %29, %31 : vector<8x96xf32>
    %33 = arith.truncf %32 : vector<8x96xf32> to vector<8x96xbf16>
    %34 = vector.shape_cast %33 : vector<8x96xbf16> to vector<1x8x96xbf16>
    %c0_15 = arith.constant 0 : index
    %c0_16 = arith.constant 0 : index
    %c0_17 = arith.constant 0 : index
    %35 = vector.load %arg16[%c0_15, %c0_16, %c0_17] : memref<1x8x96xbf16, #tpu.memory_space<vmem>>, vector<1x8x96xbf16>
    tpu.vector_store %arg16[%c0_15, %c0_16, %c0_17], %34 {strides = array<i32>} : memref<1x8x96xbf16, #tpu.memory_space<vmem>>, vector<1x8x96xbf16>,
    %c0_i32 = arith.constant 0 : i32
    %36 = arith.index_cast %c0_i32 : i32 to index
    %c0_18 = arith.constant 0 : index
    %c0_19 = arith.constant 0 : index
    %37 = vector.load %arg2[%36, %c0_18, %c0_19] : memref<1x1x8xi32, #tpu.memory_space<vmem>>, vector<1x1x8xi32>
    %38 = vector.shape_cast %37 : vector<1x1x8xi32> to vector<1x8xi32>
    %c0_i32_20 = arith.constant 0 : i32
    %39 = vector.broadcast %c0_i32_20 : i32 to vector<1x8xi32>
    %40 = arith.cmpi eq, %38, %39 : vector<1x8xi32>
    %cst_21 = arith.constant -1.000000e+09 : f32
    %cst_22 = arith.constant 0.000000e+00 : f32
    %41 = vector.broadcast %cst_21 : f32 to vector<1x8xf32>
    %42 = vector.broadcast %cst_22 : f32 to vector<1x8xf32>
    %43 = arith.select %40, %41, %42 : vector<1x8xi1>, vector<1x8xf32>
    %44 = arith.index_cast %c0_i32 : i32 to index
    %c0_23 = arith.constant 0 : index
    %c0_24 = arith.constant 0 : index
    %45 = vector.load %arg16[%44, %c0_23, %c0_24] : memref<1x8x96xbf16, #tpu.memory_space<vmem>>, vector<1x8x8xbf16>
    %46 = vector.shape_cast %45 : vector<1x8x8xbf16> to vector<8x8xbf16>
    %47 = arith.index_cast %c0_i32 : i32 to index
    %c0_25 = arith.constant 0 : index
    %c32 = arith.constant 32 : index
    %48 = vector.load %arg16[%47, %c0_25, %c32] : memref<1x8x96xbf16, #tpu.memory_space<vmem>>, vector<1x8x8xbf16>
    %49 = vector.shape_cast %48 : vector<1x8x8xbf16> to vector<8x8xbf16>
    %50 = arith.index_cast %c0_i32 : i32 to index
    %c0_26 = arith.constant 0 : index
    %c64 = arith.constant 64 : index
    %51 = vector.load %arg16[%50, %c0_26, %c64] : memref<1x8x96xbf16, #tpu.memory_space<vmem>>, vector<1x8x8xbf16>
    %52 = vector.shape_cast %51 : vector<1x8x8xbf16> to vector<8x8xbf16>
    %cst_27 = arith.constant dense<0.000000e+00> : vector<8x8xf32>
    %53 = tpu.matmul %46, %49, %cst_27 {dimension_numbers = #tpu.dot_dimension_numbers<[1], [1], [0], [0], [0, 0, 1, 0], [], []>} : vector<8x8xbf16>, vector<8x8xbf16>, vector<8x8xf32> -> vector<8x8xf32>
    %54 = vector.broadcast %43 : vector<1x8xf32> to vector<8x8xf32>
    %55 = arith.addf %53, %54 : vector<8x8xf32>
    %cst_28 = arith.constant dense<0xFF800000> : vector<8xf32>
    %56 = vector.multi_reduction <maximumf>, %55, %cst_28 [1] : vector<8x8xf32> to vector<8xf32>
    %57 = vector.shape_cast %56 : vector<8xf32> to vector<8x1xf32>
    %58 = vector.broadcast %57 : vector<8x1xf32> to vector<8x8xf32>
    %59 = arith.subf %55, %58 : vector<8x8xf32>
    %60 = math.exp %59 : vector<8x8xf32>
    %cst_29 = arith.constant dense<0.000000e+00> : vector<8xf32>
    %61 = vector.multi_reduction <add>, %60, %cst_29 [1] : vector<8x8xf32> to vector<8xf32>
    %62 = vector.shape_cast %61 : vector<8xf32> to vector<8x1xf32>
    %63 = tpu.reciprocal %62 {approx = true} : vector<8x1xf32> -> vector<8x1xf32>
    %64 = arith.truncf %60 : vector<8x8xf32> to vector<8x8xbf16>
    %cst_30 = arith.constant dense<0.000000e+00> : vector<8x8xf32>
    %65 = tpu.matmul %64, %52, %cst_30 {dimension_numbers = #tpu.dot_dimension_numbers<[1], [0], [0], [1], [0, 0, 1, 1], [], []>} : vector<8x8xbf16>, vector<8x8xbf16>, vector<8x8xf32> -> vector<8x8xf32>
    %66 = vector.broadcast %63 : vector<8x1xf32> to vector<8x8xf32>
    %67 = arith.mulf %65, %66 : vector<8x8xf32>
    %68 = arith.truncf %67 : vector<8x8xf32> to vector<8x8xbf16>
    %69 = arith.index_cast %c0_i32 : i32 to index
    %c0_31 = arith.constant 0 : index
    %c0_32 = arith.constant 0 : index
    %70 = vector.load %arg17[%69, %c0_31, %c0_32] : memref<1x8x32xbf16, #tpu.memory_space<vmem>>, vector<1x8x8xbf16>
    %71 = vector.shape_cast %70 : vector<1x8x8xbf16> to vector<8x8xbf16>
    %72 = vector.shape_cast %68 : vector<8x8xbf16> to vector<1x8x8xbf16>
    tpu.vector_store %arg17[%69, %c0_31, %c0_32], %72 {strides = array<i32>} : memref<1x8x32xbf16, #tpu.memory_space<vmem>>, vector<1x8x8xbf16>,
    %73 = arith.index_cast %c0_i32 : i32 to index
    %c0_33 = arith.constant 0 : index
    %c8 = arith.constant 8 : index
    %74 = vector.load %arg16[%73, %c0_33, %c8] : memref<1x8x96xbf16, #tpu.memory_space<vmem>>, vector<1x8x8xbf16>
    %75 = vector.shape_cast %74 : vector<1x8x8xbf16> to vector<8x8xbf16>
    %76 = arith.index_cast %c0_i32 : i32 to index
    %c0_34 = arith.constant 0 : index
    %c40 = arith.constant 40 : index
    %77 = vector.load %arg16[%76, %c0_34, %c40] : memref<1x8x96xbf16, #tpu.memory_space<vmem>>, vector<1x8x8xbf16>
    %78 = vector.shape_cast %77 : vector<1x8x8xbf16> to vector<8x8xbf16>
    %79 = arith.index_cast %c0_i32 : i32 to index
    %c0_35 = arith.constant 0 : index
    %c72 = arith.constant 72 : index
    %80 = vector.load %arg16[%79, %c0_35, %c72] : memref<1x8x96xbf16, #tpu.memory_space<vmem>>, vector<1x8x8xbf16>
    %81 = vector.shape_cast %80 : vector<1x8x8xbf16> to vector<8x8xbf16>
    %cst_36 = arith.constant dense<0.000000e+00> : vector<8x8xf32>
    %82 = tpu.matmul %75, %78, %cst_36 {dimension_numbers = #tpu.dot_dimension_numbers<[1], [1], [0], [0], [0, 0, 1, 0], [], []>} : vector<8x8xbf16>, vector<8x8xbf16>, vector<8x8xf32> -> vector<8x8xf32>
    %83 = vector.broadcast %43 : vector<1x8xf32> to vector<8x8xf32>
    %84 = arith.addf %82, %83 : vector<8x8xf32>
    %cst_37 = arith.constant dense<0xFF800000> : vector<8xf32>
    %85 = vector.multi_reduction <maximumf>, %84, %cst_37 [1] : vector<8x8xf32> to vector<8xf32>
    %86 = vector.shape_cast %85 : vector<8xf32> to vector<8x1xf32>
    %87 = vector.broadcast %86 : vector<8x1xf32> to vector<8x8xf32>
    %88 = arith.subf %84, %87 : vector<8x8xf32>
    %89 = math.exp %88 : vector<8x8xf32>
    %cst_38 = arith.constant dense<0.000000e+00> : vector<8xf32>
    %90 = vector.multi_reduction <add>, %89, %cst_38 [1] : vector<8x8xf32> to vector<8xf32>
    %91 = vector.shape_cast %90 : vector<8xf32> to vector<8x1xf32>
    %92 = tpu.reciprocal %91 {approx = true} : vector<8x1xf32> -> vector<8x1xf32>
    %93 = arith.truncf %89 : vector<8x8xf32> to vector<8x8xbf16>
    %cst_39 = arith.constant dense<0.000000e+00> : vector<8x8xf32>
    %94 = tpu.matmul %93, %81, %cst_39 {dimension_numbers = #tpu.dot_dimension_numbers<[1], [0], [0], [1], [0, 0, 1, 1], [], []>} : vector<8x8xbf16>, vector<8x8xbf16>, vector<8x8xf32> -> vector<8x8xf32>
    %95 = vector.broadcast %92 : vector<8x1xf32> to vector<8x8xf32>
    %96 = arith.mulf %94, %95 : vector<8x8xf32>
    %97 = arith.truncf %96 : vector<8x8xf32> to vector<8x8xbf16>
    %98 = arith.index_cast %c0_i32 : i32 to index
    %c0_40 = arith.constant 0 : index
    %c8_41 = arith.constant 8 : index
    %99 = vector.load %arg17[%98, %c0_40, %c8_41] : memref<1x8x32xbf16, #tpu.memory_space<vmem>>, vector<1x8x8xbf16>
    %100 = vector.shape_cast %99 : vector<1x8x8xbf16> to vector<8x8xbf16>
    %101 = vector.shape_cast %97 : vector<8x8xbf16> to vector<1x8x8xbf16>
    tpu.vector_store %arg17[%98, %c0_40, %c8_41], %101 {strides = array<i32>} : memref<1x8x32xbf16, #tpu.memory_space<vmem>>, vector<1x8x8xbf16>,
    %102 = arith.index_cast %c0_i32 : i32 to index
    %c0_42 = arith.constant 0 : index
    %c16 = arith.constant 16 : index
    %103 = vector.load %arg16[%102, %c0_42, %c16] : memref<1x8x96xbf16, #tpu.memory_space<vmem>>, vector<1x8x8xbf16>
    %104 = vector.shape_cast %103 : vector<1x8x8xbf16> to vector<8x8xbf16>
    %105 = arith.index_cast %c0_i32 : i32 to index
    %c0_43 = arith.constant 0 : index
    %c48 = arith.constant 48 : index
    %106 = vector.load %arg16[%105, %c0_43, %c48] : memref<1x8x96xbf16, #tpu.memory_space<vmem>>, vector<1x8x8xbf16>
    %107 = vector.shape_cast %106 : vector<1x8x8xbf16> to vector<8x8xbf16>
    %108 = arith.index_cast %c0_i32 : i32 to index
    %c0_44 = arith.constant 0 : index
    %c80 = arith.constant 80 : index
    %109 = vector.load %arg16[%108, %c0_44, %c80] : memref<1x8x96xbf16, #tpu.memory_space<vmem>>, vector<1x8x8xbf16>
    %110 = vector.shape_cast %109 : vector<1x8x8xbf16> to vector<8x8xbf16>
    %cst_45 = arith.constant dense<0.000000e+00> : vector<8x8xf32>
    %111 = tpu.matmul %104, %107, %cst_45 {dimension_numbers = #tpu.dot_dimension_numbers<[1], [1], [0], [0], [0, 0, 1, 0], [], []>} : vector<8x8xbf16>, vector<8x8xbf16>, vector<8x8xf32> -> vector<8x8xf32>
    %112 = vector.broadcast %43 : vector<1x8xf32> to vector<8x8xf32>
    %113 = arith.addf %111, %112 : vector<8x8xf32>
    %cst_46 = arith.constant dense<0xFF800000> : vector<8xf32>
    %114 = vector.multi_reduction <maximumf>, %113, %cst_46 [1] : vector<8x8xf32> to vector<8xf32>
    %115 = vector.shape_cast %114 : vector<8xf32> to vector<8x1xf32>
    %116 = vector.broadcast %115 : vector<8x1xf32> to vector<8x8xf32>
    %117 = arith.subf %113, %116 : vector<8x8xf32>
    %118 = math.exp %117 : vector<8x8xf32>
    %cst_47 = arith.constant dense<0.000000e+00> : vector<8xf32>
    %119 = vector.multi_reduction <add>, %118, %cst_47 [1] : vector<8x8xf32> to vector<8xf32>
    %120 = vector.shape_cast %119 : vector<8xf32> to vector<8x1xf32>
    %121 = tpu.reciprocal %120 {approx = true} : vector<8x1xf32> -> vector<8x1xf32>
    %122 = arith.truncf %118 : vector<8x8xf32> to vector<8x8xbf16>
    %cst_48 = arith.constant dense<0.000000e+00> : vector<8x8xf32>
    %123 = tpu.matmul %122, %110, %cst_48 {dimension_numbers = #tpu.dot_dimension_numbers<[1], [0], [0], [1], [0, 0, 1, 1], [], []>} : vector<8x8xbf16>, vector<8x8xbf16>, vector<8x8xf32> -> vector<8x8xf32>
    %124 = vector.broadcast %121 : vector<8x1xf32> to vector<8x8xf32>
    %125 = arith.mulf %123, %124 : vector<8x8xf32>
    %126 = arith.truncf %125 : vector<8x8xf32> to vector<8x8xbf16>
    %127 = arith.index_cast %c0_i32 : i32 to index
    %c0_49 = arith.constant 0 : index
    %c16_50 = arith.constant 16 : index
    %128 = vector.load %arg17[%127, %c0_49, %c16_50] : memref<1x8x32xbf16, #tpu.memory_space<vmem>>, vector<1x8x8xbf16>
    %129 = vector.shape_cast %128 : vector<1x8x8xbf16> to vector<8x8xbf16>
    %130 = vector.shape_cast %126 : vector<8x8xbf16> to vector<1x8x8xbf16>
    tpu.vector_store %arg17[%127, %c0_49, %c16_50], %130 {strides = array<i32>} : memref<1x8x32xbf16, #tpu.memory_space<vmem>>, vector<1x8x8xbf16>,
    %131 = arith.index_cast %c0_i32 : i32 to index
    %c0_51 = arith.constant 0 : index
    %c24 = arith.constant 24 : index
    %132 = vector.load %arg16[%131, %c0_51, %c24] : memref<1x8x96xbf16, #tpu.memory_space<vmem>>, vector<1x8x8xbf16>
    %133 = vector.shape_cast %132 : vector<1x8x8xbf16> to vector<8x8xbf16>
    %134 = arith.index_cast %c0_i32 : i32 to index
    %c0_52 = arith.constant 0 : index
    %c56 = arith.constant 56 : index
    %135 = vector.load %arg16[%134, %c0_52, %c56] : memref<1x8x96xbf16, #tpu.memory_space<vmem>>, vector<1x8x8xbf16>
    %136 = vector.shape_cast %135 : vector<1x8x8xbf16> to vector<8x8xbf16>
    %137 = arith.index_cast %c0_i32 : i32 to index
    %c0_53 = arith.constant 0 : index
    %c88 = arith.constant 88 : index
    %138 = vector.load %arg16[%137, %c0_53, %c88] : memref<1x8x96xbf16, #tpu.memory_space<vmem>>, vector<1x8x8xbf16>
    %139 = vector.shape_cast %138 : vector<1x8x8xbf16> to vector<8x8xbf16>
    %cst_54 = arith.constant dense<0.000000e+00> : vector<8x8xf32>
    %140 = tpu.matmul %133, %136, %cst_54 {dimension_numbers = #tpu.dot_dimension_numbers<[1], [1], [0], [0], [0, 0, 1, 0], [], []>} : vector<8x8xbf16>, vector<8x8xbf16>, vector<8x8xf32> -> vector<8x8xf32>
    %141 = vector.broadcast %43 : vector<1x8xf32> to vector<8x8xf32>
    %142 = arith.addf %140, %141 : vector<8x8xf32>
    %cst_55 = arith.constant dense<0xFF800000> : vector<8xf32>
    %143 = vector.multi_reduction <maximumf>, %142, %cst_55 [1] : vector<8x8xf32> to vector<8xf32>
    %144 = vector.shape_cast %143 : vector<8xf32> to vector<8x1xf32>
    %145 = vector.broadcast %144 : vector<8x1xf32> to vector<8x8xf32>
    %146 = arith.subf %142, %145 : vector<8x8xf32>
    %147 = math.exp %146 : vector<8x8xf32>
    %cst_56 = arith.constant dense<0.000000e+00> : vector<8xf32>
    %148 = vector.multi_reduction <add>, %147, %cst_56 [1] : vector<8x8xf32> to vector<8xf32>
    %149 = vector.shape_cast %148 : vector<8xf32> to vector<8x1xf32>
    %150 = tpu.reciprocal %149 {approx = true} : vector<8x1xf32> -> vector<8x1xf32>
    %151 = arith.truncf %147 : vector<8x8xf32> to vector<8x8xbf16>
    %cst_57 = arith.constant dense<0.000000e+00> : vector<8x8xf32>
    %152 = tpu.matmul %151, %139, %cst_57 {dimension_numbers = #tpu.dot_dimension_numbers<[1], [0], [0], [1], [0, 0, 1, 1], [], []>} : vector<8x8xbf16>, vector<8x8xbf16>, vector<8x8xf32> -> vector<8x8xf32>
    %153 = vector.broadcast %150 : vector<8x1xf32> to vector<8x8xf32>
    %154 = arith.mulf %152, %153 : vector<8x8xf32>
    %155 = arith.truncf %154 : vector<8x8xf32> to vector<8x8xbf16>
    %156 = arith.index_cast %c0_i32 : i32 to index
    %c0_58 = arith.constant 0 : index
    %c24_59 = arith.constant 24 : index
    %157 = vector.load %arg17[%156, %c0_58, %c24_59] : memref<1x8x32xbf16, #tpu.memory_space<vmem>>, vector<1x8x8xbf16>
    %158 = vector.shape_cast %157 : vector<1x8x8xbf16> to vector<8x8xbf16>
    %159 = vector.shape_cast %155 : vector<8x8xbf16> to vector<1x8x8xbf16>
    tpu.vector_store %arg17[%156, %c0_58, %c24_59], %159 {strides = array<i32>} : memref<1x8x32xbf16, #tpu.memory_space<vmem>>, vector<1x8x8xbf16>,
    %c1_i32 = arith.constant 1 : i32
    %c0_60 = arith.constant 0 : index
    %c0_61 = arith.constant 0 : index
    %c0_62 = arith.constant 0 : index
    %160 = vector.load %arg17[%c0_60, %c0_61, %c0_62] : memref<1x8x32xbf16, #tpu.memory_space<vmem>>, vector<1x8x32xbf16>
    %161 = vector.shape_cast %160 : vector<1x8x32xbf16> to vector<8x32xbf16>
    %c0_63 = arith.constant 0 : index
    %c0_64 = arith.constant 0 : index
    %162 = vector.load %arg5[%c0_63, %c0_64] : memref<32x32xbf16, #tpu.memory_space<vmem>>, vector<32x32xbf16>
    %cst_65 = arith.constant dense<0.000000e+00> : vector<8x32xf32>
    %163 = tpu.matmul %161, %162, %cst_65 {dimension_numbers = #tpu.dot_dimension_numbers<[1], [0], [0], [1], [0, 0, 1, 1], [], []>} : vector<8x32xbf16>, vector<32x32xbf16>, vector<8x32xf32> -> vector<8x32xf32>
    %c0_66 = arith.constant 0 : index
    %c0_67 = arith.constant 0 : index
    %164 = vector.load %arg6[%c0_66, %c0_67] : memref<1x32xf32, #tpu.memory_space<vmem>>, vector<1x32xf32>
    %165 = vector.broadcast %164 : vector<1x32xf32> to vector<8x32xf32>
    %166 = arith.addf %163, %165 : vector<8x32xf32>
    %167 = arith.addf %1, %166 : vector<8x32xf32>
    %c0_68 = arith.constant 0 : index
    %c0_69 = arith.constant 0 : index
    %168 = vector.load %arg13[%c0_68, %c0_69] : memref<1x32xf32, #tpu.memory_space<vmem>>, vector<1x32xf32>
    %c0_70 = arith.constant 0 : index
    %c0_71 = arith.constant 0 : index
    %169 = vector.load %arg14[%c0_70, %c0_71] : memref<1x32xf32, #tpu.memory_space<vmem>>, vector<1x32xf32>
    %cst_72 = arith.constant dense<0.000000e+00> : vector<8xf32>
    %170 = vector.multi_reduction <add>, %167, %cst_72 [1] : vector<8x32xf32> to vector<8xf32>
    %171 = vector.shape_cast %170 : vector<8xf32> to vector<8x1xf32>
    %cst_73 = arith.constant 3.200000e+01 : f32
    %172 = vector.broadcast %cst_73 : f32 to vector<8x1xf32>
    %173 = arith.divf %171, %172 : vector<8x1xf32>
    %174 = vector.broadcast %173 : vector<8x1xf32> to vector<8x32xf32>
    %175 = arith.subf %167, %174 : vector<8x32xf32>
    %176 = arith.mulf %175, %175 : vector<8x32xf32>
    %cst_74 = arith.constant dense<0.000000e+00> : vector<8xf32>
    %177 = vector.multi_reduction <add>, %176, %cst_74 [1] : vector<8x32xf32> to vector<8xf32>
    %178 = vector.shape_cast %177 : vector<8xf32> to vector<8x1xf32>
    %cst_75 = arith.constant 3.100000e+01 : f32
    %179 = vector.broadcast %cst_75 : f32 to vector<8x1xf32>
    %180 = arith.divf %178, %179 : vector<8x1xf32>
    %181 = math.sqrt %180 : vector<8x1xf32>
    %cst_76 = arith.constant 9.99999997E-7 : f32
    %182 = vector.broadcast %cst_76 : f32 to vector<8x1xf32>
    %183 = arith.addf %181, %182 : vector<8x1xf32>
    %184 = tpu.reciprocal %183 {approx = true} : vector<8x1xf32> -> vector<8x1xf32>
    %185 = vector.broadcast %173 : vector<8x1xf32> to vector<8x32xf32>
    %186 = arith.subf %167, %185 : vector<8x32xf32>
    %187 = vector.broadcast %168 : vector<1x32xf32> to vector<8x32xf32>
    %188 = arith.mulf %187, %186 : vector<8x32xf32>
    %189 = vector.broadcast %184 : vector<8x1xf32> to vector<8x32xf32>
    %190 = arith.mulf %188, %189 : vector<8x32xf32>
    %191 = vector.broadcast %169 : vector<1x32xf32> to vector<8x32xf32>
    %192 = arith.addf %190, %191 : vector<8x32xf32>
    %193 = arith.truncf %192 : vector<8x32xf32> to vector<8x32xbf16>
    %c0_77 = arith.constant 0 : index
    %c0_78 = arith.constant 0 : index
    %194 = vector.load %arg9[%c0_77, %c0_78] : memref<32x128xbf16, #tpu.memory_space<vmem>>, vector<32x128xbf16>
    %cst_79 = arith.constant dense<0.000000e+00> : vector<8x128xf32>
    %195 = tpu.matmul %193, %194, %cst_79 {dimension_numbers = #tpu.dot_dimension_numbers<[1], [0], [0], [1], [0, 0, 1, 1], [], []>} : vector<8x32xbf16>, vector<32x128xbf16>, vector<8x128xf32> -> vector<8x128xf32>
    %c0_80 = arith.constant 0 : index
    %c0_81 = arith.constant 0 : index
    %196 = vector.load %arg10[%c0_80, %c0_81] : memref<1x128xf32, #tpu.memory_space<vmem>>, vector<1x128xf32>
    %197 = vector.broadcast %196 : vector<1x128xf32> to vector<8x128xf32>
    %198 = arith.addf %195, %197 : vector<8x128xf32>
    %cst_82 = arith.constant 5.000000e-01 : f32
    %199 = vector.broadcast %cst_82 : f32 to vector<8x128xf32>
    %200 = arith.mulf %199, %198 : vector<8x128xf32>
    %cst_83 = arith.constant 4.471500e-02 : f32
    %201 = vector.broadcast %cst_83 : f32 to vector<8x128xf32>
    %202 = arith.mulf %201, %198 : vector<8x128xf32>
    %203 = arith.mulf %202, %198 : vector<8x128xf32>
    %204 = arith.mulf %203, %198 : vector<8x128xf32>
    %205 = arith.addf %198, %204 : vector<8x128xf32>
    %cst_84 = arith.constant 0.797884583 : f32
    %206 = vector.broadcast %cst_84 : f32 to vector<8x128xf32>
    %207 = arith.mulf %206, %205 : vector<8x128xf32>
    %208 = math.tanh %207 : vector<8x128xf32>
    %cst_85 = arith.constant 1.000000e+00 : f32
    %209 = vector.broadcast %cst_85 : f32 to vector<8x128xf32>
    %210 = arith.addf %209, %208 : vector<8x128xf32>
    %211 = arith.mulf %200, %210 : vector<8x128xf32>
    %212 = arith.truncf %211 : vector<8x128xf32> to vector<8x128xbf16>
    %c0_86 = arith.constant 0 : index
    %c0_87 = arith.constant 0 : index
    %213 = vector.load %arg11[%c0_86, %c0_87] : memref<128x32xbf16, #tpu.memory_space<vmem>>, vector<128x32xbf16>
    %cst_88 = arith.constant dense<0.000000e+00> : vector<8x32xf32>
    %214 = tpu.matmul %212, %213, %cst_88 {dimension_numbers = #tpu.dot_dimension_numbers<[1], [0], [0], [1], [0, 0, 1, 1], [], []>} : vector<8x128xbf16>, vector<128x32xbf16>, vector<8x32xf32> -> vector<8x32xf32>
    %c0_89 = arith.constant 0 : index
    %c0_90 = arith.constant 0 : index
    %215 = vector.load %arg12[%c0_89, %c0_90] : memref<1x32xf32, #tpu.memory_space<vmem>>, vector<1x32xf32>
    %216 = vector.broadcast %215 : vector<1x32xf32> to vector<8x32xf32>
    %217 = arith.addf %214, %216 : vector<8x32xf32>
    %218 = arith.addf %167, %217 : vector<8x32xf32>
    %219 = vector.shape_cast %218 : vector<8x32xf32> to vector<1x8x32xf32>
    %c0_91 = arith.constant 0 : index
    %c0_92 = arith.constant 0 : index
    %c0_93 = arith.constant 0 : index
    %220 = vector.load %arg15[%c0_91, %c0_92, %c0_93] : memref<1x8x32xf32, #tpu.memory_space<vmem>>, vector<1x8x32xf32>
    tpu.vector_store %arg15[%c0_91, %c0_92, %c0_93], %219 {strides = array<i32>} : memref<1x8x32xf32, #tpu.memory_space<vmem>>, vector<1x8x32xf32>,
    return
  }
  func.func @transform_0(%arg0: i32) -> (i32, i32, i32) {
    %c0_i32 = arith.constant 0 : i32
    %c0_i32_0 = arith.constant 0 : i32
    %c0_i32_1 = arith.constant 0 : i32
    return %arg0, %c0_i32, %c0_i32_0 : i32, i32, i32
  }
  func.func @transform_1(%arg0: i32) -> (i32, i32, i32) {
    %c0_i32 = arith.constant 0 : i32
    %c0_i32_0 = arith.constant 0 : i32
    %c0_i32_1 = arith.constant 0 : i32
    return %arg0, %c0_i32, %c0_i32_0 : i32, i32, i32
  }
  func.func @transform_2(%arg0: i32) -> (i32, i32) {
    %c0_i32 = arith.constant 0 : i32
    %c0_i32_0 = arith.constant 0 : i32
    %c0_i32_1 = arith.constant 0 : i32
    return %c0_i32, %c0_i32_0 : i32, i32
  }
  func.func @transform_3(%arg0: i32) -> (i32, i32) {
    %c0_i32 = arith.constant 0 : i32
    %c0_i32_0 = arith.constant 0 : i32
    %c0_i32_1 = arith.constant 0 : i32
    return %c0_i32, %c0_i32_0 : i32, i32
  }
  func.func @transform_4(%arg0: i32) -> (i32, i32) {
    %c0_i32 = arith.constant 0 : i32
    %c0_i32_0 = arith.constant 0 : i32
    %c0_i32_1 = arith.constant 0 : i32
    return %c0_i32, %c0_i32_0 : i32, i32
  }
  func.func @transform_5(%arg0: i32) -> (i32, i32) {
    %c0_i32 = arith.constant 0 : i32
    %c0_i32_0 = arith.constant 0 : i32
    %c0_i32_1 = arith.constant 0 : i32
    return %c0_i32, %c0_i32_0 : i32, i32
  }
  func.func @transform_6(%arg0: i32) -> (i32, i32) {
    %c0_i32 = arith.constant 0 : i32
    %c0_i32_0 = arith.constant 0 : i32
    %c0_i32_1 = arith.constant 0 : i32
    return %c0_i32, %c0_i32_0 : i32, i32
  }
  func.func @transform_7(%arg0: i32) -> (i32, i32) {
    %c0_i32 = arith.constant 0 : i32
    %c0_i32_0 = arith.constant 0 : i32
    %c0_i32_1 = arith.constant 0 : i32
    return %c0_i32, %c0_i32_0 : i32, i32
  }
  func.func @transform_8(%arg0: i32) -> (i32, i32) {
    %c0_i32 = arith.constant 0 : i32
    %c0_i32_0 = arith.constant 0 : i32
    %c0_i32_1 = arith.constant 0 : i32
    return %c0_i32, %c0_i32_0 : i32, i32
  }
  func.func @transform_9(%arg0: i32) -> (i32, i32) {
    %c0_i32 = arith.constant 0 : i32
    %c0_i32_0 = arith.constant 0 : i32
    %c0_i32_1 = arith.constant 0 : i32
    return %c0_i32, %c0_i32_0 : i32, i32
  }
  func.func @transform_10(%arg0: i32) -> (i32, i32) {
    %c0_i32 = arith.constant 0 : i32
    %c0_i32_0 = arith.constant 0 : i32
    %c0_i32_1 = arith.constant 0 : i32
    return %c0_i32, %c0_i32_0 : i32, i32
  }
  func.func @transform_11(%arg0: i32) -> (i32, i32) {
    %c0_i32 = arith.constant 0 : i32
    %c0_i32_0 = arith.constant 0 : i32
    %c0_i32_1 = arith.constant 0 : i32
    return %c0_i32, %c0_i32_0 : i32, i32
  }
  func.func @transform_12(%arg0: i32) -> (i32, i32) {
    %c0_i32 = arith.constant 0 : i32
    %c0_i32_0 = arith.constant 0 : i32
    %c0_i32_1 = arith.constant 0 : i32
    return %c0_i32, %c0_i32_0 : i32, i32
  }
  func.func @transform_13(%arg0: i32) -> (i32, i32) {
    %c0_i32 = arith.constant 0 : i32
    %c0_i32_0 = arith.constant 0 : i32
    %c0_i32_1 = arith.constant 0 : i32
    return %c0_i32, %c0_i32_0 : i32, i32
  }
  func.func @transform_14(%arg0: i32) -> (i32, i32, i32) {
    %c0_i32 = arith.constant 0 : i32
    %c0_i32_0 = arith.constant 0 : i32
    %c0_i32_1 = arith.constant 0 : i32
    return %arg0, %c0_i32, %c0_i32_0 : i32, i32, i32
  }
}

</mosaic_0001>

<llo_original>
// kernel: tpu_custom_call.1
$region0: #{tpu_custom_call.1}
  #allocation0 [shape = 'u32[]', space=smem, size = 0x4, offset = 0x4, fixed_abs, tag = 'smem constant byte address 0x4 - core index']
  #allocation1 [shape = 'u32[72,128]{1,0:T(1,128)}', space=vmem, size = 0x9000, scoped, tag = 'internal scratch']
  #allocation2 [shape = 'bf16[1,8,96]{2,1,0:T(8,128)(2,1)}', space=vmem, size = 0x800, scoped, tag = 'scratch operand']
  #allocation3 [shape = 'bf16[1,8,32]{2,1,0:T(8,128)(2,1)}', space=vmem, size = 0x800, scoped, tag = 'scratch operand']
  %s0 = inlined_call_operand.vmem [shape: f32[2,8,32], index: 0, kind: input, shape index: {}]
  %s1 = inlined_call_operand.vmem [shape: s32[2,1,8], index: 1, kind: input, shape index: {}]
  %s2 = inlined_call_operand.vmem [shape: bf16[32,96], index: 2, kind: input, shape index: {}]
  %s3 = inlined_call_operand.vmem [shape: f32[1,96], index: 3, kind: input, shape index: {}]
  %s4 = inlined_call_operand.vmem [shape: bf16[32,32], index: 4, kind: input, shape index: {}]
  %s5 = inlined_call_operand.vmem [shape: f32[1,32], index: 5, kind: input, shape index: {}]
  %s6 = inlined_call_operand.vmem [shape: f32[1,32], index: 6, kind: input, shape index: {}]
  %s7 = inlined_call_operand.vmem [shape: f32[1,32], index: 7, kind: input, shape index: {}]
  %s8 = inlined_call_operand.vmem [shape: bf16[32,128], index: 8, kind: input, shape index: {}]
  %s9 = inlined_call_operand.vmem [shape: f32[1,128], index: 9, kind: input, shape index: {}]
  %s10 = inlined_call_operand.vmem [shape: bf16[128,32], index: 10, kind: input, shape index: {}]
  %s11 = inlined_call_operand.vmem [shape: f32[1,32], index: 11, kind: input, shape index: {}]
  %s12 = inlined_call_operand.vmem [shape: f32[1,32], index: 12, kind: input, shape index: {}]
  %s13 = inlined_call_operand.vmem [shape: f32[1,32], index: 13, kind: input, shape index: {}]
  %s14 = inlined_call_operand.hbm [shape: f32[2,8,32], index: 14, kind: output, shape index: {}]
  %s15 = sld [smem:[#allocation0]]
  $region89: #{tpu_custom_call.1} parent=0
    _
  %s17 = ssub.s32 1, %s15
  %s18 = scalar_select 0, %s17, %s15
  $region1: #{tpu_custom_call.1} parent=0
    #allocation4 [shape = 'u8[8192]{0}', space=vmem, size = 0x2000, scoped, tag = 'output window, operand 0']
    #allocation5 [shape = 's32[2]{0}', space=sflag, size = 0x8, scoped, tag = 'scoped memory for tpu_custom_call.1']
    %19 = vsyncpa [#allocation5], 0
    %s20 = scalar_lea.sflag [#allocation5], 1
    %21 = vsyncpa %s20, 0
    loop: start=0, step=1, limit=4
    $region2: #{tpu_custom_call.1} parent=1 // loop_pre_header
      _
    $region3: #{tpu_custom_call.1} parent=1 // loop_header
      %s23 = sphi 0, %s27
      %p24 = scmp.ge.s32.totalorder %s23, 4
      %s33 = sphi 0, %s35
      %s36 = sphi 0, %s33
      %s37 = sphi 0, %s36
      %s53 = sphi 0, %s37
      %s59 = sphi 0, %s61
      %s62 = sphi 0, %s59
      %s63 = sphi 0, %s62
      %s79 = sphi 0, %s63
      %s83 = sphi 0, %s83
      %s85 = sphi 0, %s83
      %s86 = sphi 0, %s85
      %s100 = sphi 0, %s86
      %s104 = sphi 0, %s104
      %s106 = sphi 0, %s104
      %s107 = sphi 0, %s106
      %s121 = sphi 0, %s107
      %s125 = sphi 0, %s125
      %s127 = sphi 0, %s125
      %s128 = sphi 0, %s127
      %s142 = sphi 0, %s128
      %s146 = sphi 0, %s146
      %s148 = sphi 0, %s146
      %s149 = sphi 0, %s148
      %s163 = sphi 0, %s149
      %s167 = sphi 0, %s167
      %s169 = sphi 0, %s167
      %s170 = sphi 0, %s169
      %s184 = sphi 0, %s170
      %s188 = sphi 0, %s188
      %s190 = sphi 0, %s188
      %s191 = sphi 0, %s190
      %s205 = sphi 0, %s191
      %s209 = sphi 0, %s209
      %s211 = sphi 0, %s209
      %s212 = sphi 0, %s211
      %s226 = sphi 0, %s212
      %s230 = sphi 0, %s230
      %s232 = sphi 0, %s230
      %s233 = sphi 0, %s232
      %s247 = sphi 0, %s233
      %s251 = sphi 0, %s251
      %s253 = sphi 0, %s251
      %s254 = sphi 0, %s253
      %s268 = sphi 0, %s254
      %s272 = sphi 0, %s272
      %s274 = sphi 0, %s272
      %s275 = sphi 0, %s274
      %s289 = sphi 0, %s275
      %s293 = sphi 0, %s293
      %s295 = sphi 0, %s293
      %s296 = sphi 0, %s295
      %s310 = sphi 0, %s296
      %s314 = sphi 0, %s314
      %s316 = sphi 0, %s314
      %s317 = sphi 0, %s316
      %s331 = sphi 0, %s317
      %s337 = sphi 0, %s339
      %s340 = sphi 0, %s337
      %s341 = sphi 0, %s340
      %s357 = sphi 0, %s341
    $region4: #{tpu_custom_call.1} parent=1 // loop_header_branch
      %26 = sbr.rel (%p24) target = $region8
    $region5: #{tpu_custom_call.1} parent=1 // loop_body
      %s28 = ssub.s32 %s23, 1
      %s29 = ssub.s32 %s23, 2
      %s30 = sadd.s32 %s23, 1
      %s31 = ssub.s32 %s23, %s30
      %p32 = scmp.eq.s32.totalorder %s31, 0
      %s34 = sadd.s32 %s33, 1
      %s35 = scalar_select %p32, %s33, %s34
      %p38 = pneg %p32
      %p39 = scmp.eq.s32.totalorder %s23, 1
      %p40 = por %p38, %p39
      %p41 = scmp.ne.s32.totalorder %s33, %s36
      %p42 = scmp.eq.s32.totalorder %s23, 0
      %p43 = por %p41, %p42
      %p44 = scmp.ne.s32.totalorder %s33, %s36
      %p45 = scmp.eq.s32.totalorder %s28, 1
      %p46 = por %p44, %p45
      %p47 = scmp.ne.s32.totalorder %s36, %s37
      %p48 = scmp.eq.s32.totalorder %s28, 0
      %p49 = por %p47, %p48
      %p50 = scmp.ne.s32.totalorder %s36, %s37
      %p51 = scmp.eq.s32.totalorder %s29, 1
      %p52 = por %p50, %p51
      %p54 = scmp.ne.s32.totalorder %s37, %s53
      %p55 = scmp.eq.s32.totalorder %s29, 0
      %p56 = por %p54, %p55
      %s57 = ssub.s32 %s23, %s30
      %p58 = scmp.eq.s32.totalorder %s57, 0
      %s60 = sadd.s32 %s59, 1
      %s61 = scalar_select %p58, %s59, %s60
      %p64 = pneg %p58
      %p65 = scmp.eq.s32.totalorder %s23, 1
      %p66 = por %p64, %p65
      %p67 = scmp.ne.s32.totalorder %s59, %s62
      %p68 = scmp.eq.s32.totalorder %s23, 0
      %p69 = por %p67, %p68
      %p70 = scmp.ne.s32.totalorder %s59, %s62
      %p71 = scmp.eq.s32.totalorder %s28, 1
      %p72 = por %p70, %p71
      %p73 = scmp.ne.s32.totalorder %s62, %s63
      %p74 = scmp.eq.s32.totalorder %s28, 0
      %p75 = por %p73, %p74
      %p76 = scmp.ne.s32.totalorder %s62, %s63
      %p77 = scmp.eq.s32.totalorder %s29, 1
      %p78 = por %p76, %p77
      %p80 = scmp.ne.s32.totalorder %s63, %s79
      %p81 = scmp.eq.s32.totalorder %s29, 0
      %p82 = por %p80, %p81
      %s84 = sadd.s32 %s83, 1
      %p87 = scmp.eq.s32.totalorder %s23, 1
      %p88 = scmp.ne.s32.totalorder %s83, %s85
      %p89 = scmp.eq.s32.totalorder %s23, 0
      %p90 = por %p88, %p89
      %p91 = scmp.ne.s32.totalorder %s83, %s85
      %p92 = scmp.eq.s32.totalorder %s28, 1
      %p93 = por %p91, %p92
      %p94 = scmp.ne.s32.totalorder %s85, %s86
      %p95 = scmp.eq.s32.totalorder %s28, 0
      %p96 = por %p94, %p95
      %p97 = scmp.ne.s32.totalorder %s85, %s86
      %p98 = scmp.eq.s32.totalorder %s29, 1
      %p99 = por %p97, %p98
      %p101 = scmp.ne.s32.totalorder %s86, %s100
      %p102 = scmp.eq.s32.totalorder %s29, 0
      %p103 = por %p101, %p102
      %s105 = sadd.s32 %s104, 1
      %p108 = scmp.eq.s32.totalorder %s23, 1
      %p109 = scmp.ne.s32.totalorder %s104, %s106
      %p110 = scmp.eq.s32.totalorder %s23, 0
      %p111 = por %p109, %p110
      %p112 = scmp.ne.s32.totalorder %s104, %s106
      %p113 = scmp.eq.s32.totalorder %s28, 1
      %p114 = por %p112, %p113
      %p115 = scmp.ne.s32.totalorder %s106, %s107
      %p116 = scmp.eq.s32.totalorder %s28, 0
      %p117 = por %p115, %p116
      %p118 = scmp.ne.s32.totalorder %s106, %s107
      %p119 = scmp.eq.s32.totalorder %s29, 1
      %p120 = por %p118, %p119
      %p122 = scmp.ne.s32.totalorder %s107, %s121
      %p123 = scmp.eq.s32.totalorder %s29, 0
      %p124 = por %p122, %p123
      %s126 = sadd.s32 %s125, 1
      %p129 = scmp.eq.s32.totalorder %s23, 1
      %p130 = scmp.ne.s32.totalorder %s125, %s127
      %p131 = scmp.eq.s32.totalorder %s23, 0
      %p132 = por %p130, %p131
      %p133 = scmp.ne.s32.totalorder %s125, %s127
      %p134 = scmp.eq.s32.totalorder %s28, 1
      %p135 = por %p133, %p134
      %p136 = scmp.ne.s32.totalorder %s127, %s128
      %p137 = scmp.eq.s32.totalorder %s28, 0
      %p138 = por %p136, %p137
      %p139 = scmp.ne.s32.totalorder %s127, %s128
      %p140 = scmp.eq.s32.totalorder %s29, 1
      %p141 = por %p139, %p140
      %p143 = scmp.ne.s32.totalorder %s128, %s142
      %p144 = scmp.eq.s32.totalorder %s29, 0
      %p145 = por %p143, %p144
      %s147 = sadd.s32 %s146, 1
      %p150 = scmp.eq.s32.totalorder %s23, 1
      %p151 = scmp.ne.s32.totalorder %s146, %s148
      %p152 = scmp.eq.s32.totalorder %s23, 0
      %p153 = por %p151, %p152
      %p154 = scmp.ne.s32.totalorder %s146, %s148
      %p155 = scmp.eq.s32.totalorder %s28, 1
      %p156 = por %p154, %p155
      %p157 = scmp.ne.s32.totalorder %s148, %s149
      %p158 = scmp.eq.s32.totalorder %s28, 0
      %p159 = por %p157, %p158
      %p160 = scmp.ne.s32.totalorder %s148, %s149
      %p161 = scmp.eq.s32.totalorder %s29, 1
      %p162 = por %p160, %p161
      %p164 = scmp.ne.s32.totalorder %s149, %s163
      %p165 = scmp.eq.s32.totalorder %s29, 0
      %p166 = por %p164, %p165
      %s168 = sadd.s32 %s167, 1
      %p171 = scmp.eq.s32.totalorder %s23, 1
      %p172 = scmp.ne.s32.totalorder %s167, %s169
      %p173 = scmp.eq.s32.totalorder %s23, 0
      %p174 = por %p172, %p173
      %p175 = scmp.ne.s32.totalorder %s167, %s169
      %p176 = scmp.eq.s32.totalorder %s28, 1
      %p177 = por %p175, %p176
      %p178 = scmp.ne.s32.totalorder %s169, %s170
      %p179 = scmp.eq.s32.totalorder %s28, 0
      %p180 = por %p178, %p179
      %p181 = scmp.ne.s32.totalorder %s169, %s170
      %p182 = scmp.eq.s32.totalorder %s29, 1
      %p183 = por %p181, %p182
      %p185 = scmp.ne.s32.totalorder %s170, %s184
      %p186 = scmp.eq.s32.totalorder %s29, 0
      %p187 = por %p185, %p186
      %s189 = sadd.s32 %s188, 1
      %p192 = scmp.eq.s32.totalorder %s23, 1
      %p193 = scmp.ne.s32.totalorder %s188, %s190
      %p194 = scmp.eq.s32.totalorder %s23, 0
      %p195 = por %p193, %p194
      %p196 = scmp.ne.s32.totalorder %s188, %s190
      %p197 = scmp.eq.s32.totalorder %s28, 1
      %p198 = por %p196, %p197
      %p199 = scmp.ne.s32.totalorder %s190, %s191
      %p200 = scmp.eq.s32.totalorder %s28, 0
      %p201 = por %p199, %p200
      %p202 = scmp.ne.s32.totalorder %s190, %s191
      %p203 = scmp.eq.s32.totalorder %s29, 1
      %p204 = por %p202, %p203
      %p206 = scmp.ne.s32.totalorder %s191, %s205
      %p207 = scmp.eq.s32.totalorder %s29, 0
      %p208 = por %p206, %p207
      %s210 = sadd.s32 %s209, 1
      %p213 = scmp.eq.s32.totalorder %s23, 1
      %p214 = scmp.ne.s32.totalorder %s209, %s211
      %p215 = scmp.eq.s32.totalorder %s23, 0
      %p216 = por %p214, %p215
      %p217 = scmp.ne.s32.totalorder %s209, %s211
      %p218 = scmp.eq.s32.totalorder %s28, 1
      %p219 = por %p217, %p218
      %p220 = scmp.ne.s32.totalorder %s211, %s212
      %p221 = scmp.eq.s32.totalorder %s28, 0
      %p222 = por %p220, %p221
      %p223 = scmp.ne.s32.totalorder %s211, %s212
      %p224 = scmp.eq.s32.totalorder %s29, 1
      %p225 = por %p223, %p224
      %p227 = scmp.ne.s32.totalorder %s212, %s226
      %p228 = scmp.eq.s32.totalorder %s29, 0
      %p229 = por %p227, %p228
      %s231 = sadd.s32 %s230, 1
      %p234 = scmp.eq.s32.totalorder %s23, 1
      %p235 = scmp.ne.s32.totalorder %s230, %s232
      %p236 = scmp.eq.s32.totalorder %s23, 0
      %p237 = por %p235, %p236
      %p238 = scmp.ne.s32.totalorder %s230, %s232
      %p239 = scmp.eq.s32.totalorder %s28, 1
      %p240 = por %p238, %p239
      %p241 = scmp.ne.s32.totalorder %s232, %s233
      %p242 = scmp.eq.s32.totalorder %s28, 0
      %p243 = por %p241, %p242
      %p244 = scmp.ne.s32.totalorder %s232, %s233
      %p245 = scmp.eq.s32.totalorder %s29, 1
      %p246 = por %p244, %p245
      %p248 = scmp.ne.s32.totalorder %s233, %s247
      %p249 = scmp.eq.s32.totalorder %s29, 0
      %p250 = por %p248, %p249
      %s252 = sadd.s32 %s251, 1
      %p255 = scmp.eq.s32.totalorder %s23, 1
      %p256 = scmp.ne.s32.totalorder %s251, %s253
      %p257 = scmp.eq.s32.totalorder %s23, 0
      %p258 = por %p256, %p257
      %p259 = scmp.ne.s32.totalorder %s251, %s253
      %p260 = scmp.eq.s32.totalorder %s28, 1
      %p261 = por %p259, %p260
      %p262 = scmp.ne.s32.totalorder %s253, %s254
      %p263 = scmp.eq.s32.totalorder %s28, 0
      %p264 = por %p262, %p263
      %p265 = scmp.ne.s32.totalorder %s253, %s254
      %p266 = scmp.eq.s32.totalorder %s29, 1
      %p267 = por %p265, %p266
      %p269 = scmp.ne.s32.totalorder %s254, %s268
      %p270 = scmp.eq.s32.totalorder %s29, 0
      %p271 = por %p269, %p270
      %s273 = sadd.s32 %s272, 1
      %p276 = scmp.eq.s32.totalorder %s23, 1
      %p277 = scmp.ne.s32.totalorder %s272, %s274
      %p278 = scmp.eq.s32.totalorder %s23, 0
      %p279 = por %p277, %p278
      %p280 = scmp.ne.s32.totalorder %s272, %s274
      %p281 = scmp.eq.s32.totalorder %s28, 1
      %p282 = por %p280, %p281
      %p283 = scmp.ne.s32.totalorder %s274, %s275
      %p284 = scmp.eq.s32.totalorder %s28, 0
      %p285 = por %p283, %p284
      %p286 = scmp.ne.s32.totalorder %s274, %s275
      %p287 = scmp.eq.s32.totalorder %s29, 1
      %p288 = por %p286, %p287
      %p290 = scmp.ne.s32.totalorder %s275, %s289
      %p291 = scmp.eq.s32.totalorder %s29, 0
      %p292 = por %p290, %p291
      %s294 = sadd.s32 %s293, 1
      %p297 = scmp.eq.s32.totalorder %s23, 1
      %p298 = scmp.ne.s32.totalorder %s293, %s295
      %p299 = scmp.eq.s32.totalorder %s23, 0
      %p300 = por %p298, %p299
      %p301 = scmp.ne.s32.totalorder %s293, %s295
      %p302 = scmp.eq.s32.totalorder %s28, 1
      %p303 = por %p301, %p302
      %p304 = scmp.ne.s32.totalorder %s295, %s296
      %p305 = scmp.eq.s32.totalorder %s28, 0
      %p306 = por %p304, %p305
      %p307 = scmp.ne.s32.totalorder %s295, %s296
      %p308 = scmp.eq.s32.totalorder %s29, 1
      %p309 = por %p307, %p308
      %p311 = scmp.ne.s32.totalorder %s296, %s310
      %p312 = scmp.eq.s32.totalorder %s29, 0
      %p313 = por %p311, %p312
      %s315 = sadd.s32 %s314, 1
      %p318 = scmp.eq.s32.totalorder %s23, 1
      %p319 = scmp.ne.s32.totalorder %s314, %s316
      %p320 = scmp.eq.s32.totalorder %s23, 0
      %p321 = por %p319, %p320
      %p322 = scmp.ne.s32.totalorder %s314, %s316
      %p323 = scmp.eq.s32.totalorder %s28, 1
      %p324 = por %p322, %p323
      %p325 = scmp.ne.s32.totalorder %s316, %s317
      %p326 = scmp.eq.s32.totalorder %s28, 0
      %p327 = por %p325, %p326
      %p328 = scmp.ne.s32.totalorder %s316, %s317
      %p329 = scmp.eq.s32.totalorder %s29, 1
      %p330 = por %p328, %p329
      %p332 = scmp.ne.s32.totalorder %s317, %s331
      %p333 = scmp.eq.s32.totalorder %s29, 0
      %p334 = por %p332, %p333
      %s335 = ssub.s32 %s23, %s30
      %p336 = scmp.eq.s32.totalorder %s335, 0
      %s338 = sadd.s32 %s337, 1
      %s339 = scalar_select %p336, %s337, %s338
      %p342 = pneg %p336
      %p343 = scmp.eq.s32.totalorder %s23, 1
      %p344 = por %p342, %p343
      %p345 = scmp.ne.s32.totalorder %s337, %s340
      %p346 = scmp.eq.s32.totalorder %s23, 0
      %p347 = por %p345, %p346
      %p348 = scmp.ne.s32.totalorder %s337, %s340
      %p349 = scmp.eq.s32.totalorder %s28, 1
      %p350 = por %p348, %p349
      %p351 = scmp.ne.s32.totalorder %s340, %s341
      %p352 = scmp.eq.s32.totalorder %s28, 0
      %p353 = por %p351, %p352
      %p354 = scmp.ne.s32.totalorder %s340, %s341
      %p355 = scmp.eq.s32.totalorder %s29, 1
      %p356 = por %p354, %p355
      %p358 = scmp.ne.s32.totalorder %s341, %s357
      %p359 = scmp.eq.s32.totalorder %s29, 0
      %p360 = por %p358, %p359
      %p361 = scmp.le.s32.totalorder 1, %s23
      %p362 = scmp.lt.s32.totalorder %s23, 3
      %p363 = pnand %p361, %p362
      %p364 = pneg %p363
      // Predicated region
      $region9: #{tpu_custom_call.1} parent=5 // pred_check
        _
      $region10: #{tpu_custom_call.1} parent=5 // pred_check_branch
        %366 = sbr.rel (%p363) target = $region12
      $region11: #{tpu_custom_call.1} parent=5 // pred_region
        %s367 = ssub.s32 %s23, 1
        // Predicated region
        $region13: #{tpu_custom_call.1} parent=11 // pred_check
          %p368 = pneg %p96
        $region14: #{tpu_custom_call.1} parent=11 // pred_check_branch
          %370 = sbr.rel (%p368) target = $region16
        $region15: #{tpu_custom_call.1} parent=11 // pred_region
          _
        $region16: #{tpu_custom_call.1} parent=11 // pred_fallthru
          _
        // Predicated region
        $region17: #{tpu_custom_call.1} parent=11 // pred_check
          %p371 = pneg %p117
        $region18: #{tpu_custom_call.1} parent=11 // pred_check_branch
          %373 = sbr.rel (%p371) target = $region20
        $region19: #{tpu_custom_call.1} parent=11 // pred_region
          _
        $region20: #{tpu_custom_call.1} parent=11 // pred_fallthru
          _
        // Predicated region
        $region21: #{tpu_custom_call.1} parent=11 // pred_check
          %p374 = pneg %p138
        $region22: #{tpu_custom_call.1} parent=11 // pred_check_branch
          %376 = sbr.rel (%p374) target = $region24
        $region23: #{tpu_custom_call.1} parent=11 // pred_region
          _
        $region24: #{tpu_custom_call.1} parent=11 // pred_fallthru
          _
        // Predicated region
        $region25: #{tpu_custom_call.1} parent=11 // pred_check
          %p377 = pneg %p159
        $region26: #{tpu_custom_call.1} parent=11 // pred_check_branch
          %379 = sbr.rel (%p377) target = $region28
        $region27: #{tpu_custom_call.1} parent=11 // pred_region
          _
        $region28: #{tpu_custom_call.1} parent=11 // pred_fallthru
          _
        // Predicated region
        $region29: #{tpu_custom_call.1} parent=11 // pred_check
          %p380 = pneg %p180
        $region30: #{tpu_custom_call.1} parent=11 // pred_check_branch
          %382 = sbr.rel (%p380) target = $region32
        $region31: #{tpu_custom_call.1} parent=11 // pred_region
          _
        $region32: #{tpu_custom_call.1} parent=11 // pred_fallthru
          _
        // Predicated region
        $region33: #{tpu_custom_call.1} parent=11 // pred_check
          %p383 = pneg %p201
        $region34: #{tpu_custom_call.1} parent=11 // pred_check_branch
          %385 = sbr.rel (%p383) target = $region36
        $region35: #{tpu_custom_call.1} parent=11 // pred_region
          _
        $region36: #{tpu_custom_call.1} parent=11 // pred_fallthru
          _
        // Predicated region
        $region37: #{tpu_custom_call.1} parent=11 // pred_check
          %p386 = pneg %p222
        $region38: #{tpu_custom_call.1} parent=11 // pred_check_branch
          %388 = sbr.rel (%p386) target = $region40
        $region39: #{tpu_custom_call.1} parent=11 // pred_region
          _
        $region40: #{tpu_custom_call.1} parent=11 // pred_fallthru
          _
        // Predicated region
        $region41: #{tpu_custom_call.1} parent=11 // pred_check
          %p389 = pneg %p243
        $region42: #{tpu_custom_call.1} parent=11 // pred_check_branch
          %391 = sbr.rel (%p389) target = $region44
        $region43: #{tpu_custom_call.1} parent=11 // pred_region
          _
        $region44: #{tpu_custom_call.1} parent=11 // pred_fallthru
          _
        // Predicated region
        $region45: #{tpu_custom_call.1} parent=11 // pred_check
          %p392 = pneg %p264
        $region46: #{tpu_custom_call.1} parent=11 // pred_check_branch
          %394 = sbr.rel (%p392) target = $region48
        $region47: #{tpu_custom_call.1} parent=11 // pred_region
          _
        $region48: #{tpu_custom_call.1} parent=11 // pred_fallthru
          _
        // Predicated region
        $region49: #{tpu_custom_call.1} parent=11 // pred_check
          %p395 = pneg %p285
        $region50: #{tpu_custom_call.1} parent=11 // pred_check_branch
          %397 = sbr.rel (%p395) target = $region52
        $region51: #{tpu_custom_call.1} parent=11 // pred_region
          _
        $region52: #{tpu_custom_call.1} parent=11 // pred_fallthru
          _
        // Predicated region
        $region53: #{tpu_custom_call.1} parent=11 // pred_check
          %p398 = pneg %p306
        $region54: #{tpu_custom_call.1} parent=11 // pred_check_branch
          %400 = sbr.rel (%p398) target = $region56
        $region55: #{tpu_custom_call.1} parent=11 // pred_region
          _
        $region56: #{tpu_custom_call.1} parent=11 // pred_fallthru
          _
        // Predicated region
        $region57: #{tpu_custom_call.1} parent=11 // pred_check
          %p401 = pneg %p327
        $region58: #{tpu_custom_call.1} parent=11 // pred_check_branch
          %403 = sbr.rel (%p401) target = $region60
        $region59: #{tpu_custom_call.1} parent=11 // pred_region
          _
        $region60: #{tpu_custom_call.1} parent=11 // pred_fallthru
          _
      $region12: #{tpu_custom_call.1} parent=5 // pred_fallthru
        _
      %p404 = scmp.lt.s32.totalorder %s23, 2
      // Predicated region
      $region61: #{tpu_custom_call.1} parent=5 // pred_check
        %p405 = pneg %p404
      $region62: #{tpu_custom_call.1} parent=5 // pred_check_branch
        %407 = sbr.rel (%p405) target = $region64
      $region63: #{tpu_custom_call.1} parent=5 // pred_region
        // Predicated region
        $region65: #{tpu_custom_call.1} parent=63 // pred_check
          %p408 = pneg %p43
        $region66: #{tpu_custom_call.1} parent=63 // pred_check_branch
          %410 = sbr.rel (%p408) target = $region68
        $region67: #{tpu_custom_call.1} parent=63 // pred_region
          %p411 = scmp.lt.s32.totalorder %s23, 1
          %s412 = scalar_select %p411, %s23, 1
          %s413 = smul.addr %s412, 8
          %s414 = scalar_lea.vmem %s0, %s413
        $region68: #{tpu_custom_call.1} parent=63 // pred_fallthru
          _
        // Predicated region
        $region69: #{tpu_custom_call.1} parent=63 // pred_check
          %p415 = pneg %p69
        $region70: #{tpu_custom_call.1} parent=63 // pred_check_branch
          %417 = sbr.rel (%p415) target = $region72
        $region71: #{tpu_custom_call.1} parent=63 // pred_region
          %p418 = scmp.lt.s32.totalorder %s23, 1
          %s419 = scalar_select %p418, %s23, 1
          %s420 = scalar_lea.vmem %s1, %s419
        $region72: #{tpu_custom_call.1} parent=63 // pred_fallthru
          _
      $region64: #{tpu_custom_call.1} parent=5 // pred_fallthru
        _
      %p421 = scmp.le.s32.totalorder 1, %s23
      %p422 = scmp.lt.s32.totalorder %s23, 3
      %p423 = pnand %p421, %p422
      %p424 = pneg %p423
      // Predicated region
      $region73: #{tpu_custom_call.1} parent=5 // pred_check
        _
      $region74: #{tpu_custom_call.1} parent=5 // pred_check_branch
        %426 = sbr.rel (%p423) target = $region76
      $region75: #{tpu_custom_call.1} parent=5 // pred_region
        %s427 = ssub.s32 %s23, 1
        %p428 = scmp.lt.s32.totalorder %s28, 1
        %s429 = scalar_select %p428, %s28, 1
        %s430 = smul.addr %s429, 8
        %s431 = scalar_lea.vmem %s0, %s430
        %p432 = pneg %p49
        %p433 = pneg %p46
        %p434 = scmp.lt.s32.totalorder %s28, 1
        %s435 = scalar_select %p434, %s28, 1
        %s436 = scalar_lea.vmem %s1, %s435
        %p437 = pneg %p75
        %p438 = pneg %p72
        %p439 = pneg %p96
        %p440 = pneg %p93
        %p441 = pneg %p117
        %p442 = pneg %p114
        %p443 = pneg %p138
        %p444 = pneg %p135
        %p445 = pneg %p159
        %p446 = pneg %p156
        %p447 = pneg %p180
        %p448 = pneg %p177
        %p449 = pneg %p201
        %p450 = pneg %p198
        %p451 = pneg %p222
        %p452 = pneg %p219
        %p453 = pneg %p243
        %p454 = pneg %p240
        %p455 = pneg %p264
        %p456 = pneg %p261
        %p457 = pneg %p285
        %p458 = pneg %p282
        %p459 = pneg %p306
        %p460 = pneg %p303
        %p461 = pneg %p327
        %p462 = pneg %p324
        %p463 = pneg %p353
        %p464 = pneg %p350
        %s465 = sand.u32 %s340, 1
        %s466 = scalar_lea.sflag [#allocation5], %s465
        %s467 = sand.u32 %s340, 1
        %s468 = smul.addr %s467, 8
        %s469 = scalar_lea.vmem [#allocation4], %s468
        %p470 = scmp.lt.s32.totalorder %s28, 1
        %s471 = scalar_select %p470, %s28, 1
        %s472 = smul.addr %s471, 8
        %s473 = scalar_lea.vmem %s0, %s472
        %p474 = scmp.lt.s32.totalorder %s28, 1
        %s475 = scalar_select %p474, %s28, 1
        %s476 = scalar_lea.vmem %s1, %s475
        %v478 = vld [vmem:[%s473] sm:$0xff]
        %v479 = vld [vmem:[%s6] sm:$0x1]
        %v480 = vld [vmem:[%s7] sm:$0x1]
        %vm481 = vcmask 261120
        %v482 = vsel %vm481, %v478, 0.0
        %483 = vadd.xlane.f32.xlu0 %v482
        %v484 = vpop.xlane.xlu0 %483
        %v485 = vrcp.pop 32.0
        %v486 = vmul.f32 32.0, %v485
        %v487 = vsub.f32 1.0, %v486
        %v488 = vmul.f32 %v485, %v487
        %v489 = vadd.f32 %v485, %v488
        %vm490 = vweird.f32 %v485
        %v491 = vsel %vm490, %v485, %v489
        %v492 = vmul.f32 %v484, %v491
        %v493 = vsub.f32 %v478, %v492
        %v494 = vmul.f32 %v493, %v493
        %v495 = vsel %vm481, %v494, 0.0
        %496 = vadd.xlane.f32.xlu0 %v495
        %v497 = vpop.xlane.xlu0 %496
        %v498 = vrcp.pop 31.0
        %v499 = vmul.f32 31.0, %v498
        %v500 = vsub.f32 1.0, %v499
        %v501 = vmul.f32 %v498, %v500
        %v502 = vadd.f32 %v498, %v501
        %vm503 = vweird.f32 %v498
        %v504 = vsel %vm503, %v498, %v502
        %v505 = vmul.f32 %v497, %v504
        %v506 = vrsqrt.pop %v505
        %v507 = vmul.f32 %v506, %v505
        %v508 = vmul.f32 %v507, %v506
        %v509 = vmul.f32 0.5, %v508
        %v510 = vsub.f32 1.5, %v509
        %v511 = vmul.f32 %v506, %v510
        %v512 = vmul.f32 %v505, %v511
        %vm513 = vcmp.eq.f32.partialorder %v505, inf
        %v514 = vsel %vm513, %v505, %v512
        %vm515 = vcmp.eq.f32.partialorder %v505, 0.0
        %v516 = vand.u32 %v505, 2147483648
        %v517 = vsel %vm515, %v516, %v514
        %v518 = vadd.f32 %v517, 1e-06
        %v519 = vrcp.pop %v518
        %v521 = vperm.slane %v479, 0
        %v523 = vmul.f32 %v521, %v493
        %v524 = vmul.f32 %v523, %v519
        %v526 = vperm.slane %v480, 0
        %v528 = vadd.f32 %v524, %v526
        %v529 = vpack.c.bf16 %v528, %v528
        %v530 = vld [vmem:[%s2] sm:$0xf]
        %v531 = vld [vmem:[%s2 + $0x4] sm:$0xf]
        %v532 = vld [vmem:[%s2 + $0x8] sm:$0xf]
        %v533 = vld [vmem:[%s2 + $0xc] sm:$0xf]
        %v534 = vld [vmem:[%s3] sm:$0x1]
        %v536 = vperm.slane %v534, 0
        %v542 = vunpack.c.l.b16 %v530
        %v543 = vunpack.c.l.b16 %v531
        %v544 = vunpack.c.l.b16 %v532
        %v545 = vunpack.c.l.b16 %v533
        %v546 = vpack.c.b16 %v543, %v542
        %v547 = vpack.c.b16 %v545, %v544
        %v551 = vsel %vm481, %v529, 0
        %553 = vmatpush.bf16.msra.mxu0 0
        %554 = vmatpush.bf16.msra.mxu0 0
        %555 = vmatpush.bf16.msra.mxu0 0
        %556 = vmatpush.bf16.msra.mxu0 0
        %557 = vmatpush.bf16.msra.mxu0 0
        %558 = vmatpush.bf16.msra.mxu0 0
        %559 = vmatpush.bf16.msra.mxu0 %v547
        %560 = vmatpush.bf16.msra.mxu0 %v546
        %561 = vmatmul.bf16.gmra.mxu0 %v551
        %v562 = vpop.f32.mrf.mxu0
        %v563 = vadd.f32 %v536, %v562
        %v564 = vpop.f32.mrf.mxu0
        %565 = vdwg.mxu0
        %v566 = vpack.c.bf16 %v563, %v563
        %vm567 = vcmask 781312
        %568 = vst.msk [vmem:[#allocation2] sm:$0xf] %vm567, %v566
        %v569 = vld [vmem:[%s476] sm:$0x1]
        %vm570 = vcmp.eq.s32.totalorder %v569, 0
        %v571 = vsel %vm570, -1e+09, 0.0
        %v572 = vld [vmem:[#allocation2] sm:$0xf]
        %v574 = vperm.slane %v571, 0
        %v577 = vunpack.c.l.b16 %v572
        %v578 = vpack.c.b16 %v577, %v577
        %579 = vrot.lane.b32.xlu0 %v578, 96
        %v580 = vpop.permute.xlu0 %579
        %vm581 = vcmask 64512
        %v583 = vsel %vm581, %v572, 0
        %v586 = vsel %vm581, %v580, 0
        %588 = vmatpush.bf16.xpose.msra.mxu0 0
        %589 = vmatpush.bf16.xpose.msra.mxu0 0
        %590 = vmatpush.bf16.xpose.msra.mxu0 0
        %591 = vmatpush.bf16.xpose.msra.mxu0 0
        %592 = vmatpush.bf16.xpose.msra.mxu0 0
        %593 = vmatpush.bf16.xpose.msra.mxu0 0
        %594 = vmatpush.bf16.xpose.msra.mxu0 0
        %595 = vmatpush.bf16.xpose.msra.mxu0 %v586
        %596 = vmatmul.bf16.gmra.mxu0 %v583
        %v597 = vpop.f32.mrf.mxu0
        %v598 = vadd.f32 %v574, %v597
        %v599 = vpop.f32.mrf.mxu0
        %600 = vdwg.mxu0
        %v601 = vsel %vm581, %v598, -inf
        %602 = vmax.xlane.f32.xlu0 %v601
        %v603 = vpop.xlane.xlu0 %602
        %v604 = vsub.f32 %v598, %v603
        %v605 = vmul.f32 %v604, 1.442695
        %v606 = vpow.pop %v605
        %v607 = vsel %vm581, %v606, 0.0
        %608 = vadd.xlane.f32.xlu0 %v607
        %v609 = vpop.xlane.xlu0 %608
        %v610 = vrcp.pop %v609
        %v611 = vpack.c.bf16 %v606, %v606
        %612 = vrot.lane.b32.xlu0 %v578, 64
        %v613 = vpop.permute.xlu0 %612
        %v615 = vsel %vm581, %v611, 0
        %vm617 = vcmask 1043456
        %v619 = vsel %vm617, %v613, 0
        %621 = vmatpush.bf16.msra.mxu0 0
        %622 = vmatpush.bf16.msra.mxu0 0
        %623 = vmatpush.bf16.msra.mxu0 0
        %624 = vmatpush.bf16.msra.mxu0 0
        %625 = vmatpush.bf16.msra.mxu0 0
        %626 = vmatpush.bf16.msra.mxu0 0
        %627 = vmatpush.bf16.msra.mxu0 0
        %628 = vmatpush.bf16.msra.mxu0 %v619
        %629 = vmatmul.bf16.gmra.mxu0 %v615
        %v630 = vpop.f32.mrf.mxu0
        %v631 = vadd.f32 0.0, %v630
        %v632 = vpop.f32.mrf.mxu0
        %633 = vdwg.mxu0
        %v634 = vmul.f32 %v631, %v610
        %v635 = vpack.c.bf16 %v634, %v634
        %vm636 = vcmask 60416
        %637 = vst.msk [vmem:[#allocation3] sm:$0xf] %vm636, %v635
        %v638 = vld [vmem:[#allocation2] sm:$0xf]
        %v640 = vunpack.c.l.b16 %v638
        %v641 = vpack.c.b16 %v640, %v640
        %642 = vrot.lane.b32.xlu0 %v641, 120
        %v643 = vpop.permute.xlu0 %642
        %644 = vrot.lane.b32.xlu0 %v641, 88
        %v645 = vpop.permute.xlu0 %644
        %v647 = vsel %vm581, %v643, 0
        %v650 = vsel %vm581, %v645, 0
        %652 = vmatpush.bf16.xpose.msra.mxu0 0
        %653 = vmatpush.bf16.xpose.msra.mxu0 0
        %654 = vmatpush.bf16.xpose.msra.mxu0 0
        %655 = vmatpush.bf16.xpose.msra.mxu0 0
        %656 = vmatpush.bf16.xpose.msra.mxu0 0
        %657 = vmatpush.bf16.xpose.msra.mxu0 0
        %658 = vmatpush.bf16.xpose.msra.mxu0 0
        %659 = vmatpush.bf16.xpose.msra.mxu0 %v650
        %660 = vmatmul.bf16.gmra.mxu0 %v647
        %v661 = vpop.f32.mrf.mxu0
        %v662 = vadd.f32 %v574, %v661
        %v663 = vpop.f32.mrf.mxu0
        %664 = vdwg.mxu0
        %v665 = vsel %vm581, %v662, -inf
        %666 = vmax.xlane.f32.xlu0 %v665
        %v667 = vpop.xlane.xlu0 %666
        %v668 = vsub.f32 %v662, %v667
        %v669 = vmul.f32 %v668, 1.442695
        %v670 = vpow.pop %v669
        %v671 = vsel %vm581, %v670, 0.0
        %672 = vadd.xlane.f32.xlu0 %v671
        %v673 = vpop.xlane.xlu0 %672
        %v674 = vrcp.pop %v673
        %v675 = vpack.c.bf16 %v670, %v670
        %676 = vrot.lane.b32.xlu0 %v641, 56
        %v677 = vpop.permute.xlu0 %676
        %v679 = vsel %vm581, %v675, 0
        %v682 = vsel %vm617, %v677, 0
        %684 = vmatpush.bf16.msra.mxu0 0
        %685 = vmatpush.bf16.msra.mxu0 0
        %686 = vmatpush.bf16.msra.mxu0 0
        %687 = vmatpush.bf16.msra.mxu0 0
        %688 = vmatpush.bf16.msra.mxu0 0
        %689 = vmatpush.bf16.msra.mxu0 0
        %690 = vmatpush.bf16.msra.mxu0 0
        %691 = vmatpush.bf16.msra.mxu0 %v682
        %692 = vmatmul.bf16.gmra.mxu0 %v679
        %v693 = vpop.f32.mrf.mxu0
        %v694 = vadd.f32 0.0, %v693
        %v695 = vpop.f32.mrf.mxu0
        %696 = vdwg.mxu0
        %v697 = vmul.f32 %v694, %v674
        %v698 = vpack.c.bf16 %v697, %v697
        %700 = vrot.lane.b32.xlu0 %v698, 8
        %v701 = vpop.permute.xlu0 %700
        %vm703 = vcmask 126016
        %704 = vst.msk [vmem:[#allocation3] sm:$0xf] %vm703, %v701
        %v705 = vld [vmem:[#allocation2] sm:$0xf]
        %v707 = vunpack.c.l.b16 %v705
        %v708 = vpack.c.b16 %v707, %v707
        %709 = vrot.lane.b32.xlu0 %v708, 112
        %v710 = vpop.permute.xlu0 %709
        %711 = vrot.lane.b32.xlu0 %v708, 80
        %v712 = vpop.permute.xlu0 %711
        %v714 = vsel %vm581, %v710, 0
        %v717 = vsel %vm581, %v712, 0
        %719 = vmatpush.bf16.xpose.msra.mxu0 0
        %720 = vmatpush.bf16.xpose.msra.mxu0 0
        %721 = vmatpush.bf16.xpose.msra.mxu0 0
        %722 = vmatpush.bf16.xpose.msra.mxu0 0
        %723 = vmatpush.bf16.xpose.msra.mxu0 0
        %724 = vmatpush.bf16.xpose.msra.mxu0 0
        %725 = vmatpush.bf16.xpose.msra.mxu0 0
        %726 = vmatpush.bf16.xpose.msra.mxu0 %v717
        %727 = vmatmul.bf16.gmra.mxu0 %v714
        %v728 = vpop.f32.mrf.mxu0
        %v729 = vadd.f32 %v574, %v728
        %v730 = vpop.f32.mrf.mxu0
        %731 = vdwg.mxu0
        %v732 = vsel %vm581, %v729, -inf
        %733 = vmax.xlane.f32.xlu0 %v732
        %v734 = vpop.xlane.xlu0 %733
        %v735 = vsub.f32 %v729, %v734
        %v736 = vmul.f32 %v735, 1.442695
        %v737 = vpow.pop %v736
        %v738 = vsel %vm581, %v737, 0.0
        %739 = vadd.xlane.f32.xlu0 %v738
        %v740 = vpop.xlane.xlu0 %739
        %v741 = vrcp.pop %v740
        %v742 = vpack.c.bf16 %v737, %v737
        %743 = vrot.lane.b32.xlu0 %v708, 48
        %v744 = vpop.permute.xlu0 %743
        %v746 = vsel %vm581, %v742, 0
        %v749 = vsel %vm617, %v744, 0
        %751 = vmatpush.bf16.msra.mxu0 0
        %752 = vmatpush.bf16.msra.mxu0 0
        %753 = vmatpush.bf16.msra.mxu0 0
        %754 = vmatpush.bf16.msra.mxu0 0
        %755 = vmatpush.bf16.msra.mxu0 0
        %756 = vmatpush.bf16.msra.mxu0 0
        %757 = vmatpush.bf16.msra.mxu0 0
        %758 = vmatpush.bf16.msra.mxu0 %v749
        %759 = vmatmul.bf16.gmra.mxu0 %v746
        %v760 = vpop.f32.mrf.mxu0
        %v761 = vadd.f32 0.0, %v760
        %v762 = vpop.f32.mrf.mxu0
        %763 = vdwg.mxu0
        %v764 = vmul.f32 %v761, %v741
        %v765 = vpack.c.bf16 %v764, %v764
        %767 = vrot.lane.b32.xlu0 %v765, 16
        %v768 = vpop.permute.xlu0 %767
        %vm770 = vcmask 191616
        %771 = vst.msk [vmem:[#allocation3] sm:$0xf] %vm770, %v768
        %v772 = vld [vmem:[#allocation2] sm:$0xf]
        %v774 = vunpack.c.l.b16 %v772
        %v775 = vpack.c.b16 %v774, %v774
        %776 = vrot.lane.b32.xlu0 %v775, 104
        %v777 = vpop.permute.xlu0 %776
        %778 = vrot.lane.b32.xlu0 %v775, 72
        %v779 = vpop.permute.xlu0 %778
        %v781 = vsel %vm581, %v777, 0
        %v784 = vsel %vm581, %v779, 0
        %786 = vmatpush.bf16.xpose.msra.mxu0 0
        %787 = vmatpush.bf16.xpose.msra.mxu0 0
        %788 = vmatpush.bf16.xpose.msra.mxu0 0
        %789 = vmatpush.bf16.xpose.msra.mxu0 0
        %790 = vmatpush.bf16.xpose.msra.mxu0 0
        %791 = vmatpush.bf16.xpose.msra.mxu0 0
        %792 = vmatpush.bf16.xpose.msra.mxu0 0
        %793 = vmatpush.bf16.xpose.msra.mxu0 %v784
        %794 = vmatmul.bf16.gmra.mxu0 %v781
        %v795 = vpop.f32.mrf.mxu0
        %v796 = vadd.f32 %v574, %v795
        %v797 = vpop.f32.mrf.mxu0
        %798 = vdwg.mxu0
        %v799 = vsel %vm581, %v796, -inf
        %800 = vmax.xlane.f32.xlu0 %v799
        %v801 = vpop.xlane.xlu0 %800
        %v802 = vsub.f32 %v796, %v801
        %v803 = vmul.f32 %v802, 1.442695
        %v804 = vpow.pop %v803
        %v805 = vsel %vm581, %v804, 0.0
        %806 = vadd.xlane.f32.xlu0 %v805
        %v807 = vpop.xlane.xlu0 %806
        %v808 = vrcp.pop %v807
        %v809 = vpack.c.bf16 %v804, %v804
        %810 = vrot.lane.b32.xlu0 %v775, 40
        %v811 = vpop.permute.xlu0 %810
        %v813 = vsel %vm581, %v809, 0
        %v816 = vsel %vm617, %v811, 0
        %818 = vmatpush.bf16.msra.mxu0 0
        %819 = vmatpush.bf16.msra.mxu0 0
        %820 = vmatpush.bf16.msra.mxu0 0
        %821 = vmatpush.bf16.msra.mxu0 0
        %822 = vmatpush.bf16.msra.mxu0 0
        %823 = vmatpush.bf16.msra.mxu0 0
        %824 = vmatpush.bf16.msra.mxu0 0
        %825 = vmatpush.bf16.msra.mxu0 %v816
        %826 = vmatmul.bf16.gmra.mxu0 %v813
        %v827 = vpop.f32.mrf.mxu0
        %v828 = vadd.f32 0.0, %v827
        %v829 = vpop.f32.mrf.mxu0
        %830 = vdwg.mxu0
        %v831 = vmul.f32 %v828, %v808
        %v832 = vpack.c.bf16 %v831, %v831
        %834 = vrot.lane.b32.xlu0 %v832, 24
        %v835 = vpop.permute.xlu0 %834
        %vm837 = vcmask 257216
        %838 = vst.msk [vmem:[#allocation3] sm:$0xf] %vm837, %v835
        %v839 = vld [vmem:[#allocation3] sm:$0xf]
        %v840 = vld [vmem:[%s4] sm:$0xf]
        %v841 = vld [vmem:[%s4 + $0x4] sm:$0xf]
        %v842 = vld [vmem:[%s4 + $0x8] sm:$0xf]
        %v843 = vld [vmem:[%s4 + $0xc] sm:$0xf]
        %v844 = vld [vmem:[%s5] sm:$0x1]
        %v846 = vperm.slane %v844, 0
        %v852 = vunpack.c.l.b16 %v840
        %v853 = vunpack.c.l.b16 %v841
        %v854 = vunpack.c.l.b16 %v842
        %v855 = vunpack.c.l.b16 %v843
        %v856 = vpack.c.b16 %v853, %v852
        %v857 = vpack.c.b16 %v855, %v854
        %v861 = vsel %vm481, %v839, 0
        %863 = vmatpush.bf16.msra.mxu0 0
        %864 = vmatpush.bf16.msra.mxu0 0
        %865 = vmatpush.bf16.msra.mxu0 0
        %866 = vmatpush.bf16.msra.mxu0 0
        %867 = vmatpush.bf16.msra.mxu0 0
        %868 = vmatpush.bf16.msra.mxu0 0
        %869 = vmatpush.bf16.msra.mxu0 %v857
        %870 = vmatpush.bf16.msra.mxu0 %v856
        %871 = vmatmul.bf16.gmra.mxu0 %v861
        %v872 = vpop.f32.mrf.mxu0
        %v873 = vadd.f32 %v846, %v872
        %v874 = vpop.f32.mrf.mxu0
        %875 = vdwg.mxu0
        %v876 = vadd.f32 %v478, %v873
        %v877 = vld [vmem:[%s12] sm:$0x1]
        %v878 = vld [vmem:[%s13] sm:$0x1]
        %v879 = vsel %vm481, %v876, 0.0
        %880 = vadd.xlane.f32.xlu0 %v879
        %v881 = vpop.xlane.xlu0 %880
        %v882 = vmul.f32 %v881, %v491
        %v883 = vsub.f32 %v876, %v882
        %v884 = vmul.f32 %v883, %v883
        %v885 = vsel %vm481, %v884, 0.0
        %886 = vadd.xlane.f32.xlu0 %v885
        %v887 = vpop.xlane.xlu0 %886
        %v888 = vmul.f32 %v887, %v504
        %v889 = vrsqrt.pop %v888
        %v890 = vmul.f32 %v889, %v888
        %v891 = vmul.f32 %v890, %v889
        %v892 = vmul.f32 0.5, %v891
        %v893 = vsub.f32 1.5, %v892
        %v894 = vmul.f32 %v889, %v893
        %v895 = vmul.f32 %v888, %v894
        %vm896 = vcmp.eq.f32.partialorder %v888, inf
        %v897 = vsel %vm896, %v888, %v895
        %vm898 = vcmp.eq.f32.partialorder %v888, 0.0
        %v899 = vand.u32 %v888, 2147483648
        %v900 = vsel %vm898, %v899, %v897
        %v901 = vadd.f32 %v900, 1e-06
        %v902 = vrcp.pop %v901
        %v904 = vperm.slane %v877, 0
        %v906 = vmul.f32 %v904, %v883
        %v907 = vmul.f32 %v906, %v902
        %v909 = vperm.slane %v878, 0
        %v911 = vadd.f32 %v907, %v909
        %v912 = vpack.c.bf16 %v911, %v911
        %v913 = vld [vmem:[%s8] sm:$0xf]
        %v914 = vld [vmem:[%s8 + $0x4] sm:$0xf]
        %v915 = vld [vmem:[%s8 + $0x8] sm:$0xf]
        %v916 = vld [vmem:[%s8 + $0xc] sm:$0xf]
        %v917 = vld [vmem:[%s9] sm:$0x1]
        %v919 = vperm.slane %v917, 0
        %v925 = vunpack.c.l.b16 %v913
        %v926 = vunpack.c.l.b16 %v914
        %v927 = vunpack.c.l.b16 %v915
        %v928 = vunpack.c.l.b16 %v916
        %v929 = vpack.c.b16 %v926, %v925
        %v930 = vpack.c.b16 %v928, %v927
        %v934 = vsel %vm481, %v912, 0
        %936 = vmatpush.bf16.msra.mxu0 0
        %937 = vmatpush.bf16.msra.mxu0 0
        %938 = vmatpush.bf16.msra.mxu0 0
        %939 = vmatpush.bf16.msra.mxu0 0
        %940 = vmatpush.bf16.msra.mxu0 0
        %941 = vmatpush.bf16.msra.mxu0 0
        %942 = vmatpush.bf16.msra.mxu0 %v930
        %943 = vmatpush.bf16.msra.mxu0 %v929
        %944 = vmatmul.bf16.gmra.mxu0 %v934
        %v945 = vpop.f32.mrf.mxu0
        %v946 = vadd.f32 %v919, %v945
        %v947 = vpop.f32.mrf.mxu0
        %948 = vdwg.mxu0
        %v949 = vmul.f32 %v946, 0.5
        %v950 = vmul.f32 %v946, 0.044715
        %v951 = vmul.f32 %v950, %v946
        %v952 = vmul.f32 %v951, %v946
        %v953 = vadd.f32 %v946, %v952
        %v954 = vmul.f32 %v953, 0.7978846
        %v955 = vtanh.pop %v954
        %v956 = vadd.f32 %v955, 1.0
        %v957 = vmul.f32 %v949, %v956
        %v958 = vpack.c.bf16 %v957, %v957
        %v959 = vld [vmem:[%s10] sm:$0xf]
        %v960 = vld [vmem:[%s10 + $0x4] sm:$0xf]
        %v961 = vld [vmem:[%s10 + $0x8] sm:$0xf]
        %v962 = vld [vmem:[%s10 + $0xc] sm:$0xf]
        %v963 = vld [vmem:[%s10 + $0x10] sm:$0xf]
        %v964 = vld [vmem:[%s10 + $0x14] sm:$0xf]
        %v965 = vld [vmem:[%s10 + $0x18] sm:$0xf]
        %v966 = vld [vmem:[%s10 + $0x1c] sm:$0xf]
        %v967 = vld [vmem:[%s10 + $0x20] sm:$0xf]
        %v968 = vld [vmem:[%s10 + $0x24] sm:$0xf]
        %v969 = vld [vmem:[%s10 + $0x28] sm:$0xf]
        %v970 = vld [vmem:[%s10 + $0x2c] sm:$0xf]
        %v971 = vld [vmem:[%s10 + $0x30] sm:$0xf]
        %v972 = vld [vmem:[%s10 + $0x34] sm:$0xf]
        %v973 = vld [vmem:[%s10 + $0x38] sm:$0xf]
        %v974 = vld [vmem:[%s10 + $0x3c] sm:$0xf]
        %v975 = vld [vmem:[%s11] sm:$0x1]
        %v977 = vperm.slane %v975, 0
        %v995 = vunpack.c.l.b16 %v959
        %v996 = vunpack.c.l.b16 %v960
        %v997 = vunpack.c.l.b16 %v961
        %v998 = vunpack.c.l.b16 %v962
        %v999 = vunpack.c.l.b16 %v963
        %v1000 = vunpack.c.l.b16 %v964
        %v1001 = vunpack.c.l.b16 %v965
        %v1002 = vunpack.c.l.b16 %v966
        %v1003 = vunpack.c.l.b16 %v967
        %v1004 = vunpack.c.l.b16 %v968
        %v1005 = vunpack.c.l.b16 %v969
        %v1006 = vunpack.c.l.b16 %v970
        %v1007 = vunpack.c.l.b16 %v971
        %v1008 = vunpack.c.l.b16 %v972
        %v1009 = vunpack.c.l.b16 %v973
        %v1010 = vunpack.c.l.b16 %v974
        %v1011 = vpack.c.b16 %v996, %v995
        %v1012 = vpack.c.b16 %v998, %v997
        %v1013 = vpack.c.b16 %v1000, %v999
        %v1014 = vpack.c.b16 %v1002, %v1001
        %v1015 = vpack.c.b16 %v1004, %v1003
        %v1016 = vpack.c.b16 %v1006, %v1005
        %v1017 = vpack.c.b16 %v1008, %v1007
        %v1018 = vpack.c.b16 %v1010, %v1009
        %1027 = vmatpush.bf16.msra.mxu0 %v1018
        %1028 = vmatpush.bf16.msra.mxu0 %v1017
        %1029 = vmatpush.bf16.msra.mxu0 %v1016
        %1030 = vmatpush.bf16.msra.mxu0 %v1015
        %1031 = vmatpush.bf16.msra.mxu0 %v1014
        %1032 = vmatpush.bf16.msra.mxu0 %v1013
        %1033 = vmatpush.bf16.msra.mxu0 %v1012
        %1034 = vmatpush.bf16.msra.mxu0 %v1011
        %1035 = vmatmul.bf16.gmra.mxu0 %v958
        %v1036 = vpop.f32.mrf.mxu0
        %v1037 = vadd.f32 %v977, %v1036
        %v1038 = vpop.f32.mrf.mxu0
        %1039 = vdwg.mxu0
        %v1040 = vadd.f32 %v876, %v1037
        %1041 = vst.msk [vmem:[%s469] sm:$0xff] %vm481, %v1040
        %s1042 = sand.u32 %s340, 1
        %s1043 = scalar_lea.sflag [#allocation5], %s1042
        %s1044 = sand.u32 %s340, 1
        %s1045 = smul.addr %s1044, 8
        %s1046 = scalar_lea.vmem [#allocation4], %s1045
        // Predicated region
        $region77: #{tpu_custom_call.1} parent=75 // pred_check
          %p1047 = pneg %p350
        $region78: #{tpu_custom_call.1} parent=75 // pred_check_branch
          %1049 = sbr.rel (%p1047) target = $region80
        $region79: #{tpu_custom_call.1} parent=75 // pred_region
          %1051 = vsyncadd %s1043, 0
          %s1052 = smul.addr %s28, 8
          %s1053 = scalar_lea.hbm %s14, %s1052
          %s1055 = sshll.u32 %s1046, 4
          %s1056 = int_to_ptr.vmem [resolvable:$true] %s1055
          %s1057 = sshll.u32 %s1053, 4
          %s1058 = int_to_ptr.hbm [resolvable:$true] %s1057
          %1060 = dma.vmem_to_hbm [thread:$0]  %s1056, 128, %s1058, %s1043
        $region80: #{tpu_custom_call.1} parent=75 // pred_fallthru
          _
      $region76: #{tpu_custom_call.1} parent=5 // pred_fallthru
        _
      %p1061 = scmp.le.s32.totalorder 2, %s23
      // Predicated region
      $region81: #{tpu_custom_call.1} parent=5 // pred_check
        %p1062 = pneg %p1061
      $region82: #{tpu_custom_call.1} parent=5 // pred_check_branch
        %1064 = sbr.rel (%p1062) target = $region84
      $region83: #{tpu_custom_call.1} parent=5 // pred_region
        %s1065 = ssub.s32 %s23, 2
        // Predicated region
        $region85: #{tpu_custom_call.1} parent=83 // pred_check
          %p1066 = pneg %p356
        $region86: #{tpu_custom_call.1} parent=83 // pred_check_branch
          %1068 = sbr.rel (%p1066) target = $region88
        $region87: #{tpu_custom_call.1} parent=83 // pred_region
          %s1069 = sand.u32 %s341, 1
          %s1070 = scalar_lea.sflag [#allocation5], %s1069
          %s1071 = sand.u32 %s341, 1
          %s1072 = smul.addr %s1071, 8
          %s1073 = scalar_lea.vmem [#allocation4], %s1072
          %1075 = dma.done %s1070, 128
        $region88: #{tpu_custom_call.1} parent=83 // pred_fallthru
          _
      $region84: #{tpu_custom_call.1} parent=5 // pred_fallthru
        _
    $region6: #{tpu_custom_call.1} parent=1 // loop_footer
      %s27 = sadd.s32 1, %s23
    $region7: #{tpu_custom_call.1} parent=1 // loop_footer_branch
      %22 = sbr.rel target = $region3
    $region8: #{tpu_custom_call.1} parent=1 // loop_exit
      _
    %1076 = vsyncpa [#allocation5], 1
    %s1077 = scalar_lea.sflag [#allocation5], 1
    %1078 = vsyncpa %s1077, 1

// kernel: tpu_custom_call.1
$region0: #{tpu_custom_call.1}
  #allocation0 [shape = 'u32[]', space=smem, size = 0x4, offset = 0x4, fixed_abs, tag = 'smem constant byte address 0x4 - core index']
  #allocation1 [shape = 'u32[72,128]{1,0:T(1,128)}', space=vmem, size = 0x9000, scoped, tag = 'internal scratch']
  #allocation2 [shape = 'bf16[1,8,96]{2,1,0:T(8,128)(2,1)}', space=vmem, size = 0x800, scoped, tag = 'scratch operand']
  #allocation3 [shape = 'bf16[1,8,32]{2,1,0:T(8,128)(2,1)}', space=vmem, size = 0x800, scoped, tag = 'scratch operand']
  %s0 = inlined_call_operand.vmem [shape: f32[2,8,32], index: 0, kind: input, shape index: {}]
  %s1 = inlined_call_operand.vmem [shape: s32[2,1,8], index: 1, kind: input, shape index: {}]
  %s2 = inlined_call_operand.vmem [shape: bf16[32,96], index: 2, kind: input, shape index: {}]
  %s3 = inlined_call_operand.vmem [shape: f32[1,96], index: 3, kind: input, shape index: {}]
  %s4 = inlined_call_operand.vmem [shape: bf16[32,32], index: 4, kind: input, shape index: {}]
  %s5 = inlined_call_operand.vmem [shape: f32[1,32], index: 5, kind: input, shape index: {}]
  %s6 = inlined_call_operand.vmem [shape: f32[1,32], index: 6, kind: input, shape index: {}]
  %s7 = inlined_call_operand.vmem [shape: f32[1,32], index: 7, kind: input, shape index: {}]
  %s8 = inlined_call_operand.vmem [shape: bf16[32,128], index: 8, kind: input, shape index: {}]
  %s9 = inlined_call_operand.vmem [shape: f32[1,128], index: 9, kind: input, shape index: {}]
  %s10 = inlined_call_operand.vmem [shape: bf16[128,32], index: 10, kind: input, shape index: {}]
  %s11 = inlined_call_operand.vmem [shape: f32[1,32], index: 11, kind: input, shape index: {}]
  %s12 = inlined_call_operand.vmem [shape: f32[1,32], index: 12, kind: input, shape index: {}]
  %s13 = inlined_call_operand.vmem [shape: f32[1,32], index: 13, kind: input, shape index: {}]
  %s14 = inlined_call_operand.hbm [shape: f32[2,8,32], index: 14, kind: output, shape index: {}]
  %s15 = sld [smem:[#allocation0]]
  $region89: #{tpu_custom_call.1} parent=0
    _
  %s17 = ssub.s32 1, %s15
  %s18 = scalar_select 0, %s17, %s15
  $region1: #{tpu_custom_call.1} parent=0
    #allocation4 [shape = 'u8[8192]{0}', space=vmem, size = 0x2000, scoped, tag = 'output window, operand 0']
    #allocation5 [shape = 's32[2]{0}', space=sflag, size = 0x8, scoped, tag = 'scoped memory for tpu_custom_call.1']
    %19 = vsyncpa [#allocation5], 0
    %s20 = scalar_lea.sflag [#allocation5], 1
    %21 = vsyncpa %s20, 0
    loop: start=0, step=1, limit=4
    $region2: #{tpu_custom_call.1} parent=1 // loop_pre_header
      _
    $region3: #{tpu_custom_call.1} parent=1 // loop_header
      %s23 = sphi 0, %s27
      %p24 = scmp.ge.s32.totalorder %s23, 4
      %s33 = sphi 0, %s35
      %s36 = sphi 0, %s33
      %s37 = sphi 0, %s36
      %s53 = sphi 0, %s37
      %s59 = sphi 0, %s61
      %s62 = sphi 0, %s59
      %s63 = sphi 0, %s62
      %s79 = sphi 0, %s63
      %s83 = sphi 0, %s83
      %s85 = sphi 0, %s83
      %s86 = sphi 0, %s85
      %s100 = sphi 0, %s86
      %s104 = sphi 0, %s104
      %s106 = sphi 0, %s104
      %s107 = sphi 0, %s106
      %s121 = sphi 0, %s107
      %s125 = sphi 0, %s125
      %s127 = sphi 0, %s125
      %s128 = sphi 0, %s127
      %s142 = sphi 0, %s128
      %s146 = sphi 0, %s146
      %s148 = sphi 0, %s146
      %s149 = sphi 0, %s148
      %s163 = sphi 0, %s149
      %s167 = sphi 0, %s167
      %s169 = sphi 0, %s167
      %s170 = sphi 0, %s169
      %s184 = sphi 0, %s170
      %s188 = sphi 0, %s188
      %s190 = sphi 0, %s188
      %s191 = sphi 0, %s190
      %s205 = sphi 0, %s191
      %s209 = sphi 0, %s209
      %s211 = sphi 0, %s209
      %s212 = sphi 0, %s211
      %s226 = sphi 0, %s212
      %s230 = sphi 0, %s230
      %s232 = sphi 0, %s230
      %s233 = sphi 0, %s232
      %s247 = sphi 0, %s233
      %s251 = sphi 0, %s251
      %s253 = sphi 0, %s251
      %s254 = sphi 0, %s253
      %s268 = sphi 0, %s254
      %s272 = sphi 0, %s272
      %s274 = sphi 0, %s272
      %s275 = sphi 0, %s274
      %s289 = sphi 0, %s275
      %s293 = sphi 0, %s293
      %s295 = sphi 0, %s293
      %s296 = sphi 0, %s295
      %s310 = sphi 0, %s296
      %s314 = sphi 0, %s314
      %s316 = sphi 0, %s314
      %s317 = sphi 0, %s316
      %s331 = sphi 0, %s317
      %s337 = sphi 0, %s339
      %s340 = sphi 0, %s337
      %s341 = sphi 0, %s340
      %s357 = sphi 0, %s341
    $region4: #{tpu_custom_call.1} parent=1 // loop_header_branch
      %26 = sbr.rel (%p24) target = $region8
    $region5: #{tpu_custom_call.1} parent=1 // loop_body
      %s28 = ssub.s32 %s23, 1
      %s29 = ssub.s32 %s23, 2
      %s30 = sadd.s32 %s23, 1
      %s31 = ssub.s32 %s23, %s30
      %p32 = scmp.eq.s32.totalorder %s31, 0
      %s34 = sadd.s32 %s33, 1
      %s35 = scalar_select %p32, %s33, %s34
      %p38 = pneg %p32
      %p39 = scmp.eq.s32.totalorder %s23, 1
      %p40 = por %p38, %p39
      %p41 = scmp.ne.s32.totalorder %s33, %s36
      %p42 = scmp.eq.s32.totalorder %s23, 0
      %p43 = por %p41, %p42
      %p44 = scmp.ne.s32.totalorder %s33, %s36
      %p45 = scmp.eq.s32.totalorder %s28, 1
      %p46 = por %p44, %p45
      %p47 = scmp.ne.s32.totalorder %s36, %s37
      %p48 = scmp.eq.s32.totalorder %s28, 0
      %p49 = por %p47, %p48
      %p50 = scmp.ne.s32.totalorder %s36, %s37
      %p51 = scmp.eq.s32.totalorder %s29, 1
      %p52 = por %p50, %p51
      %p54 = scmp.ne.s32.totalorder %s37, %s53
      %p55 = scmp.eq.s32.totalorder %s29, 0
      %p56 = por %p54, %p55
      %s57 = ssub.s32 %s23, %s30
      %p58 = scmp.eq.s32.totalorder %s57, 0
      %s60 = sadd.s32 %s59, 1
      %s61 = scalar_select %p58, %s59, %s60
      %p64 = pneg %p58
      %p65 = scmp.eq.s32.totalorder %s23, 1
      %p66 = por %p64, %p65
      %p67 = scmp.ne.s32.totalorder %s59, %s62
      %p68 = scmp.eq.s32.totalorder %s23, 0
      %p69 = por %p67, %p68
      %p70 = scmp.ne.s32.totalorder %s59, %s62
      %p71 = scmp.eq.s32.totalorder %s28, 1
      %p72 = por %p70, %p71
      %p73 = scmp.ne.s32.totalorder %s62, %s63
      %p74 = scmp.eq.s32.totalorder %s28, 0
      %p75 = por %p73, %p74
      %p76 = scmp.ne.s32.totalorder %s62, %s63
      %p77 = scmp.eq.s32.totalorder %s29, 1
      %p78 = por %p76, %p77
      %p80 = scmp.ne.s32.totalorder %s63, %s79
      %p81 = scmp.eq.s32.totalorder %s29, 0
      %p82 = por %p80, %p81
      %s84 = sadd.s32 %s83, 1
      %p87 = scmp.eq.s32.totalorder %s23, 1
      %p88 = scmp.ne.s32.totalorder %s83, %s85
      %p89 = scmp.eq.s32.totalorder %s23, 0
      %p90 = por %p88, %p89
      %p91 = scmp.ne.s32.totalorder %s83, %s85
      %p92 = scmp.eq.s32.totalorder %s28, 1
      %p93 = por %p91, %p92
      %p94 = scmp.ne.s32.totalorder %s85, %s86
      %p95 = scmp.eq.s32.totalorder %s28, 0
      %p96 = por %p94, %p95
      %p97 = scmp.ne.s32.totalorder %s85, %s86
      %p98 = scmp.eq.s32.totalorder %s29, 1
      %p99 = por %p97, %p98
      %p101 = scmp.ne.s32.totalorder %s86, %s100
      %p102 = scmp.eq.s32.totalorder %s29, 0
      %p103 = por %p101, %p102
      %s105 = sadd.s32 %s104, 1
      %p108 = scmp.eq.s32.totalorder %s23, 1
      %p109 = scmp.ne.s32.totalorder %s104, %s106
      %p110 = scmp.eq.s32.totalorder %s23, 0
      %p111 = por %p109, %p110
      %p112 = scmp.ne.s32.totalorder %s104, %s106
      %p113 = scmp.eq.s32.totalorder %s28, 1
      %p114 = por %p112, %p113
      %p115 = scmp.ne.s32.totalorder %s106, %s107
      %p116 = scmp.eq.s32.totalorder %s28, 0
      %p117 = por %p115, %p116
      %p118 = scmp.ne.s32.totalorder %s106, %s107
      %p119 = scmp.eq.s32.totalorder %s29, 1
      %p120 = por %p118, %p119
      %p122 = scmp.ne.s32.totalorder %s107, %s121
      %p123 = scmp.eq.s32.totalorder %s29, 0
      %p124 = por %p122, %p123
      %s126 = sadd.s32 %s125, 1
      %p129 = scmp.eq.s32.totalorder %s23, 1
      %p130 = scmp.ne.s32.totalorder %s125, %s127
      %p131 = scmp.eq.s32.totalorder %s23, 0
      %p132 = por %p130, %p131
      %p133 = scmp.ne.s32.totalorder %s125, %s127
      %p134 = scmp.eq.s32.totalorder %s28, 1
      %p135 = por %p133, %p134
      %p136 = scmp.ne.s32.totalorder %s127, %s128
      %p137 = scmp.eq.s32.totalorder %s28, 0
      %p138 = por %p136, %p137
      %p139 = scmp.ne.s32.totalorder %s127, %s128
      %p140 = scmp.eq.s32.totalorder %s29, 1
      %p141 = por %p139, %p140
      %p143 = scmp.ne.s32.totalorder %s128, %s142
      %p144 = scmp.eq.s32.totalorder %s29, 0
      %p145 = por %p143, %p144
      %s147 = sadd.s32 %s146, 1
      %p150 = scmp.eq.s32.totalorder %s23, 1
      %p151 = scmp.ne.s32.totalorder %s146, %s148
      %p152 = scmp.eq.s32.totalorder %s23, 0
      %p153 = por %p151, %p152
      %p154 = scmp.ne.s32.totalorder %s146, %s148
      %p155 = scmp.eq.s32.totalorder %s28, 1
      %p156 = por %p154, %p155
      %p157 = scmp.ne.s32.totalorder %s148, %s149
      %p158 = scmp.eq.s32.totalorder %s28, 0
      %p159 = por %p157, %p158
      %p160 = scmp.ne.s32.totalorder %s148, %s149
      %p161 = scmp.eq.s32.totalorder %s29, 1
      %p162 = por %p160, %p161
      %p164 = scmp.ne.s32.totalorder %s149, %s163
      %p165 = scmp.eq.s32.totalorder %s29, 0
      %p166 = por %p164, %p165
      %s168 = sadd.s32 %s167, 1
      %p171 = scmp.eq.s32.totalorder %s23, 1
      %p172 = scmp.ne.s32.totalorder %s167, %s169
      %p173 = scmp.eq.s32.totalorder %s23, 0
      %p174 = por %p172, %p173
      %p175 = scmp.ne.s32.totalorder %s167, %s169
      %p176 = scmp.eq.s32.totalorder %s28, 1
      %p177 = por %p175, %p176
      %p178 = scmp.ne.s32.totalorder %s169, %s170
      %p179 = scmp.eq.s32.totalorder %s28, 0
      %p180 = por %p178, %p179
      %p181 = scmp.ne.s32.totalorder %s169, %s170
      %p182 = scmp.eq.s32.totalorder %s29, 1
      %p183 = por %p181, %p182
      %p185 = scmp.ne.s32.totalorder %s170, %s184
      %p186 = scmp.eq.s32.totalorder %s29, 0
      %p187 = por %p185, %p186
      %s189 = sadd.s32 %s188, 1
      %p192 = scmp.eq.s32.totalorder %s23, 1
      %p193 = scmp.ne.s32.totalorder %s188, %s190
      %p194 = scmp.eq.s32.totalorder %s23, 0
      %p195 = por %p193, %p194
      %p196 = scmp.ne.s32.totalorder %s188, %s190
      %p197 = scmp.eq.s32.totalorder %s28, 1
      %p198 = por %p196, %p197
      %p199 = scmp.ne.s32.totalorder %s190, %s191
      %p200 = scmp.eq.s32.totalorder %s28, 0
      %p201 = por %p199, %p200
      %p202 = scmp.ne.s32.totalorder %s190, %s191
      %p203 = scmp.eq.s32.totalorder %s29, 1
      %p204 = por %p202, %p203
      %p206 = scmp.ne.s32.totalorder %s191, %s205
      %p207 = scmp.eq.s32.totalorder %s29, 0
      %p208 = por %p206, %p207
      %s210 = sadd.s32 %s209, 1
      %p213 = scmp.eq.s32.totalorder %s23, 1
      %p214 = scmp.ne.s32.totalorder %s209, %s211
      %p215 = scmp.eq.s32.totalorder %s23, 0
      %p216 = por %p214, %p215
      %p217 = scmp.ne.s32.totalorder %s209, %s211
      %p218 = scmp.eq.s32.totalorder %s28, 1
      %p219 = por %p217, %p218
      %p220 = scmp.ne.s32.totalorder %s211, %s212
      %p221 = scmp.eq.s32.totalorder %s28, 0
      %p222 = por %p220, %p221
      %p223 = scmp.ne.s32.totalorder %s211, %s212
      %p224 = scmp.eq.s32.totalorder %s29, 1
      %p225 = por %p223, %p224
      %p227 = scmp.ne.s32.totalorder %s212, %s226
      %p228 = scmp.eq.s32.totalorder %s29, 0
      %p229 = por %p227, %p228
      %s231 = sadd.s32 %s230, 1
      %p234 = scmp.eq.s32.totalorder %s23, 1
      %p235 = scmp.ne.s32.totalorder %s230, %s232
      %p236 = scmp.eq.s32.totalorder %s23, 0
      %p237 = por %p235, %p236
      %p238 = scmp.ne.s32.totalorder %s230, %s232
      %p239 = scmp.eq.s32.totalorder %s28, 1
      %p240 = por %p238, %p239
      %p241 = scmp.ne.s32.totalorder %s232, %s233
      %p242 = scmp.eq.s32.totalorder %s28, 0
      %p243 = por %p241, %p242
      %p244 = scmp.ne.s32.totalorder %s232, %s233
      %p245 = scmp.eq.s32.totalorder %s29, 1
      %p246 = por %p244, %p245
      %p248 = scmp.ne.s32.totalorder %s233, %s247
      %p249 = scmp.eq.s32.totalorder %s29, 0
      %p250 = por %p248, %p249
      %s252 = sadd.s32 %s251, 1
      %p255 = scmp.eq.s32.totalorder %s23, 1
      %p256 = scmp.ne.s32.totalorder %s251, %s253
      %p257 = scmp.eq.s32.totalorder %s23, 0
      %p258 = por %p256, %p257
      %p259 = scmp.ne.s32.totalorder %s251, %s253
      %p260 = scmp.eq.s32.totalorder %s28, 1
      %p261 = por %p259, %p260
      %p262 = scmp.ne.s32.totalorder %s253, %s254
      %p263 = scmp.eq.s32.totalorder %s28, 0
      %p264 = por %p262, %p263
      %p265 = scmp.ne.s32.totalorder %s253, %s254
      %p266 = scmp.eq.s32.totalorder %s29, 1
      %p267 = por %p265, %p266
      %p269 = scmp.ne.s32.totalorder %s254, %s268
      %p270 = scmp.eq.s32.totalorder %s29, 0
      %p271 = por %p269, %p270
      %s273 = sadd.s32 %s272, 1
      %p276 = scmp.eq.s32.totalorder %s23, 1
      %p277 = scmp.ne.s32.totalorder %s272, %s274
      %p278 = scmp.eq.s32.totalorder %s23, 0
      %p279 = por %p277, %p278
      %p280 = scmp.ne.s32.totalorder %s272, %s274
      %p281 = scmp.eq.s32.totalorder %s28, 1
      %p282 = por %p280, %p281
      %p283 = scmp.ne.s32.totalorder %s274, %s275
      %p284 = scmp.eq.s32.totalorder %s28, 0
      %p285 = por %p283, %p284
      %p286 = scmp.ne.s32.totalorder %s274, %s275
      %p287 = scmp.eq.s32.totalorder %s29, 1
      %p288 = por %p286, %p287
      %p290 = scmp.ne.s32.totalorder %s275, %s289
      %p291 = scmp.eq.s32.totalorder %s29, 0
      %p292 = por %p290, %p291
      %s294 = sadd.s32 %s293, 1
      %p297 = scmp.eq.s32.totalorder %s23, 1
      %p298 = scmp.ne.s32.totalorder %s293, %s295
      %p299 = scmp.eq.s32.totalorder %s23, 0
      %p300 = por %p298, %p299
      %p301 = scmp.ne.s32.totalorder %s293, %s295
      %p302 = scmp.eq.s32.totalorder %s28, 1
      %p303 = por %p301, %p302
      %p304 = scmp.ne.s32.totalorder %s295, %s296
      %p305 = scmp.eq.s32.totalorder %s28, 0
      %p306 = por %p304, %p305
      %p307 = scmp.ne.s32.totalorder %s295, %s296
      %p308 = scmp.eq.s32.totalorder %s29, 1
      %p309 = por %p307, %p308
      %p311 = scmp.ne.s32.totalorder %s296, %s310
      %p312 = scmp.eq.s32.totalorder %s29, 0
      %p313 = por %p311, %p312
      %s315 = sadd.s32 %s314, 1
      %p318 = scmp.eq.s32.totalorder %s23, 1
      %p319 = scmp.ne.s32.totalorder %s314, %s316
      %p320 = scmp.eq.s32.totalorder %s23, 0
      %p321 = por %p319, %p320
      %p322 = scmp.ne.s32.totalorder %s314, %s316
      %p323 = scmp.eq.s32.totalorder %s28, 1
      %p324 = por %p322, %p323
      %p325 = scmp.ne.s32.totalorder %s316, %s317
      %p326 = scmp.eq.s32.totalorder %s28, 0
      %p327 = por %p325, %p326
      %p328 = scmp.ne.s32.totalorder %s316, %s317
      %p329 = scmp.eq.s32.totalorder %s29, 1
      %p330 = por %p328, %p329
      %p332 = scmp.ne.s32.totalorder %s317, %s331
      %p333 = scmp.eq.s32.totalorder %s29, 0
      %p334 = por %p332, %p333
      %s335 = ssub.s32 %s23, %s30
      %p336 = scmp.eq.s32.totalorder %s335, 0
      %s338 = sadd.s32 %s337, 1
      %s339 = scalar_select %p336, %s337, %s338
      %p342 = pneg %p336
      %p343 = scmp.eq.s32.totalorder %s23, 1
      %p344 = por %p342, %p343
      %p345 = scmp.ne.s32.totalorder %s337, %s340
      %p346 = scmp.eq.s32.totalorder %s23, 0
      %p347 = por %p345, %p346
      %p348 = scmp.ne.s32.totalorder %s337, %s340
      %p349 = scmp.eq.s32.totalorder %s28, 1
      %p350 = por %p348, %p349
      %p351 = scmp.ne.s32.totalorder %s340, %s341
      %p352 = scmp.eq.s32.totalorder %s28, 0
      %p353 = por %p351, %p352
      %p354 = scmp.ne.s32.totalorder %s340, %s341
      %p355 = scmp.eq.s32.totalorder %s29, 1
      %p356 = por %p354, %p355
      %p358 = scmp.ne.s32.totalorder %s341, %s357
      %p359 = scmp.eq.s32.totalorder %s29, 0
      %p360 = por %p358, %p359
      %p361 = scmp.le.s32.totalorder 1, %s23
      %p362 = scmp.lt.s32.totalorder %s23, 3
      %p363 = pnand %p361, %p362
      %p364 = pneg %p363
      // Predicated region
      $region9: #{tpu_custom_call.1} parent=5 // pred_check
        _
      $region10: #{tpu_custom_call.1} parent=5 // pred_check_branch
        %366 = sbr.rel (%p363) target = $region12
      $region11: #{tpu_custom_call.1} parent=5 // pred_region
        %s367 = ssub.s32 %s23, 1
        // Predicated region
        $region13: #{tpu_custom_call.1} parent=11 // pred_check
          %p368 = pneg %p96
        $region14: #{tpu_custom_call.1} parent=11 // pred_check_branch
          %370 = sbr.rel (%p368) target = $region16
        $region15: #{tpu_custom_call.1} parent=11 // pred_region
          _
        $region16: #{tpu_custom_call.1} parent=11 // pred_fallthru
          _
        // Predicated region
        $region17: #{tpu_custom_call.1} parent=11 // pred_check
          %p371 = pneg %p117
        $region18: #{tpu_custom_call.1} parent=11 // pred_check_branch
          %373 = sbr.rel (%p371) target = $region20
        $region19: #{tpu_custom_call.1} parent=11 // pred_region
          _
        $region20: #{tpu_custom_call.1} parent=11 // pred_fallthru
          _
        // Predicated region
        $region21: #{tpu_custom_call.1} parent=11 // pred_check
          %p374 = pneg %p138
        $region22: #{tpu_custom_call.1} parent=11 // pred_check_branch
          %376 = sbr.rel (%p374) target = $region24
        $region23: #{tpu_custom_call.1} parent=11 // pred_region
          _
        $region24: #{tpu_custom_call.1} parent=11 // pred_fallthru
          _
        // Predicated region
        $region25: #{tpu_custom_call.1} parent=11 // pred_check
          %p377 = pneg %p159
        $region26: #{tpu_custom_call.1} parent=11 // pred_check_branch
          %379 = sbr.rel (%p377) target = $region28
        $region27: #{tpu_custom_call.1} parent=11 // pred_region
          _
        $region28: #{tpu_custom_call.1} parent=11 // pred_fallthru
          _
        // Predicated region
        $region29: #{tpu_custom_call.1} parent=11 // pred_check
          %p380 = pneg %p180
        $region30: #{tpu_custom_call.1} parent=11 // pred_check_branch
          %382 = sbr.rel (%p380) target = $region32
        $region31: #{tpu_custom_call.1} parent=11 // pred_region
          _
        $region32: #{tpu_custom_call.1} parent=11 // pred_fallthru
          _
        // Predicated region
        $region33: #{tpu_custom_call.1} parent=11 // pred_check
          %p383 = pneg %p201
        $region34: #{tpu_custom_call.1} parent=11 // pred_check_branch
          %385 = sbr.rel (%p383) target = $region36
        $region35: #{tpu_custom_call.1} parent=11 // pred_region
          _
        $region36: #{tpu_custom_call.1} parent=11 // pred_fallthru
          _
        // Predicated region
        $region37: #{tpu_custom_call.1} parent=11 // pred_check
          %p386 = pneg %p222
        $region38: #{tpu_custom_call.1} parent=11 // pred_check_branch
          %388 = sbr.rel (%p386) target = $region40
        $region39: #{tpu_custom_call.1} parent=11 // pred_region
          _
        $region40: #{tpu_custom_call.1} parent=11 // pred_fallthru
          _
        // Predicated region
        $region41: #{tpu_custom_call.1} parent=11 // pred_check
          %p389 = pneg %p243
        $region42: #{tpu_custom_call.1} parent=11 // pred_check_branch
          %391 = sbr.rel (%p389) target = $region44
        $region43: #{tpu_custom_call.1} parent=11 // pred_region
          _
        $region44: #{tpu_custom_call.1} parent=11 // pred_fallthru
          _
        // Predicated region
        $region45: #{tpu_custom_call.1} parent=11 // pred_check
          %p392 = pneg %p264
        $region46: #{tpu_custom_call.1} parent=11 // pred_check_branch
          %394 = sbr.rel (%p392) target = $region48
        $region47: #{tpu_custom_call.1} parent=11 // pred_region
          _
        $region48: #{tpu_custom_call.1} parent=11 // pred_fallthru
          _
        // Predicated region
        $region49: #{tpu_custom_call.1} parent=11 // pred_check
          %p395 = pneg %p285
        $region50: #{tpu_custom_call.1} parent=11 // pred_check_branch
          %397 = sbr.rel (%p395) target = $region52
        $region51: #{tpu_custom_call.1} parent=11 // pred_region
          _
        $region52: #{tpu_custom_call.1} parent=11 // pred_fallthru
          _
        // Predicated region
        $region53: #{tpu_custom_call.1} parent=11 // pred_check
          %p398 = pneg %p306
        $region54: #{tpu_custom_call.1} parent=11 // pred_check_branch
          %400 = sbr.rel (%p398) target = $region56
        $region55: #{tpu_custom_call.1} parent=11 // pred_region
          _
        $region56: #{tpu_custom_call.1} parent=11 // pred_fallthru
          _
        // Predicated region
        $region57: #{tpu_custom_call.1} parent=11 // pred_check
          %p401 = pneg %p327
        $region58: #{tpu_custom_call.1} parent=11 // pred_check_branch
          %403 = sbr.rel (%p401) target = $region60
        $region59: #{tpu_custom_call.1} parent=11 // pred_region
          _
        $region60: #{tpu_custom_call.1} parent=11 // pred_fallthru
          _
      $region12: #{tpu_custom_call.1} parent=5 // pred_fallthru
        _
      %p404 = scmp.lt.s32.totalorder %s23, 2
      // Predicated region
      $region61: #{tpu_custom_call.1} parent=5 // pred_check
        %p405 = pneg %p404
      $region62: #{tpu_custom_call.1} parent=5 // pred_check_branch
        %407 = sbr.rel (%p405) target = $region64
      $region63: #{tpu_custom_call.1} parent=5 // pred_region
        // Predicated region
        $region65: #{tpu_custom_call.1} parent=63 // pred_check
          %p408 = pneg %p43
        $region66: #{tpu_custom_call.1} parent=63 // pred_check_branch
          %410 = sbr.rel (%p408) target = $region68
        $region67: #{tpu_custom_call.1} parent=63 // pred_region
          %p411 = scmp.lt.s32.totalorder %s23, 1
          %s412 = scalar_select %p411, %s23, 1
          %s413 = smul.addr %s412, 8
          %s414 = scalar_lea.vmem %s0, %s413
        $region68: #{tpu_custom_call.1} parent=63 // pred_fallthru
          _
        // Predicated region
        $region69: #{tpu_custom_call.1} parent=63 // pred_check
          %p415 = pneg %p69
        $region70: #{tpu_custom_call.1} parent=63 // pred_check_branch
          %417 = sbr.rel (%p415) target = $region72
        $region71: #{tpu_custom_call.1} parent=63 // pred_region
          %p418 = scmp.lt.s32.totalorder %s23, 1
          %s419 = scalar_select %p418, %s23, 1
          %s420 = scalar_lea.vmem %s1, %s419
        $region72: #{tpu_custom_call.1} parent=63 // pred_fallthru
          _
      $region64: #{tpu_custom_call.1} parent=5 // pred_fallthru
        _
      %p421 = scmp.le.s32.totalorder 1, %s23
      %p422 = scmp.lt.s32.totalorder %s23, 3
      %p423 = pnand %p421, %p422
      %p424 = pneg %p423
      // Predicated region
      $region73: #{tpu_custom_call.1} parent=5 // pred_check
        _
      $region74: #{tpu_custom_call.1} parent=5 // pred_check_branch
        %426 = sbr.rel (%p423) target = $region76
      $region75: #{tpu_custom_call.1} parent=5 // pred_region
        %s427 = ssub.s32 %s23, 1
        %p428 = scmp.lt.s32.totalorder %s28, 1
        %s429 = scalar_select %p428, %s28, 1
        %s430 = smul.addr %s429, 8
        %s431 = scalar_lea.vmem %s0, %s430
        %p432 = pneg %p49
        %p433 = pneg %p46
        %p434 = scmp.lt.s32.totalorder %s28, 1
        %s435 = scalar_select %p434, %s28, 1
        %s436 = scalar_lea.vmem %s1, %s435
        %p437 = pneg %p75
        %p438 = pneg %p72
        %p439 = pneg %p96
        %p440 = pneg %p93
        %p441 = pneg %p117
        %p442 = pneg %p114
        %p443 = pneg %p138
        %p444 = pneg %p135
        %p445 = pneg %p159
        %p446 = pneg %p156
        %p447 = pneg %p180
        %p448 = pneg %p177
        %p449 = pneg %p201
        %p450 = pneg %p198
        %p451 = pneg %p222
        %p452 = pneg %p219
        %p453 = pneg %p243
        %p454 = pneg %p240
        %p455 = pneg %p264
        %p456 = pneg %p261
        %p457 = pneg %p285
        %p458 = pneg %p282
        %p459 = pneg %p306
        %p460 = pneg %p303
        %p461 = pneg %p327
        %p462 = pneg %p324
        %p463 = pneg %p353
        %p464 = pneg %p350
        %s465 = sand.u32 %s340, 1
        %s466 = scalar_lea.sflag [#allocation5], %s465
        %s467 = sand.u32 %s340, 1
        %s468 = smul.addr %s467, 8
        %s469 = scalar_lea.vmem [#allocation4], %s468
        %p470 = scmp.lt.s32.totalorder %s28, 1
        %s471 = scalar_select %p470, %s28, 1
        %s472 = smul.addr %s471, 8
        %s473 = scalar_lea.vmem %s0, %s472
        %p474 = scmp.lt.s32.totalorder %s28, 1
        %s475 = scalar_select %p474, %s28, 1
        %s476 = scalar_lea.vmem %s1, %s475
        %v478 = vld [vmem:[%s473] sm:$0xff]
        %v479 = vld [vmem:[%s6] sm:$0x1]
        %v480 = vld [vmem:[%s7] sm:$0x1]
        %vm481 = vcmask 261120
        %v482 = vsel %vm481, %v478, 0.0
        %483 = vadd.xlane.f32.xlu0 %v482
        %v484 = vpop.xlane.xlu0 %483
        %v485 = vrcp.pop 32.0
        %v486 = vmul.f32 32.0, %v485
        %v487 = vsub.f32 1.0, %v486
        %v488 = vmul.f32 %v485, %v487
        %v489 = vadd.f32 %v485, %v488
        %vm490 = vweird.f32 %v485
        %v491 = vsel %vm490, %v485, %v489
        %v492 = vmul.f32 %v484, %v491
        %v493 = vsub.f32 %v478, %v492
        %v494 = vmul.f32 %v493, %v493
        %v495 = vsel %vm481, %v494, 0.0
        %496 = vadd.xlane.f32.xlu0 %v495
        %v497 = vpop.xlane.xlu0 %496
        %v498 = vrcp.pop 31.0
        %v499 = vmul.f32 31.0, %v498
        %v500 = vsub.f32 1.0, %v499
        %v501 = vmul.f32 %v498, %v500
        %v502 = vadd.f32 %v498, %v501
        %vm503 = vweird.f32 %v498
        %v504 = vsel %vm503, %v498, %v502
        %v505 = vmul.f32 %v497, %v504
        %v506 = vrsqrt.pop %v505
        %v507 = vmul.f32 %v506, %v505
        %v508 = vmul.f32 %v507, %v506
        %v509 = vmul.f32 0.5, %v508
        %v510 = vsub.f32 1.5, %v509
        %v511 = vmul.f32 %v506, %v510
        %v512 = vmul.f32 %v505, %v511
        %vm513 = vcmp.eq.f32.partialorder %v505, inf
        %v514 = vsel %vm513, %v505, %v512
        %vm515 = vcmp.eq.f32.partialorder %v505, 0.0
        %v516 = vand.u32 %v505, 2147483648
        %v517 = vsel %vm515, %v516, %v514
        %v518 = vadd.f32 %v517, 1e-06
        %v519 = vrcp.pop %v518
        %v521 = vperm.slane %v479, 0
        %v523 = vmul.f32 %v521, %v493
        %v524 = vmul.f32 %v523, %v519
        %v526 = vperm.slane %v480, 0
        %v528 = vadd.f32 %v524, %v526
        %v529 = vpack.c.bf16 %v528, %v528
        %v530 = vld [vmem:[%s2] sm:$0xf]
        %v531 = vld [vmem:[%s2 + $0x4] sm:$0xf]
        %v532 = vld [vmem:[%s2 + $0x8] sm:$0xf]
        %v533 = vld [vmem:[%s2 + $0xc] sm:$0xf]
        %v534 = vld [vmem:[%s3] sm:$0x1]
        %v536 = vperm.slane %v534, 0
        %v542 = vunpack.c.l.b16 %v530
        %v543 = vunpack.c.l.b16 %v531
        %v544 = vunpack.c.l.b16 %v532
        %v545 = vunpack.c.l.b16 %v533
        %v546 = vpack.c.b16 %v543, %v542
        %v547 = vpack.c.b16 %v545, %v544
        %v551 = vsel %vm481, %v529, 0
        %553 = vmatpush.bf16.msra.mxu0 0
        %554 = vmatpush.bf16.msra.mxu0 0
        %555 = vmatpush.bf16.msra.mxu0 0
        %556 = vmatpush.bf16.msra.mxu0 0
        %557 = vmatpush.bf16.msra.mxu0 0
        %558 = vmatpush.bf16.msra.mxu0 0
        %559 = vmatpush.bf16.msra.mxu0 %v547
        %560 = vmatpush.bf16.msra.mxu0 %v546
        %561 = vmatmul.bf16.gmra.mxu0 %v551
        %v562 = vpop.f32.mrf.mxu0
        %v563 = vadd.f32 %v536, %v562
        %v564 = vpop.f32.mrf.mxu0
        %565 = vdwg.mxu0
        %v566 = vpack.c.bf16 %v563, %v563
        %vm567 = vcmask 781312
        %568 = vst.msk [vmem:[#allocation2] sm:$0xf] %vm567, %v566
        %v569 = vld [vmem:[%s476] sm:$0x1]
        %vm570 = vcmp.eq.s32.totalorder %v569, 0
        %v571 = vsel %vm570, -1e+09, 0.0
        %v572 = vld [vmem:[#allocation2] sm:$0xf]
        %v574 = vperm.slane %v571, 0
        %v577 = vunpack.c.l.b16 %v572
        %v578 = vpack.c.b16 %v577, %v577
        %579 = vrot.lane.b32.xlu0 %v578, 96
        %v580 = vpop.permute.xlu0 %579
        %vm581 = vcmask 64512
        %v583 = vsel %vm581, %v572, 0
        %v586 = vsel %vm581, %v580, 0
        %588 = vmatpush.bf16.xpose.msra.mxu0 0
        %589 = vmatpush.bf16.xpose.msra.mxu0 0
        %590 = vmatpush.bf16.xpose.msra.mxu0 0
        %591 = vmatpush.bf16.xpose.msra.mxu0 0
        %592 = vmatpush.bf16.xpose.msra.mxu0 0
        %593 = vmatpush.bf16.xpose.msra.mxu0 0
        %594 = vmatpush.bf16.xpose.msra.mxu0 0
        %595 = vmatpush.bf16.xpose.msra.mxu0 %v586
        %596 = vmatmul.bf16.gmra.mxu0 %v583
        %v597 = vpop.f32.mrf.mxu0
        %v598 = vadd.f32 %v574, %v597
        %v599 = vpop.f32.mrf.mxu0
        %600 = vdwg.mxu0
        %v601 = vsel %vm581, %v598, -inf
        %602 = vmax.xlane.f32.xlu0 %v601
        %v603 = vpop.xlane.xlu0 %602
        %v604 = vsub.f32 %v598, %v603
        %v605 = vmul.f32 %v604, 1.442695
        %v606 = vpow.pop %v605
        %v607 = vsel %vm581, %v606, 0.0
        %608 = vadd.xlane.f32.xlu0 %v607
        %v609 = vpop.xlane.xlu0 %608
        %v610 = vrcp.pop %v609
        %v611 = vpack.c.bf16 %v606, %v606
        %612 = vrot.lane.b32.xlu0 %v578, 64
        %v613 = vpop.permute.xlu0 %612
        %v615 = vsel %vm581, %v611, 0
        %vm617 = vcmask 1043456
        %v619 = vsel %vm617, %v613, 0
        %621 = vmatpush.bf16.msra.mxu0 0
        %622 = vmatpush.bf16.msra.mxu0 0
        %623 = vmatpush.bf16.msra.mxu0 0
        %624 = vmatpush.bf16.msra.mxu0 0
        %625 = vmatpush.bf16.msra.mxu0 0
        %626 = vmatpush.bf16.msra.mxu0 0
        %627 = vmatpush.bf16.msra.mxu0 0
        %628 = vmatpush.bf16.msra.mxu0 %v619
        %629 = vmatmul.bf16.gmra.mxu0 %v615
        %v630 = vpop.f32.mrf.mxu0
        %v631 = vadd.f32 0.0, %v630
        %v632 = vpop.f32.mrf.mxu0
        %633 = vdwg.mxu0
        %v634 = vmul.f32 %v631, %v610
        %v635 = vpack.c.bf16 %v634, %v634
        %vm636 = vcmask 60416
        %637 = vst.msk [vmem:[#allocation3] sm:$0xf] %vm636, %v635
        %v638 = vld [vmem:[#allocation2] sm:$0xf]
        %v640 = vunpack.c.l.b16 %v638
        %v641 = vpack.c.b16 %v640, %v640
        %642 = vrot.lane.b32.xlu0 %v641, 120
        %v643 = vpop.permute.xlu0 %642
        %644 = vrot.lane.b32.xlu0 %v641, 88
        %v645 = vpop.permute.xlu0 %644
        %v647 = vsel %vm581, %v643, 0
        %v650 = vsel %vm581, %v645, 0
        %652 = vmatpush.bf16.xpose.msra.mxu0 0
        %653 = vmatpush.bf16.xpose.msra.mxu0 0
        %654 = vmatpush.bf16.xpose.msra.mxu0 0
        %655 = vmatpush.bf16.xpose.msra.mxu0 0
        %656 = vmatpush.bf16.xpose.msra.mxu0 0
        %657 = vmatpush.bf16.xpose.msra.mxu0 0
        %658 = vmatpush.bf16.xpose.msra.mxu0 0
        %659 = vmatpush.bf16.xpose.msra.mxu0 %v650
        %660 = vmatmul.bf16.gmra.mxu0 %v647
        %v661 = vpop.f32.mrf.mxu0
        %v662 = vadd.f32 %v574, %v661
        %v663 = vpop.f32.mrf.mxu0
        %664 = vdwg.mxu0
        %v665 = vsel %vm581, %v662, -inf
        %666 = vmax.xlane.f32.xlu0 %v665
        %v667 = vpop.xlane.xlu0 %666
        %v668 = vsub.f32 %v662, %v667
        %v669 = vmul.f32 %v668, 1.442695
        %v670 = vpow.pop %v669
        %v671 = vsel %vm581, %v670, 0.0
        %672 = vadd.xlane.f32.xlu0 %v671
        %v673 = vpop.xlane.xlu0 %672
        %v674 = vrcp.pop %v673
        %v675 = vpack.c.bf16 %v670, %v670
        %676 = vrot.lane.b32.xlu0 %v641, 56
        %v677 = vpop.permute.xlu0 %676
        %v679 = vsel %vm581, %v675, 0
        %v682 = vsel %vm617, %v677, 0
        %684 = vmatpush.bf16.msra.mxu0 0
        %685 = vmatpush.bf16.msra.mxu0 0
        %686 = vmatpush.bf16.msra.mxu0 0
        %687 = vmatpush.bf16.msra.mxu0 0
        %688 = vmatpush.bf16.msra.mxu0 0
        %689 = vmatpush.bf16.msra.mxu0 0
        %690 = vmatpush.bf16.msra.mxu0 0
        %691 = vmatpush.bf16.msra.mxu0 %v682
        %692 = vmatmul.bf16.gmra.mxu0 %v679
        %v693 = vpop.f32.mrf.mxu0
        %v694 = vadd.f32 0.0, %v693
        %v695 = vpop.f32.mrf.mxu0
        %696 = vdwg.mxu0
        %v697 = vmul.f32 %v694, %v674
        %v698 = vpack.c.bf16 %v697, %v697
        %700 = vrot.lane.b32.xlu0 %v698, 8
        %v701 = vpop.permute.xlu0 %700
        %vm703 = vcmask 126016
        %704 = vst.msk [vmem:[#allocation3] sm:$0xf] %vm703, %v701
        %v705 = vld [vmem:[#allocation2] sm:$0xf]
        %v707 = vunpack.c.l.b16 %v705
        %v708 = vpack.c.b16 %v707, %v707
        %709 = vrot.lane.b32.xlu0 %v708, 112
        %v710 = vpop.permute.xlu0 %709
        %711 = vrot.lane.b32.xlu0 %v708, 80
        %v712 = vpop.permute.xlu0 %711
        %v714 = vsel %vm581, %v710, 0
        %v717 = vsel %vm581, %v712, 0
        %719 = vmatpush.bf16.xpose.msra.mxu0 0
        %720 = vmatpush.bf16.xpose.msra.mxu0 0
        %721 = vmatpush.bf16.xpose.msra.mxu0 0
        %722 = vmatpush.bf16.xpose.msra.mxu0 0
        %723 = vmatpush.bf16.xpose.msra.mxu0 0
        %724 = vmatpush.bf16.xpose.msra.mxu0 0
        %725 = vmatpush.bf16.xpose.msra.mxu0 0
        %726 = vmatpush.bf16.xpose.msra.mxu0 %v717
        %727 = vmatmul.bf16.gmra.mxu0 %v714
        %v728 = vpop.f32.mrf.mxu0
        %v729 = vadd.f32 %v574, %v728
        %v730 = vpop.f32.mrf.mxu0
        %731 = vdwg.mxu0
        %v732 = vsel %vm581, %v729, -inf
        %733 = vmax.xlane.f32.xlu0 %v732
        %v734 = vpop.xlane.xlu0 %733
        %v735 = vsub.f32 %v729, %v734
        %v736 = vmul.f32 %v735, 1.442695
        %v737 = vpow.pop %v736
        %v738 = vsel %vm581, %v737, 0.0
        %739 = vadd.xlane.f32.xlu0 %v738
        %v740 = vpop.xlane.xlu0 %739
        %v741 = vrcp.pop %v740
        %v742 = vpack.c.bf16 %v737, %v737
        %743 = vrot.lane.b32.xlu0 %v708, 48
        %v744 = vpop.permute.xlu0 %743
        %v746 = vsel %vm581, %v742, 0
        %v749 = vsel %vm617, %v744, 0
        %751 = vmatpush.bf16.msra.mxu0 0
        %752 = vmatpush.bf16.msra.mxu0 0
        %753 = vmatpush.bf16.msra.mxu0 0
        %754 = vmatpush.bf16.msra.mxu0 0
        %755 = vmatpush.bf16.msra.mxu0 0
        %756 = vmatpush.bf16.msra.mxu0 0
        %757 = vmatpush.bf16.msra.mxu0 0
        %758 = vmatpush.bf16.msra.mxu0 %v749
        %759 = vmatmul.bf16.gmra.mxu0 %v746
        %v760 = vpop.f32.mrf.mxu0
        %v761 = vadd.f32 0.0, %v760
        %v762 = vpop.f32.mrf.mxu0
        %763 = vdwg.mxu0
        %v764 = vmul.f32 %v761, %v741
        %v765 = vpack.c.bf16 %v764, %v764
        %767 = vrot.lane.b32.xlu0 %v765, 16
        %v768 = vpop.permute.xlu0 %767
        %vm770 = vcmask 191616
        %771 = vst.msk [vmem:[#allocation3] sm:$0xf] %vm770, %v768
        %v772 = vld [vmem:[#allocation2] sm:$0xf]
        %v774 = vunpack.c.l.b16 %v772
        %v775 = vpack.c.b16 %v774, %v774
        %776 = vrot.lane.b32.xlu0 %v775, 104
        %v777 = vpop.permute.xlu0 %776
        %778 = vrot.lane.b32.xlu0 %v775, 72
        %v779 = vpop.permute.xlu0 %778
        %v781 = vsel %vm581, %v777, 0
        %v784 = vsel %vm581, %v779, 0
        %786 = vmatpush.bf16.xpose.msra.mxu0 0
        %787 = vmatpush.bf16.xpose.msra.mxu0 0
        %788 = vmatpush.bf16.xpose.msra.mxu0 0
        %789 = vmatpush.bf16.xpose.msra.mxu0 0
        %790 = vmatpush.bf16.xpose.msra.mxu0 0
        %791 = vmatpush.bf16.xpose.msra.mxu0 0
        %792 = vmatpush.bf16.xpose.msra.mxu0 0
        %793 = vmatpush.bf16.xpose.msra.mxu0 %v784
        %794 = vmatmul.bf16.gmra.mxu0 %v781
        %v795 = vpop.f32.mrf.mxu0
        %v796 = vadd.f32 %v574, %v795
        %v797 = vpop.f32.mrf.mxu0
        %798 = vdwg.mxu0
        %v799 = vsel %vm581, %v796, -inf
        %800 = vmax.xlane.f32.xlu0 %v799
        %v801 = vpop.xlane.xlu0 %800
        %v802 = vsub.f32 %v796, %v801
        %v803 = vmul.f32 %v802, 1.442695
        %v804 = vpow.pop %v803
        %v805 = vsel %vm581, %v804, 0.0
        %806 = vadd.xlane.f32.xlu0 %v805
        %v807 = vpop.xlane.xlu0 %806
        %v808 = vrcp.pop %v807
        %v809 = vpack.c.bf16 %v804, %v804
        %810 = vrot.lane.b32.xlu0 %v775, 40
        %v811 = vpop.permute.xlu0 %810
        %v813 = vsel %vm581, %v809, 0
        %v816 = vsel %vm617, %v811, 0
        %818 = vmatpush.bf16.msra.mxu0 0
        %819 = vmatpush.bf16.msra.mxu0 0
        %820 = vmatpush.bf16.msra.mxu0 0
        %821 = vmatpush.bf16.msra.mxu0 0
        %822 = vmatpush.bf16.msra.mxu0 0
        %823 = vmatpush.bf16.msra.mxu0 0
        %824 = vmatpush.bf16.msra.mxu0 0
        %825 = vmatpush.bf16.msra.mxu0 %v816
        %826 = vmatmul.bf16.gmra.mxu0 %v813
        %v827 = vpop.f32.mrf.mxu0
        %v828 = vadd.f32 0.0, %v827
        %v829 = vpop.f32.mrf.mxu0
        %830 = vdwg.mxu0
        %v831 = vmul.f32 %v828, %v808
        %v832 = vpack.c.bf16 %v831, %v831
        %834 = vrot.lane.b32.xlu0 %v832, 24
        %v835 = vpop.permute.xlu0 %834
        %vm837 = vcmask 257216
        %838 = vst.msk [vmem:[#allocation3] sm:$0xf] %vm837, %v835
        %v839 = vld [vmem:[#allocation3] sm:$0xf]
        %v840 = vld [vmem:[%s4] sm:$0xf]
        %v841 = vld [vmem:[%s4 + $0x4] sm:$0xf]
        %v842 = vld [vmem:[%s4 + $0x8] sm:$0xf]
        %v843 = vld [vmem:[%s4 + $0xc] sm:$0xf]
        %v844 = vld [vmem:[%s5] sm:$0x1]
        %v846 = vperm.slane %v844, 0
        %v852 = vunpack.c.l.b16 %v840
        %v853 = vunpack.c.l.b16 %v841
        %v854 = vunpack.c.l.b16 %v842
        %v855 = vunpack.c.l.b16 %v843
        %v856 = vpack.c.b16 %v853, %v852
        %v857 = vpack.c.b16 %v855, %v854
        %v861 = vsel %vm481, %v839, 0
        %863 = vmatpush.bf16.msra.mxu0 0
        %864 = vmatpush.bf16.msra.mxu0 0
        %865 = vmatpush.bf16.msra.mxu0 0
        %866 = vmatpush.bf16.msra.mxu0 0
        %867 = vmatpush.bf16.msra.mxu0 0
        %868 = vmatpush.bf16.msra.mxu0 0
        %869 = vmatpush.bf16.msra.mxu0 %v857
        %870 = vmatpush.bf16.msra.mxu0 %v856
        %871 = vmatmul.bf16.gmra.mxu0 %v861
        %v872 = vpop.f32.mrf.mxu0
        %v873 = vadd.f32 %v846, %v872
        %v874 = vpop.f32.mrf.mxu0
        %875 = vdwg.mxu0
        %v876 = vadd.f32 %v478, %v873
        %v877 = vld [vmem:[%s12] sm:$0x1]
        %v878 = vld [vmem:[%s13] sm:$0x1]
        %v879 = vsel %vm481, %v876, 0.0
        %880 = vadd.xlane.f32.xlu0 %v879
        %v881 = vpop.xlane.xlu0 %880
        %v882 = vmul.f32 %v881, %v491
        %v883 = vsub.f32 %v876, %v882
        %v884 = vmul.f32 %v883, %v883
        %v885 = vsel %vm481, %v884, 0.0
        %886 = vadd.xlane.f32.xlu0 %v885
        %v887 = vpop.xlane.xlu0 %886
        %v888 = vmul.f32 %v887, %v504
        %v889 = vrsqrt.pop %v888
        %v890 = vmul.f32 %v889, %v888
        %v891 = vmul.f32 %v890, %v889
        %v892 = vmul.f32 0.5, %v891
        %v893 = vsub.f32 1.5, %v892
        %v894 = vmul.f32 %v889, %v893
        %v895 = vmul.f32 %v888, %v894
        %vm896 = vcmp.eq.f32.partialorder %v888, inf
        %v897 = vsel %vm896, %v888, %v895
        %vm898 = vcmp.eq.f32.partialorder %v888, 0.0
        %v899 = vand.u32 %v888, 2147483648
        %v900 = vsel %vm898, %v899, %v897
        %v901 = vadd.f32 %v900, 1e-06
        %v902 = vrcp.pop %v901
        %v904 = vperm.slane %v877, 0
        %v906 = vmul.f32 %v904, %v883
        %v907 = vmul.f32 %v906, %v902
        %v909 = vperm.slane %v878, 0
        %v911 = vadd.f32 %v907, %v909
        %v912 = vpack.c.bf16 %v911, %v911
        %v913 = vld [vmem:[%s8] sm:$0xf]
        %v914 = vld [vmem:[%s8 + $0x4] sm:$0xf]
        %v915 = vld [vmem:[%s8 + $0x8] sm:$0xf]
        %v916 = vld [vmem:[%s8 + $0xc] sm:$0xf]
        %v917 = vld [vmem:[%s9] sm:$0x1]
        %v919 = vperm.slane %v917, 0
        %v925 = vunpack.c.l.b16 %v913
        %v926 = vunpack.c.l.b16 %v914
        %v927 = vunpack.c.l.b16 %v915
        %v928 = vunpack.c.l.b16 %v916
        %v929 = vpack.c.b16 %v926, %v925
        %v930 = vpack.c.b16 %v928, %v927
        %v934 = vsel %vm481, %v912, 0
        %936 = vmatpush.bf16.msra.mxu0 0
        %937 = vmatpush.bf16.msra.mxu0 0
        %938 = vmatpush.bf16.msra.mxu0 0
        %939 = vmatpush.bf16.msra.mxu0 0
        %940 = vmatpush.bf16.msra.mxu0 0
        %941 = vmatpush.bf16.msra.mxu0 0
        %942 = vmatpush.bf16.msra.mxu0 %v930
        %943 = vmatpush.bf16.msra.mxu0 %v929
        %944 = vmatmul.bf16.gmra.mxu0 %v934
        %v945 = vpop.f32.mrf.mxu0
        %v946 = vadd.f32 %v919, %v945
        %v947 = vpop.f32.mrf.mxu0
        %948 = vdwg.mxu0
        %v949 = vmul.f32 %v946, 0.5
        %v950 = vmul.f32 %v946, 0.044715
        %v951 = vmul.f32 %v950, %v946
        %v952 = vmul.f32 %v951, %v946
        %v953 = vadd.f32 %v946, %v952
        %v954 = vmul.f32 %v953, 0.7978846
        %v955 = vtanh.pop %v954
        %v956 = vadd.f32 %v955, 1.0
        %v957 = vmul.f32 %v949, %v956
        %v958 = vpack.c.bf16 %v957, %v957
        %v959 = vld [vmem:[%s10] sm:$0xf]
        %v960 = vld [vmem:[%s10 + $0x4] sm:$0xf]
        %v961 = vld [vmem:[%s10 + $0x8] sm:$0xf]
        %v962 = vld [vmem:[%s10 + $0xc] sm:$0xf]
        %v963 = vld [vmem:[%s10 + $0x10] sm:$0xf]
        %v964 = vld [vmem:[%s10 + $0x14] sm:$0xf]
        %v965 = vld [vmem:[%s10 + $0x18] sm:$0xf]
        %v966 = vld [vmem:[%s10 + $0x1c] sm:$0xf]
        %v967 = vld [vmem:[%s10 + $0x20] sm:$0xf]
        %v968 = vld [vmem:[%s10 + $0x24] sm:$0xf]
        %v969 = vld [vmem:[%s10 + $0x28] sm:$0xf]
        %v970 = vld [vmem:[%s10 + $0x2c] sm:$0xf]
        %v971 = vld [vmem:[%s10 + $0x30] sm:$0xf]
        %v972 = vld [vmem:[%s10 + $0x34] sm:$0xf]
        %v973 = vld [vmem:[%s10 + $0x38] sm:$0xf]
        %v974 = vld [vmem:[%s10 + $0x3c] sm:$0xf]
        %v975 = vld [vmem:[%s11] sm:$0x1]
        %v977 = vperm.slane %v975, 0
        %v995 = vunpack.c.l.b16 %v959
        %v996 = vunpack.c.l.b16 %v960
        %v997 = vunpack.c.l.b16 %v961
        %v998 = vunpack.c.l.b16 %v962
        %v999 = vunpack.c.l.b16 %v963
        %v1000 = vunpack.c.l.b16 %v964
        %v1001 = vunpack.c.l.b16 %v965
        %v1002 = vunpack.c.l.b16 %v966
        %v1003 = vunpack.c.l.b16 %v967
        %v1004 = vunpack.c.l.b16 %v968
        %v1005 = vunpack.c.l.b16 %v969
        %v1006 = vunpack.c.l.b16 %v970
        %v1007 = vunpack.c.l.b16 %v971
        %v1008 = vunpack.c.l.b16 %v972
        %v1009 = vunpack.c.l.b16 %v973
        %v1010 = vunpack.c.l.b16 %v974
        %v1011 = vpack.c.b16 %v996, %v995
        %v1012 = vpack.c.b16 %v998, %v997
        %v1013 = vpack.c.b16 %v1000, %v999
        %v1014 = vpack.c.b16 %v1002, %v1001
        %v1015 = vpack.c.b16 %v1004, %v1003
        %v1016 = vpack.c.b16 %v1006, %v1005
        %v1017 = vpack.c.b16 %v1008, %v1007
        %v1018 = vpack.c.b16 %v1010, %v1009
        %1027 = vmatpush.bf16.msra.mxu0 %v1018
        %1028 = vmatpush.bf16.msra.mxu0 %v1017
        %1029 = vmatpush.bf16.msra.mxu0 %v1016
        %1030 = vmatpush.bf16.msra.mxu0 %v1015
        %1031 = vmatpush.bf16.msra.mxu0 %v1014
        %1032 = vmatpush.bf16.msra.mxu0 %v1013
        %1033 = vmatpush.bf16.msra.mxu0 %v1012
        %1034 = vmatpush.bf16.msra.mxu0 %v1011
        %1035 = vmatmul.bf16.gmra.mxu0 %v958
        %v1036 = vpop.f32.mrf.mxu0
        %v1037 = vadd.f32 %v977, %v1036
        %v1038 = vpop.f32.mrf.mxu0
        %1039 = vdwg.mxu0
        %v1040 = vadd.f32 %v876, %v1037
        %1041 = vst.msk [vmem:[%s469] sm:$0xff] %vm481, %v1040
        %s1042 = sand.u32 %s340, 1
        %s1043 = scalar_lea.sflag [#allocation5], %s1042
        %s1044 = sand.u32 %s340, 1
        %s1045 = smul.addr %s1044, 8
        %s1046 = scalar_lea.vmem [#allocation4], %s1045
        // Predicated region
        $region77: #{tpu_custom_call.1} parent=75 // pred_check
          %p1047 = pneg %p350
        $region78: #{tpu_custom_call.1} parent=75 // pred_check_branch
          %1049 = sbr.rel (%p1047) target = $region80
        $region79: #{tpu_custom_call.1} parent=75 // pred_region
          %1051 = vsyncadd %s1043, 0
          %s1052 = smul.addr %s28, 8
          %s1053 = scalar_lea.hbm %s14, %s1052
          %s1055 = sshll.u32 %s1046, 4
          %s1056 = int_to_ptr.vmem [resolvable:$true] %s1055
          %s1057 = sshll.u32 %s1053, 4
          %s1058 = int_to_ptr.hbm [resolvable:$true] %s1057
          %1060 = dma.vmem_to_hbm [thread:$0]  %s1056, 128, %s1058, %s1043
        $region80: #{tpu_custom_call.1} parent=75 // pred_fallthru
          _
      $region76: #{tpu_custom_call.1} parent=5 // pred_fallthru
        _
      %p1061 = scmp.le.s32.totalorder 2, %s23
      // Predicated region
      $region81: #{tpu_custom_call.1} parent=5 // pred_check
        %p1062 = pneg %p1061
      $region82: #{tpu_custom_call.1} parent=5 // pred_check_branch
        %1064 = sbr.rel (%p1062) target = $region84
      $region83: #{tpu_custom_call.1} parent=5 // pred_region
        %s1065 = ssub.s32 %s23, 2
        // Predicated region
        $region85: #{tpu_custom_call.1} parent=83 // pred_check
          %p1066 = pneg %p356
        $region86: #{tpu_custom_call.1} parent=83 // pred_check_branch
          %1068 = sbr.rel (%p1066) target = $region88
        $region87: #{tpu_custom_call.1} parent=83 // pred_region
          %s1069 = sand.u32 %s341, 1
          %s1070 = scalar_lea.sflag [#allocation5], %s1069
          %s1071 = sand.u32 %s341, 1
          %s1072 = smul.addr %s1071, 8
          %s1073 = scalar_lea.vmem [#allocation4], %s1072
          %1075 = dma.done %s1070, 128
        $region88: #{tpu_custom_call.1} parent=83 // pred_fallthru
          _
      $region84: #{tpu_custom_call.1} parent=5 // pred_fallthru
        _
    $region6: #{tpu_custom_call.1} parent=1 // loop_footer
      %s27 = sadd.s32 1, %s23
    $region7: #{tpu_custom_call.1} parent=1 // loop_footer_branch
      %22 = sbr.rel target = $region3
    $region8: #{tpu_custom_call.1} parent=1 // loop_exit
      _
    %1076 = vsyncpa [#allocation5], 1
    %s1077 = scalar_lea.sflag [#allocation5], 1
    %1078 = vsyncpa %s1077, 1

</llo_original>
